<compile_context>
chip_gen: v6e
topology: v6e:2x2x1
jax: 0.10.0
libtpu: 0.0.40
codegen_flags: <defaults>
</compile_context>

<pallas_src>
import jax
import jax.numpy as jnp
from jax.experimental import pallas as pl
from jax.experimental.pallas import tpu as pltpu

HIDDEN = 512
N_BLOCKS = 4
EPS = 1e-5


def _bn_relu(z, gb, inv_n):
    """Fused training-mode BatchNorm1d (+ ReLU) on a (B, 512) f32 activation.

    z   : (B, 512) f32   pre-BN activation
    gb  : (1, 1024) f32  [gamma | beta] packed lane-dense
    """
    s1 = jnp.sum(z, axis=0, keepdims=True)                 # (1, 512)
    s2 = jnp.sum(z * z, axis=0, keepdims=True)             # (1, 512)
    mean = s1 * inv_n
    var = jnp.maximum(s2 * inv_n - mean * mean, 0.0)       # biased var, clamped
    gamma = gb[:, :HIDDEN]
    beta = gb[:, HIDDEN:]
    scale = gamma * jax.lax.rsqrt(var + EPS)                # EUP rsqrt
    shift = beta - mean * scale
    return jnp.maximum(z * scale + shift, 0.0)


# ----------------------------------------------------------------------------
# Small-batch path: single kernel invocation, all weights resident, 4 layers
# unrolled (no per-layer grid-step overhead, one 2 MiB weight DMA).
# ----------------------------------------------------------------------------
def _fused_kernel(x_ref, w_ref, gb_ref, w5_ref, b5_ref, o_ref):
    """
    x_ref  : (B, 512)          input features
    w_ref  : (4, 512, 512)     bf16 Linear weights, (in, out)
    gb_ref : (4, 1, 1024)      [gamma | beta] per layer
    w5_ref : (1, 512)          final Linear weight (bf16)
    b5_ref : (1, 1) SMEM       final Linear bias (scalar)
    o_ref  : (B, 1)            output logits
    """
    h = x_ref[...].astype(jnp.float32)
    inv_n = 1.0 / h.shape[0]
    for i in range(N_BLOCKS):
        # MXU at native bf16: cast LHS only; weight fed straight from VMEM.
        z = jnp.dot(h.astype(jnp.bfloat16), w_ref[i],
                    preferred_element_type=jnp.float32)
        h = _bn_relu(z, gb_ref[i], inv_n)

    w5 = w5_ref[...].astype(jnp.float32)                    # (1, 512)
    y = jnp.sum(h * w5, axis=-1, keepdims=True) + b5_ref[0, 0]
    o_ref[...] = y.astype(o_ref.dtype)


def _fused_call(x, w_stack_bf16, gb_stack, w5_bf16, b5):
    B = x.shape[0]
    return pl.pallas_call(
        _fused_kernel,
        out_shape=jax.ShapeDtypeStruct((B, 1), jnp.float32),
        in_specs=[
            pl.BlockSpec(memory_space=pltpu.MemorySpace.VMEM),   # x
            pl.BlockSpec(memory_space=pltpu.MemorySpace.VMEM),   # weight stack (2 MiB bf16)
            pl.BlockSpec(memory_space=pltpu.MemorySpace.VMEM),   # gamma|beta
            pl.BlockSpec(memory_space=pltpu.MemorySpace.VMEM),   # head weight
            pl.BlockSpec(memory_space=pltpu.MemorySpace.SMEM),   # head bias scalar
        ],
        out_specs=pl.BlockSpec(memory_space=pltpu.MemorySpace.VMEM),
    )(x, w_stack_bf16, gb_stack, w5_bf16, b5)


# ----------------------------------------------------------------------------
# Large-batch path: 4-step grid, one weight slab per step (double-buffered by
# BlockSpec) so the per-layer DMA hides behind the per-layer MXU work.
# ----------------------------------------------------------------------------
def _streamed_kernel(x_ref, w_ref, gb_ref, w5_ref, b5_ref, o_ref, h_ref):
    """One grid step == one [Linear -> BatchNorm1d(train) -> ReLU] block.

    x_ref  : (B, 512)        input features (resident; constant block index)
    w_ref  : (1, 512, 512)   this layer's Linear weight, bf16, (in, out)
    gb_ref : (1, 1, 1024)    this layer's [gamma | beta]
    w5_ref : (1, 512)        final Linear weight (bf16)
    b5_ref : (1, 1) SMEM     final Linear bias (scalar)
    o_ref  : (B, 1)          output logits (written on the last step only)
    h_ref  : (B, 512) f32    carried activation (VMEM scratch)
    """
    i = pl.program_id(0)
    last = pl.num_programs(0) - 1

    @pl.when(i == 0)
    def _():
        h_ref[...] = x_ref[...].astype(jnp.float32)

    h = h_ref[...]
    z = jnp.dot(h.astype(jnp.bfloat16), w_ref[0],
                preferred_element_type=jnp.float32)
    h_new = _bn_relu(z, gb_ref[0], 1.0 / z.shape[0])
    h_ref[...] = h_new

    @pl.when(i == last)
    def _():
        w5 = w5_ref[...].astype(jnp.float32)
        y = jnp.sum(h_new * w5, axis=-1, keepdims=True) + b5_ref[0, 0]
        o_ref[...] = y.astype(o_ref.dtype)


def _streamed_call(x, w_stack_bf16, gb_stack, w5_bf16, b5):
    B = x.shape[0]
    # TODO(synk): for very large B, add a "parallel" batch-tile axis (2 TCs on
    # v7x) with a two-pass / cross-tile BN combine and re-derive tiling for
    # v7x's 64 MiB VMEM.
    grid_spec = pltpu.PrefetchScalarGridSpec(
        num_scalar_prefetch=0,
        grid=(N_BLOCKS,),
        in_specs=[
            pl.BlockSpec((B, HIDDEN), lambda i: (0, 0)),              # x (resident)
            pl.BlockSpec((1, HIDDEN, HIDDEN), lambda i: (i, 0, 0)),   # layer weight
            pl.BlockSpec((1, 1, 2 * HIDDEN), lambda i: (i, 0, 0)),    # gamma|beta
            pl.BlockSpec((1, HIDDEN), lambda i: (0, 0)),              # head weight
            pl.BlockSpec(memory_space=pltpu.MemorySpace.SMEM),        # head bias
        ],
        out_specs=pl.BlockSpec((B, 1), lambda i: (0, 0)),
        scratch_shapes=[pltpu.VMEM((B, HIDDEN), jnp.float32)],
    )
    return pl.pallas_call(
        _streamed_kernel,
        out_shape=jax.ShapeDtypeStruct((B, 1), jnp.float32),
        grid_spec=grid_spec,
        compiler_params=pltpu.CompilerParams(
            dimension_semantics=("arbitrary",)),
    )(x, w_stack_bf16, gb_stack, w5_bf16, b5)


def domain_classifier(x, w_stack_bf16, gb_stack, w5_bf16, b5, *,
                      stream_min_batch=256, force_streamed=False):
    """Branch on batch size: below ~a few hundred rows the per-layer compute
    cannot hide a per-layer 512 KiB weight DMA, so the grid only adds step
    overhead — use the fully-fused single-step kernel there."""
    B = x.shape[0]
    if force_streamed or B >= stream_min_batch:
        return _streamed_call(x, w_stack_bf16, gb_stack, w5_bf16, b5)
    return _fused_call(x, w_stack_bf16, gb_stack, w5_bf16, b5)


def reference_forward(x, w_stack_bf16, b_stack, g_stack, beta_stack, w5_bf16, b5):
    """Plain-JAX mirror of the PyTorch forward (training-mode BN, Linear biases
    kept — validating the kernel's bias elision) at the kernel's precision:
    bf16 matmul operands, f32 accumulation and BN math."""
    h = x.astype(jnp.float32)
    for i in range(N_BLOCKS):
        z = jnp.dot(h.astype(jnp.bfloat16), w_stack_bf16[i],
                    preferred_element_type=jnp.float32) + b_stack[i][None, :]
        mean = jnp.mean(z, axis=0, keepdims=True)
        var = jnp.mean((z - mean) ** 2, axis=0, keepdims=True)
        h = (z - mean) * jax.lax.rsqrt(var + EPS) * g_stack[i][None, :] \
            + beta_stack[i][None, :]
        h = jnp.maximum(h, 0.0)
    return h @ w5_bf16.astype(jnp.float32).reshape(HIDDEN, 1) + b5


if __name__ == "__main__":
    B = 8  # small batch; BatchNorm1d needs B > 1 for meaningful batch stats

    key = jax.random.PRNGKey(0)
    kx, kw, kb, kg, kbeta, kw5, kb5 = jax.random.split(key, 7)

    # Deterministic synthetic parameters (shapes from the module's __init__).
    x = jax.random.normal(kx, (B, HIDDEN), dtype=jnp.float32)
    w_stack = 0.02 * jax.random.normal(kw, (N_BLOCKS, HIDDEN, HIDDEN), dtype=jnp.float32)
    b_stack = 0.02 * jax.random.normal(kb, (N_BLOCKS, HIDDEN), dtype=jnp.float32)
    g_stack = 1.0 + 0.1 * jax.random.normal(kg, (N_BLOCKS, HIDDEN), dtype=jnp.float32)
    beta_stack = 0.1 * jax.random.normal(kbeta, (N_BLOCKS, HIDDEN), dtype=jnp.float32)
    w5 = 0.02 * jax.random.normal(kw5, (HIDDEN,), dtype=jnp.float32)
    b5 = 0.02 * jax.random.normal(kb5, (1, 1), dtype=jnp.float32)

    # Kernel-side parameter packing:
    #   * Linear weights streamed/held as bf16 (halves the dominant HBM traffic).
    #   * gamma/beta packed lane-dense into (4, 1, 1024).
    #   * per-layer Linear biases dropped (cancelled exactly by training-mode BN).
    w_stack_bf16 = w_stack.astype(jnp.bfloat16)
    w5_bf16 = w5.reshape(1, HIDDEN).astype(jnp.bfloat16)
    gb_stack = jnp.concatenate([g_stack, beta_stack], axis=-1)[:, None, :]  # (4,1,1024)

    # Small-batch (fused, single-step) path — the one actually selected at B=8.
    out = domain_classifier(x, w_stack_bf16, gb_stack, w5_bf16, b5)
    out = jax.block_until_ready(out)

    # Also exercise the large-batch streamed path for correctness.
    out_stream = domain_classifier(x, w_stack_bf16, gb_stack, w5_bf16, b5,
                                   force_streamed=True)
    out_stream = jax.block_until_ready(out_stream)

    ref = reference_forward(x, w_stack_bf16, b_stack, g_stack, beta_stack,
                            w5_bf16, b5)

    assert out.shape == (B, 1), out.shape
    assert out_stream.shape == (B, 1), out_stream.shape
    # Tolerance reflects bf16 matmul operands + MXU-vs-XLA accumulation order
    # differences amplified through 4 BN layers.
    err_f = jnp.max(jnp.abs(out - ref))
    err_s = jnp.max(jnp.abs(out_stream - ref))
    assert jnp.allclose(out, ref, atol=5e-3, rtol=5e-3), f"fused max abs err = {err_f}"
    assert jnp.allclose(out_stream, ref, atol=5e-3, rtol=5e-3), f"streamed max abs err = {err_s}"

    print("KERNEL_OK")
</pallas_src>

<mosaic_0001>
module attributes {stable_mosaic.version = 11 : i64} {
  func.func @_fused_kernel(%arg0: memref<8x512xf32, #tpu.memory_space<vmem>>, %arg1: memref<4x512x512xbf16, #tpu.memory_space<vmem>>, %arg2: memref<4x1x1024xf32, #tpu.memory_space<vmem>>, %arg3: memref<1x512xbf16, #tpu.memory_space<vmem>>, %arg4: memref<1x1xf32, #tpu.memory_space<smem>>, %arg5: memref<8x1xf32, #tpu.memory_space<vmem>>) attributes {dimension_semantics = [], scalar_prefetch = 0 : i64, scratch_operands = 0 : i64, tpu.core_type = #tpu.core_type<tc>} {
    %c0 = arith.constant 0 : index
    %c0_0 = arith.constant 0 : index
    %0 = vector.load %arg0[%c0, %c0_0] : memref<8x512xf32, #tpu.memory_space<vmem>>, vector<8x512xf32>
    %1 = arith.truncf %0 : vector<8x512xf32> to vector<8x512xbf16>
    %c0_1 = arith.constant 0 : index
    %c0_2 = arith.constant 0 : index
    %c0_3 = arith.constant 0 : index
    %2 = vector.load %arg1[%c0_1, %c0_2, %c0_3] : memref<4x512x512xbf16, #tpu.memory_space<vmem>>, vector<1x512x512xbf16>
    %3 = vector.shape_cast %2 : vector<1x512x512xbf16> to vector<512x512xbf16>
    %cst = arith.constant dense<0.000000e+00> : vector<8x512xf32>
    %4 = tpu.matmul %1, %3, %cst {dimension_numbers = #tpu.dot_dimension_numbers<[1], [0], [0], [1], [0, 0, 1, 1], [], []>} : vector<8x512xbf16>, vector<512x512xbf16>, vector<8x512xf32> -> vector<8x512xf32>
    %c0_4 = arith.constant 0 : index
    %c0_5 = arith.constant 0 : index
    %c0_6 = arith.constant 0 : index
    %5 = vector.load %arg2[%c0_4, %c0_5, %c0_6] : memref<4x1x1024xf32, #tpu.memory_space<vmem>>, vector<1x1x1024xf32>
    %6 = vector.shape_cast %5 : vector<1x1x1024xf32> to vector<1x1024xf32>
    %cst_7 = arith.constant dense<0.000000e+00> : vector<512xf32>
    %7 = vector.multi_reduction <add>, %4, %cst_7 [0] : vector<8x512xf32> to vector<512xf32>
    %8 = vector.shape_cast %7 : vector<512xf32> to vector<1x512xf32>
    %9 = arith.mulf %4, %4 : vector<8x512xf32>
    %cst_8 = arith.constant dense<0.000000e+00> : vector<512xf32>
    %10 = vector.multi_reduction <add>, %9, %cst_8 [0] : vector<8x512xf32> to vector<512xf32>
    %11 = vector.shape_cast %10 : vector<512xf32> to vector<1x512xf32>
    %cst_9 = arith.constant 1.250000e-01 : f32
    %12 = vector.broadcast %cst_9 : f32 to vector<1x512xf32>
    %13 = arith.mulf %8, %12 : vector<1x512xf32>
    %cst_10 = arith.constant 1.250000e-01 : f32
    %14 = vector.broadcast %cst_10 : f32 to vector<1x512xf32>
    %15 = arith.mulf %11, %14 : vector<1x512xf32>
    %16 = arith.mulf %13, %13 : vector<1x512xf32>
    %17 = arith.subf %15, %16 : vector<1x512xf32>
    %cst_11 = arith.constant 0.000000e+00 : f32
    %18 = vector.broadcast %cst_11 : f32 to vector<1x512xf32>
    %19 = arith.maximumf %17, %18 : vector<1x512xf32>
    %20 = vector.extract_strided_slice %6 {offsets = [0, 0], sizes = [1, 512], strides = [1, 1]} : vector<1x1024xf32> to vector<1x512xf32>
    %21 = vector.extract_strided_slice %6 {offsets = [0, 512], sizes = [1, 512], strides = [1, 1]} : vector<1x1024xf32> to vector<1x512xf32>
    %cst_12 = arith.constant 9.99999974E-6 : f32
    %22 = vector.broadcast %cst_12 : f32 to vector<1x512xf32>
    %23 = arith.addf %19, %22 : vector<1x512xf32>
    %24 = math.rsqrt %23 : vector<1x512xf32>
    %25 = arith.mulf %20, %24 : vector<1x512xf32>
    %26 = arith.mulf %13, %25 : vector<1x512xf32>
    %27 = arith.subf %21, %26 : vector<1x512xf32>
    %28 = vector.broadcast %25 : vector<1x512xf32> to vector<8x512xf32>
    %29 = arith.mulf %4, %28 : vector<8x512xf32>
    %30 = vector.broadcast %27 : vector<1x512xf32> to vector<8x512xf32>
    %31 = arith.addf %29, %30 : vector<8x512xf32>
    %cst_13 = arith.constant 0.000000e+00 : f32
    %32 = vector.broadcast %cst_13 : f32 to vector<8x512xf32>
    %33 = arith.maximumf %31, %32 : vector<8x512xf32>
    %34 = arith.truncf %33 : vector<8x512xf32> to vector<8x512xbf16>
    %c1 = arith.constant 1 : index
    %c0_14 = arith.constant 0 : index
    %c0_15 = arith.constant 0 : index
    %35 = vector.load %arg1[%c1, %c0_14, %c0_15] : memref<4x512x512xbf16, #tpu.memory_space<vmem>>, vector<1x512x512xbf16>
    %36 = vector.shape_cast %35 : vector<1x512x512xbf16> to vector<512x512xbf16>
    %cst_16 = arith.constant dense<0.000000e+00> : vector<8x512xf32>
    %37 = tpu.matmul %34, %36, %cst_16 {dimension_numbers = #tpu.dot_dimension_numbers<[1], [0], [0], [1], [0, 0, 1, 1], [], []>} : vector<8x512xbf16>, vector<512x512xbf16>, vector<8x512xf32> -> vector<8x512xf32>
    %c1_17 = arith.constant 1 : index
    %c0_18 = arith.constant 0 : index
    %c0_19 = arith.constant 0 : index
    %38 = vector.load %arg2[%c1_17, %c0_18, %c0_19] : memref<4x1x1024xf32, #tpu.memory_space<vmem>>, vector<1x1x1024xf32>
    %39 = vector.shape_cast %38 : vector<1x1x1024xf32> to vector<1x1024xf32>
    %cst_20 = arith.constant dense<0.000000e+00> : vector<512xf32>
    %40 = vector.multi_reduction <add>, %37, %cst_20 [0] : vector<8x512xf32> to vector<512xf32>
    %41 = vector.shape_cast %40 : vector<512xf32> to vector<1x512xf32>
    %42 = arith.mulf %37, %37 : vector<8x512xf32>
    %cst_21 = arith.constant dense<0.000000e+00> : vector<512xf32>
    %43 = vector.multi_reduction <add>, %42, %cst_21 [0] : vector<8x512xf32> to vector<512xf32>
    %44 = vector.shape_cast %43 : vector<512xf32> to vector<1x512xf32>
    %cst_22 = arith.constant 1.250000e-01 : f32
    %45 = vector.broadcast %cst_22 : f32 to vector<1x512xf32>
    %46 = arith.mulf %41, %45 : vector<1x512xf32>
    %cst_23 = arith.constant 1.250000e-01 : f32
    %47 = vector.broadcast %cst_23 : f32 to vector<1x512xf32>
    %48 = arith.mulf %44, %47 : vector<1x512xf32>
    %49 = arith.mulf %46, %46 : vector<1x512xf32>
    %50 = arith.subf %48, %49 : vector<1x512xf32>
    %cst_24 = arith.constant 0.000000e+00 : f32
    %51 = vector.broadcast %cst_24 : f32 to vector<1x512xf32>
    %52 = arith.maximumf %50, %51 : vector<1x512xf32>
    %53 = vector.extract_strided_slice %39 {offsets = [0, 0], sizes = [1, 512], strides = [1, 1]} : vector<1x1024xf32> to vector<1x512xf32>
    %54 = vector.extract_strided_slice %39 {offsets = [0, 512], sizes = [1, 512], strides = [1, 1]} : vector<1x1024xf32> to vector<1x512xf32>
    %cst_25 = arith.constant 9.99999974E-6 : f32
    %55 = vector.broadcast %cst_25 : f32 to vector<1x512xf32>
    %56 = arith.addf %52, %55 : vector<1x512xf32>
    %57 = math.rsqrt %56 : vector<1x512xf32>
    %58 = arith.mulf %53, %57 : vector<1x512xf32>
    %59 = arith.mulf %46, %58 : vector<1x512xf32>
    %60 = arith.subf %54, %59 : vector<1x512xf32>
    %61 = vector.broadcast %58 : vector<1x512xf32> to vector<8x512xf32>
    %62 = arith.mulf %37, %61 : vector<8x512xf32>
    %63 = vector.broadcast %60 : vector<1x512xf32> to vector<8x512xf32>
    %64 = arith.addf %62, %63 : vector<8x512xf32>
    %cst_26 = arith.constant 0.000000e+00 : f32
    %65 = vector.broadcast %cst_26 : f32 to vector<8x512xf32>
    %66 = arith.maximumf %64, %65 : vector<8x512xf32>
    %67 = arith.truncf %66 : vector<8x512xf32> to vector<8x512xbf16>
    %c2 = arith.constant 2 : index
    %c0_27 = arith.constant 0 : index
    %c0_28 = arith.constant 0 : index
    %68 = vector.load %arg1[%c2, %c0_27, %c0_28] : memref<4x512x512xbf16, #tpu.memory_space<vmem>>, vector<1x512x512xbf16>
    %69 = vector.shape_cast %68 : vector<1x512x512xbf16> to vector<512x512xbf16>
    %cst_29 = arith.constant dense<0.000000e+00> : vector<8x512xf32>
    %70 = tpu.matmul %67, %69, %cst_29 {dimension_numbers = #tpu.dot_dimension_numbers<[1], [0], [0], [1], [0, 0, 1, 1], [], []>} : vector<8x512xbf16>, vector<512x512xbf16>, vector<8x512xf32> -> vector<8x512xf32>
    %c2_30 = arith.constant 2 : index
    %c0_31 = arith.constant 0 : index
    %c0_32 = arith.constant 0 : index
    %71 = vector.load %arg2[%c2_30, %c0_31, %c0_32] : memref<4x1x1024xf32, #tpu.memory_space<vmem>>, vector<1x1x1024xf32>
    %72 = vector.shape_cast %71 : vector<1x1x1024xf32> to vector<1x1024xf32>
    %cst_33 = arith.constant dense<0.000000e+00> : vector<512xf32>
    %73 = vector.multi_reduction <add>, %70, %cst_33 [0] : vector<8x512xf32> to vector<512xf32>
    %74 = vector.shape_cast %73 : vector<512xf32> to vector<1x512xf32>
    %75 = arith.mulf %70, %70 : vector<8x512xf32>
    %cst_34 = arith.constant dense<0.000000e+00> : vector<512xf32>
    %76 = vector.multi_reduction <add>, %75, %cst_34 [0] : vector<8x512xf32> to vector<512xf32>
    %77 = vector.shape_cast %76 : vector<512xf32> to vector<1x512xf32>
    %cst_35 = arith.constant 1.250000e-01 : f32
    %78 = vector.broadcast %cst_35 : f32 to vector<1x512xf32>
    %79 = arith.mulf %74, %78 : vector<1x512xf32>
    %cst_36 = arith.constant 1.250000e-01 : f32
    %80 = vector.broadcast %cst_36 : f32 to vector<1x512xf32>
    %81 = arith.mulf %77, %80 : vector<1x512xf32>
    %82 = arith.mulf %79, %79 : vector<1x512xf32>
    %83 = arith.subf %81, %82 : vector<1x512xf32>
    %cst_37 = arith.constant 0.000000e+00 : f32
    %84 = vector.broadcast %cst_37 : f32 to vector<1x512xf32>
    %85 = arith.maximumf %83, %84 : vector<1x512xf32>
    %86 = vector.extract_strided_slice %72 {offsets = [0, 0], sizes = [1, 512], strides = [1, 1]} : vector<1x1024xf32> to vector<1x512xf32>
    %87 = vector.extract_strided_slice %72 {offsets = [0, 512], sizes = [1, 512], strides = [1, 1]} : vector<1x1024xf32> to vector<1x512xf32>
    %cst_38 = arith.constant 9.99999974E-6 : f32
    %88 = vector.broadcast %cst_38 : f32 to vector<1x512xf32>
    %89 = arith.addf %85, %88 : vector<1x512xf32>
    %90 = math.rsqrt %89 : vector<1x512xf32>
    %91 = arith.mulf %86, %90 : vector<1x512xf32>
    %92 = arith.mulf %79, %91 : vector<1x512xf32>
    %93 = arith.subf %87, %92 : vector<1x512xf32>
    %94 = vector.broadcast %91 : vector<1x512xf32> to vector<8x512xf32>
    %95 = arith.mulf %70, %94 : vector<8x512xf32>
    %96 = vector.broadcast %93 : vector<1x512xf32> to vector<8x512xf32>
    %97 = arith.addf %95, %96 : vector<8x512xf32>
    %cst_39 = arith.constant 0.000000e+00 : f32
    %98 = vector.broadcast %cst_39 : f32 to vector<8x512xf32>
    %99 = arith.maximumf %97, %98 : vector<8x512xf32>
    %100 = arith.truncf %99 : vector<8x512xf32> to vector<8x512xbf16>
    %c3 = arith.constant 3 : index
    %c0_40 = arith.constant 0 : index
    %c0_41 = arith.constant 0 : index
    %101 = vector.load %arg1[%c3, %c0_40, %c0_41] : memref<4x512x512xbf16, #tpu.memory_space<vmem>>, vector<1x512x512xbf16>
    %102 = vector.shape_cast %101 : vector<1x512x512xbf16> to vector<512x512xbf16>
    %cst_42 = arith.constant dense<0.000000e+00> : vector<8x512xf32>
    %103 = tpu.matmul %100, %102, %cst_42 {dimension_numbers = #tpu.dot_dimension_numbers<[1], [0], [0], [1], [0, 0, 1, 1], [], []>} : vector<8x512xbf16>, vector<512x512xbf16>, vector<8x512xf32> -> vector<8x512xf32>
    %c3_43 = arith.constant 3 : index
    %c0_44 = arith.constant 0 : index
    %c0_45 = arith.constant 0 : index
    %104 = vector.load %arg2[%c3_43, %c0_44, %c0_45] : memref<4x1x1024xf32, #tpu.memory_space<vmem>>, vector<1x1x1024xf32>
    %105 = vector.shape_cast %104 : vector<1x1x1024xf32> to vector<1x1024xf32>
    %cst_46 = arith.constant dense<0.000000e+00> : vector<512xf32>
    %106 = vector.multi_reduction <add>, %103, %cst_46 [0] : vector<8x512xf32> to vector<512xf32>
    %107 = vector.shape_cast %106 : vector<512xf32> to vector<1x512xf32>
    %108 = arith.mulf %103, %103 : vector<8x512xf32>
    %cst_47 = arith.constant dense<0.000000e+00> : vector<512xf32>
    %109 = vector.multi_reduction <add>, %108, %cst_47 [0] : vector<8x512xf32> to vector<512xf32>
    %110 = vector.shape_cast %109 : vector<512xf32> to vector<1x512xf32>
    %cst_48 = arith.constant 1.250000e-01 : f32
    %111 = vector.broadcast %cst_48 : f32 to vector<1x512xf32>
    %112 = arith.mulf %107, %111 : vector<1x512xf32>
    %cst_49 = arith.constant 1.250000e-01 : f32
    %113 = vector.broadcast %cst_49 : f32 to vector<1x512xf32>
    %114 = arith.mulf %110, %113 : vector<1x512xf32>
    %115 = arith.mulf %112, %112 : vector<1x512xf32>
    %116 = arith.subf %114, %115 : vector<1x512xf32>
    %cst_50 = arith.constant 0.000000e+00 : f32
    %117 = vector.broadcast %cst_50 : f32 to vector<1x512xf32>
    %118 = arith.maximumf %116, %117 : vector<1x512xf32>
    %119 = vector.extract_strided_slice %105 {offsets = [0, 0], sizes = [1, 512], strides = [1, 1]} : vector<1x1024xf32> to vector<1x512xf32>
    %120 = vector.extract_strided_slice %105 {offsets = [0, 512], sizes = [1, 512], strides = [1, 1]} : vector<1x1024xf32> to vector<1x512xf32>
    %cst_51 = arith.constant 9.99999974E-6 : f32
    %121 = vector.broadcast %cst_51 : f32 to vector<1x512xf32>
    %122 = arith.addf %118, %121 : vector<1x512xf32>
    %123 = math.rsqrt %122 : vector<1x512xf32>
    %124 = arith.mulf %119, %123 : vector<1x512xf32>
    %125 = arith.mulf %112, %124 : vector<1x512xf32>
    %126 = arith.subf %120, %125 : vector<1x512xf32>
    %127 = vector.broadcast %124 : vector<1x512xf32> to vector<8x512xf32>
    %128 = arith.mulf %103, %127 : vector<8x512xf32>
    %129 = vector.broadcast %126 : vector<1x512xf32> to vector<8x512xf32>
    %130 = arith.addf %128, %129 : vector<8x512xf32>
    %cst_52 = arith.constant 0.000000e+00 : f32
    %131 = vector.broadcast %cst_52 : f32 to vector<8x512xf32>
    %132 = arith.maximumf %130, %131 : vector<8x512xf32>
    %c0_53 = arith.constant 0 : index
    %c0_54 = arith.constant 0 : index
    %133 = vector.load %arg3[%c0_53, %c0_54] : memref<1x512xbf16, #tpu.memory_space<vmem>>, vector<1x512xbf16>
    %134 = arith.extf %133 : vector<1x512xbf16> to vector<1x512xf32>
    %135 = vector.broadcast %134 : vector<1x512xf32> to vector<8x512xf32>
    %136 = arith.mulf %132, %135 : vector<8x512xf32>
    %cst_55 = arith.constant dense<0.000000e+00> : vector<8xf32>
    %137 = vector.multi_reduction <add>, %136, %cst_55 [1] : vector<8x512xf32> to vector<8xf32>
    %138 = vector.shape_cast %137 : vector<8xf32> to vector<8x1xf32>
    %c0_56 = arith.constant 0 : index
    %c0_57 = arith.constant 0 : index
    %139 = memref.load %arg4[%c0_56, %c0_57] : memref<1x1xf32, #tpu.memory_space<smem>>
    %140 = vector.broadcast %139 : f32 to vector<8x1xf32>
    %141 = arith.addf %138, %140 : vector<8x1xf32>
    %c0_58 = arith.constant 0 : index
    %c0_59 = arith.constant 0 : index
    %142 = vector.load %arg5[%c0_58, %c0_59] : memref<8x1xf32, #tpu.memory_space<vmem>>, vector<8x1xf32>
    tpu.vector_store %arg5[%c0_58, %c0_59], %141 {strides = array<i32>} : memref<8x1xf32, #tpu.memory_space<vmem>>, vector<8x1xf32>,
    return
  }
}

</mosaic_0001>

<llo_original>
// kernel: tpu_custom_call.1
$region0: #{tpu_custom_call.1}
  #allocation0 [shape = 'u32[]', space=smem, size = 0x4, offset = 0x4, fixed_abs, tag = 'smem constant byte address 0x4 - core index']
  #allocation1 [shape = 'u32[144,128]{1,0:T(1,128)}', space=vmem, size = 0x12000, scoped, tag = 'internal scratch']
  #allocation2 [shape = 'f32[1,1]{1,0:T(1,128)S(6)}', space=smem, size = 0x200, scoped, tag = 'scoped memory for tpu_custom_call.1']
  %s0 = inlined_call_operand.hbm [shape: f32[8,512], index: 0, kind: input, shape index: {}]
  %s1 = inlined_call_operand.hbm [shape: bf16[4,512,512], index: 1, kind: input, shape index: {}]
  %s2 = inlined_call_operand.hbm [shape: f32[4,1,1024], index: 2, kind: input, shape index: {}]
  %s3 = inlined_call_operand.hbm [shape: bf16[1,512], index: 3, kind: input, shape index: {}]
  %s4 = inlined_call_operand.<no memory space> [shape: f32[1,1], index: 4, kind: input, shape index: {}]
  %s5 = inlined_call_operand.vmem [shape: f32[8,1], index: 5, kind: output, shape index: {}]
  %s6 = sld [smem:[#allocation0]]
  $region46: #{tpu_custom_call.1} parent=0
    _
  %s8 = ssub.s32 1, %s6
  %s9 = scalar_select 0, %s8, %s6
  %10 = sst [smem:[#allocation2]] %s4
  $region1: #{tpu_custom_call.1} parent=0
    #allocation3 [shape = 'u8[16384]{0}', space=vmem, size = 0x4000, scoped, tag = 'input window, operand 0, single buffered']
    #allocation4 [shape = 's32[1]{0}', space=sflag, size = 0x4, scoped, tag = 'scoped memory for tpu_custom_call.1']
    #allocation5 [shape = 'u8[2097152]{0}', space=vmem, size = 0x200000, scoped, tag = 'input window, operand 1, single buffered']
    #allocation6 [shape = 's32[1]{0}', space=sflag, size = 0x4, scoped, tag = 'scoped memory for tpu_custom_call.1']
    #allocation7 [shape = 'u8[16384]{0}', space=vmem, size = 0x4000, scoped, tag = 'input window, operand 2, single buffered']
    #allocation8 [shape = 'u8[2048]{0}', space=vmem, size = 0x800, scoped, tag = 'input window, operand 3, single buffered']
    #allocation9 [shape = 's32[1]{0}', space=sflag, size = 0x4, scoped, tag = 'scoped memory for tpu_custom_call.1']
    %11 = vsyncpa [#allocation4], 0
    %12 = vsyncpa [#allocation6], 0
    %13 = vsyncpa [#allocation9], 0
    // Predicated region
    $region2: #{tpu_custom_call.1} parent=1 // pred_check
      _
    $region3: #{tpu_custom_call.1} parent=1 // pred_check_branch
      %15 = sbr.rel (0) target = $region5
    $region4: #{tpu_custom_call.1} parent=1 // pred_region
      %s17 = ssub.s32 512, 512
      %18 = vsyncadd [#allocation4], %s17
      %s20 = sshll.u32 [#allocation3], 4
      %s21 = int_to_ptr.vmem [resolvable:$true] %s20
      %23 = dma.hbm_to_vmem [thread:$0]  %s0, 512, %s21, [#allocation4]
    $region5: #{tpu_custom_call.1} parent=1 // pred_fallthru
      _
    // Predicated region
    $region6: #{tpu_custom_call.1} parent=1 // pred_check
      _
    $region7: #{tpu_custom_call.1} parent=1 // pred_check_branch
      %25 = sbr.rel (0) target = $region9
    $region8: #{tpu_custom_call.1} parent=1 // pred_region
      %s27 = ssub.s32 65536, 65536
      %28 = vsyncadd [#allocation6], %s27
      %s29 = sshll.u32 [#allocation5], 4
      %s30 = int_to_ptr.vmem [resolvable:$true] %s29
      %35 = dma.hbm_to_vmem [thread:$0]  %s1, 65536, %s30, [#allocation6], 256, 256, 16
    $region9: #{tpu_custom_call.1} parent=1 // pred_fallthru
      _
    // Predicated region
    $region10: #{tpu_custom_call.1} parent=1 // pred_check
      _
    $region11: #{tpu_custom_call.1} parent=1 // pred_check_branch
      %37 = sbr.rel (0) target = $region13
    $region12: #{tpu_custom_call.1} parent=1 // pred_region
      %s39 = ssub.s32 512, 512
      %40 = vsyncadd [#allocation6], %s39
      %s41 = sshll.u32 [#allocation7], 4
      %s42 = int_to_ptr.vmem [resolvable:$true] %s41
      %47 = dma.hbm_to_vmem [thread:$0]  %s2, 512, %s42, [#allocation6], 128, 128, 8
    $region13: #{tpu_custom_call.1} parent=1 // pred_fallthru
      _
    // Predicated region
    $region14: #{tpu_custom_call.1} parent=1 // pred_check
      _
    $region15: #{tpu_custom_call.1} parent=1 // pred_check_branch
      %49 = sbr.rel (0) target = $region17
    $region16: #{tpu_custom_call.1} parent=1 // pred_region
      %s51 = ssub.s32 64, 64
      %52 = vsyncadd [#allocation9], %s51
      %s54 = sshll.u32 [#allocation8], 4
      %s55 = int_to_ptr.vmem [resolvable:$true] %s54
      %57 = dma.hbm_to_vmem [thread:$0]  %s3, 64, %s55, [#allocation9]
    $region17: #{tpu_custom_call.1} parent=1 // pred_fallthru
      _
    // Predicated region
    $region18: #{tpu_custom_call.1} parent=1 // pred_check
      _
    $region19: #{tpu_custom_call.1} parent=1 // pred_check_branch
      %59 = sbr.rel (0) target = $region21
    $region20: #{tpu_custom_call.1} parent=1 // pred_region
      _
    $region21: #{tpu_custom_call.1} parent=1 // pred_fallthru
      _
    // Predicated region
    $region22: #{tpu_custom_call.1} parent=1 // pred_check
      _
    $region23: #{tpu_custom_call.1} parent=1 // pred_check_branch
      %61 = sbr.rel (0) target = $region25
    $region24: #{tpu_custom_call.1} parent=1 // pred_region
      %62 = dma.done [#allocation4], 512
    $region25: #{tpu_custom_call.1} parent=1 // pred_fallthru
      _
    // Predicated region
    $region26: #{tpu_custom_call.1} parent=1 // pred_check
      _
    $region27: #{tpu_custom_call.1} parent=1 // pred_check_branch
      %64 = sbr.rel (0) target = $region29
    $region28: #{tpu_custom_call.1} parent=1 // pred_region
      %65 = dma.done [#allocation6], 65536
    $region29: #{tpu_custom_call.1} parent=1 // pred_fallthru
      _
    // Predicated region
    $region30: #{tpu_custom_call.1} parent=1 // pred_check
      _
    $region31: #{tpu_custom_call.1} parent=1 // pred_check_branch
      %67 = sbr.rel (0) target = $region33
    $region32: #{tpu_custom_call.1} parent=1 // pred_region
      %68 = dma.done [#allocation6], 512
    $region33: #{tpu_custom_call.1} parent=1 // pred_fallthru
      _
    // Predicated region
    $region34: #{tpu_custom_call.1} parent=1 // pred_check
      _
    $region35: #{tpu_custom_call.1} parent=1 // pred_check_branch
      %70 = sbr.rel (0) target = $region37
    $region36: #{tpu_custom_call.1} parent=1 // pred_region
      %71 = dma.done [#allocation9], 64
    $region37: #{tpu_custom_call.1} parent=1 // pred_fallthru
      _
    %v72 = vld [vmem:[#allocation3] sm:$0xff]
    %v73 = vld [vmem:[#allocation3 + $0x8] sm:$0xff]
    %v74 = vld [vmem:[#allocation3 + $0x10] sm:$0xff]
    %v75 = vld [vmem:[#allocation3 + $0x18] sm:$0xff]
    %v76 = vpack.c.bf16 %v72, %v72
    %v77 = vpack.c.bf16 %v73, %v73
    %v78 = vpack.c.bf16 %v74, %v74
    %v79 = vpack.c.bf16 %v75, %v75
    %v80 = vld [vmem:[#allocation5] sm:$0xff]
    %v81 = vld [vmem:[#allocation5 + $0x8] sm:$0xff]
    %v82 = vld [vmem:[#allocation5 + $0x10] sm:$0xff]
    %v83 = vld [vmem:[#allocation5 + $0x18] sm:$0xff]
    %v84 = vld [vmem:[#allocation5 + $0x20] sm:$0xff]
    %v85 = vld [vmem:[#allocation5 + $0x28] sm:$0xff]
    %v86 = vld [vmem:[#allocation5 + $0x30] sm:$0xff]
    %v87 = vld [vmem:[#allocation5 + $0x38] sm:$0xff]
    %v88 = vld [vmem:[#allocation5 + $0x40] sm:$0xff]
    %v89 = vld [vmem:[#allocation5 + $0x48] sm:$0xff]
    %v90 = vld [vmem:[#allocation5 + $0x50] sm:$0xff]
    %v91 = vld [vmem:[#allocation5 + $0x58] sm:$0xff]
    %v92 = vld [vmem:[#allocation5 + $0x60] sm:$0xff]
    %v93 = vld [vmem:[#allocation5 + $0x68] sm:$0xff]
    %v94 = vld [vmem:[#allocation5 + $0x70] sm:$0xff]
    %v95 = vld [vmem:[#allocation5 + $0x78] sm:$0xff]
    %v96 = vld [vmem:[#allocation5 + $0x80] sm:$0xff]
    %v97 = vld [vmem:[#allocation5 + $0x88] sm:$0xff]
    %v98 = vld [vmem:[#allocation5 + $0x90] sm:$0xff]
    %v99 = vld [vmem:[#allocation5 + $0x98] sm:$0xff]
    %v100 = vld [vmem:[#allocation5 + $0xa0] sm:$0xff]
    %v101 = vld [vmem:[#allocation5 + $0xa8] sm:$0xff]
    %v102 = vld [vmem:[#allocation5 + $0xb0] sm:$0xff]
    %v103 = vld [vmem:[#allocation5 + $0xb8] sm:$0xff]
    %v104 = vld [vmem:[#allocation5 + $0xc0] sm:$0xff]
    %v105 = vld [vmem:[#allocation5 + $0xc8] sm:$0xff]
    %v106 = vld [vmem:[#allocation5 + $0xd0] sm:$0xff]
    %v107 = vld [vmem:[#allocation5 + $0xd8] sm:$0xff]
    %v108 = vld [vmem:[#allocation5 + $0xe0] sm:$0xff]
    %v109 = vld [vmem:[#allocation5 + $0xe8] sm:$0xff]
    %v110 = vld [vmem:[#allocation5 + $0xf0] sm:$0xff]
    %v111 = vld [vmem:[#allocation5 + $0xf8] sm:$0xff]
    %v112 = vld [vmem:[#allocation5 + $0x100] sm:$0xff]
    %v113 = vld [vmem:[#allocation5 + $0x108] sm:$0xff]
    %v114 = vld [vmem:[#allocation5 + $0x110] sm:$0xff]
    %v115 = vld [vmem:[#allocation5 + $0x118] sm:$0xff]
    %v116 = vld [vmem:[#allocation5 + $0x120] sm:$0xff]
    %v117 = vld [vmem:[#allocation5 + $0x128] sm:$0xff]
    %v118 = vld [vmem:[#allocation5 + $0x130] sm:$0xff]
    %v119 = vld [vmem:[#allocation5 + $0x138] sm:$0xff]
    %v120 = vld [vmem:[#allocation5 + $0x140] sm:$0xff]
    %v121 = vld [vmem:[#allocation5 + $0x148] sm:$0xff]
    %v122 = vld [vmem:[#allocation5 + $0x150] sm:$0xff]
    %v123 = vld [vmem:[#allocation5 + $0x158] sm:$0xff]
    %v124 = vld [vmem:[#allocation5 + $0x160] sm:$0xff]
    %v125 = vld [vmem:[#allocation5 + $0x168] sm:$0xff]
    %v126 = vld [vmem:[#allocation5 + $0x170] sm:$0xff]
    %v127 = vld [vmem:[#allocation5 + $0x178] sm:$0xff]
    %v128 = vld [vmem:[#allocation5 + $0x180] sm:$0xff]
    %v129 = vld [vmem:[#allocation5 + $0x188] sm:$0xff]
    %v130 = vld [vmem:[#allocation5 + $0x190] sm:$0xff]
    %v131 = vld [vmem:[#allocation5 + $0x198] sm:$0xff]
    %v132 = vld [vmem:[#allocation5 + $0x1a0] sm:$0xff]
    %v133 = vld [vmem:[#allocation5 + $0x1a8] sm:$0xff]
    %v134 = vld [vmem:[#allocation5 + $0x1b0] sm:$0xff]
    %v135 = vld [vmem:[#allocation5 + $0x1b8] sm:$0xff]
    %v136 = vld [vmem:[#allocation5 + $0x1c0] sm:$0xff]
    %v137 = vld [vmem:[#allocation5 + $0x1c8] sm:$0xff]
    %v138 = vld [vmem:[#allocation5 + $0x1d0] sm:$0xff]
    %v139 = vld [vmem:[#allocation5 + $0x1d8] sm:$0xff]
    %v140 = vld [vmem:[#allocation5 + $0x1e0] sm:$0xff]
    %v141 = vld [vmem:[#allocation5 + $0x1e8] sm:$0xff]
    %v142 = vld [vmem:[#allocation5 + $0x1f0] sm:$0xff]
    %v143 = vld [vmem:[#allocation5 + $0x1f8] sm:$0xff]
    %v144 = vld [vmem:[#allocation5 + $0x200] sm:$0xff]
    %v145 = vld [vmem:[#allocation5 + $0x208] sm:$0xff]
    %v146 = vld [vmem:[#allocation5 + $0x210] sm:$0xff]
    %v147 = vld [vmem:[#allocation5 + $0x218] sm:$0xff]
    %v148 = vld [vmem:[#allocation5 + $0x220] sm:$0xff]
    %v149 = vld [vmem:[#allocation5 + $0x228] sm:$0xff]
    %v150 = vld [vmem:[#allocation5 + $0x230] sm:$0xff]
    %v151 = vld [vmem:[#allocation5 + $0x238] sm:$0xff]
    %v152 = vld [vmem:[#allocation5 + $0x240] sm:$0xff]
    %v153 = vld [vmem:[#allocation5 + $0x248] sm:$0xff]
    %v154 = vld [vmem:[#allocation5 + $0x250] sm:$0xff]
    %v155 = vld [vmem:[#allocation5 + $0x258] sm:$0xff]
    %v156 = vld [vmem:[#allocation5 + $0x260] sm:$0xff]
    %v157 = vld [vmem:[#allocation5 + $0x268] sm:$0xff]
    %v158 = vld [vmem:[#allocation5 + $0x270] sm:$0xff]
    %v159 = vld [vmem:[#allocation5 + $0x278] sm:$0xff]
    %v160 = vld [vmem:[#allocation5 + $0x280] sm:$0xff]
    %v161 = vld [vmem:[#allocation5 + $0x288] sm:$0xff]
    %v162 = vld [vmem:[#allocation5 + $0x290] sm:$0xff]
    %v163 = vld [vmem:[#allocation5 + $0x298] sm:$0xff]
    %v164 = vld [vmem:[#allocation5 + $0x2a0] sm:$0xff]
    %v165 = vld [vmem:[#allocation5 + $0x2a8] sm:$0xff]
    %v166 = vld [vmem:[#allocation5 + $0x2b0] sm:$0xff]
    %v167 = vld [vmem:[#allocation5 + $0x2b8] sm:$0xff]
    %v168 = vld [vmem:[#allocation5 + $0x2c0] sm:$0xff]
    %v169 = vld [vmem:[#allocation5 + $0x2c8] sm:$0xff]
    %v170 = vld [vmem:[#allocation5 + $0x2d0] sm:$0xff]
    %v171 = vld [vmem:[#allocation5 + $0x2d8] sm:$0xff]
    %v172 = vld [vmem:[#allocation5 + $0x2e0] sm:$0xff]
    %v173 = vld [vmem:[#allocation5 + $0x2e8] sm:$0xff]
    %v174 = vld [vmem:[#allocation5 + $0x2f0] sm:$0xff]
    %v175 = vld [vmem:[#allocation5 + $0x2f8] sm:$0xff]
    %v176 = vld [vmem:[#allocation5 + $0x300] sm:$0xff]
    %v177 = vld [vmem:[#allocation5 + $0x308] sm:$0xff]
    %v178 = vld [vmem:[#allocation5 + $0x310] sm:$0xff]
    %v179 = vld [vmem:[#allocation5 + $0x318] sm:$0xff]
    %v180 = vld [vmem:[#allocation5 + $0x320] sm:$0xff]
    %v181 = vld [vmem:[#allocation5 + $0x328] sm:$0xff]
    %v182 = vld [vmem:[#allocation5 + $0x330] sm:$0xff]
    %v183 = vld [vmem:[#allocation5 + $0x338] sm:$0xff]
    %v184 = vld [vmem:[#allocation5 + $0x340] sm:$0xff]
    %v185 = vld [vmem:[#allocation5 + $0x348] sm:$0xff]
    %v186 = vld [vmem:[#allocation5 + $0x350] sm:$0xff]
    %v187 = vld [vmem:[#allocation5 + $0x358] sm:$0xff]
    %v188 = vld [vmem:[#allocation5 + $0x360] sm:$0xff]
    %v189 = vld [vmem:[#allocation5 + $0x368] sm:$0xff]
    %v190 = vld [vmem:[#allocation5 + $0x370] sm:$0xff]
    %v191 = vld [vmem:[#allocation5 + $0x378] sm:$0xff]
    %v192 = vld [vmem:[#allocation5 + $0x380] sm:$0xff]
    %v193 = vld [vmem:[#allocation5 + $0x388] sm:$0xff]
    %v194 = vld [vmem:[#allocation5 + $0x390] sm:$0xff]
    %v195 = vld [vmem:[#allocation5 + $0x398] sm:$0xff]
    %v196 = vld [vmem:[#allocation5 + $0x3a0] sm:$0xff]
    %v197 = vld [vmem:[#allocation5 + $0x3a8] sm:$0xff]
    %v198 = vld [vmem:[#allocation5 + $0x3b0] sm:$0xff]
    %v199 = vld [vmem:[#allocation5 + $0x3b8] sm:$0xff]
    %v200 = vld [vmem:[#allocation5 + $0x3c0] sm:$0xff]
    %v201 = vld [vmem:[#allocation5 + $0x3c8] sm:$0xff]
    %v202 = vld [vmem:[#allocation5 + $0x3d0] sm:$0xff]
    %v203 = vld [vmem:[#allocation5 + $0x3d8] sm:$0xff]
    %v204 = vld [vmem:[#allocation5 + $0x3e0] sm:$0xff]
    %v205 = vld [vmem:[#allocation5 + $0x3e8] sm:$0xff]
    %v206 = vld [vmem:[#allocation5 + $0x3f0] sm:$0xff]
    %v207 = vld [vmem:[#allocation5 + $0x3f8] sm:$0xff]
    %v336 = vunpack.c.l.b16 %v80
    %v337 = vunpack.c.h.b16 %v80
    %v338 = vunpack.c.l.b16 %v81
    %v339 = vunpack.c.h.b16 %v81
    %v340 = vunpack.c.l.b16 %v82
    %v341 = vunpack.c.h.b16 %v82
    %v342 = vunpack.c.l.b16 %v83
    %v343 = vunpack.c.h.b16 %v83
    %v344 = vunpack.c.l.b16 %v84
    %v345 = vunpack.c.h.b16 %v84
    %v346 = vunpack.c.l.b16 %v85
    %v347 = vunpack.c.h.b16 %v85
    %v348 = vunpack.c.l.b16 %v86
    %v349 = vunpack.c.h.b16 %v86
    %v350 = vunpack.c.l.b16 %v87
    %v351 = vunpack.c.h.b16 %v87
    %v352 = vunpack.c.l.b16 %v88
    %v353 = vunpack.c.h.b16 %v88
    %v354 = vunpack.c.l.b16 %v89
    %v355 = vunpack.c.h.b16 %v89
    %v356 = vunpack.c.l.b16 %v90
    %v357 = vunpack.c.h.b16 %v90
    %v358 = vunpack.c.l.b16 %v91
    %v359 = vunpack.c.h.b16 %v91
    %v360 = vunpack.c.l.b16 %v92
    %v361 = vunpack.c.h.b16 %v92
    %v362 = vunpack.c.l.b16 %v93
    %v363 = vunpack.c.h.b16 %v93
    %v364 = vunpack.c.l.b16 %v94
    %v365 = vunpack.c.h.b16 %v94
    %v366 = vunpack.c.l.b16 %v95
    %v367 = vunpack.c.h.b16 %v95
    %v368 = vunpack.c.l.b16 %v96
    %v369 = vunpack.c.h.b16 %v96
    %v370 = vunpack.c.l.b16 %v97
    %v371 = vunpack.c.h.b16 %v97
    %v372 = vunpack.c.l.b16 %v98
    %v373 = vunpack.c.h.b16 %v98
    %v374 = vunpack.c.l.b16 %v99
    %v375 = vunpack.c.h.b16 %v99
    %v376 = vunpack.c.l.b16 %v100
    %v377 = vunpack.c.h.b16 %v100
    %v378 = vunpack.c.l.b16 %v101
    %v379 = vunpack.c.h.b16 %v101
    %v380 = vunpack.c.l.b16 %v102
    %v381 = vunpack.c.h.b16 %v102
    %v382 = vunpack.c.l.b16 %v103
    %v383 = vunpack.c.h.b16 %v103
    %v384 = vunpack.c.l.b16 %v104
    %v385 = vunpack.c.h.b16 %v104
    %v386 = vunpack.c.l.b16 %v105
    %v387 = vunpack.c.h.b16 %v105
    %v388 = vunpack.c.l.b16 %v106
    %v389 = vunpack.c.h.b16 %v106
    %v390 = vunpack.c.l.b16 %v107
    %v391 = vunpack.c.h.b16 %v107
    %v392 = vunpack.c.l.b16 %v108
    %v393 = vunpack.c.h.b16 %v108
    %v394 = vunpack.c.l.b16 %v109
    %v395 = vunpack.c.h.b16 %v109
    %v396 = vunpack.c.l.b16 %v110
    %v397 = vunpack.c.h.b16 %v110
    %v398 = vunpack.c.l.b16 %v111
    %v399 = vunpack.c.h.b16 %v111
    %v400 = vunpack.c.l.b16 %v112
    %v401 = vunpack.c.h.b16 %v112
    %v402 = vunpack.c.l.b16 %v113
    %v403 = vunpack.c.h.b16 %v113
    %v404 = vunpack.c.l.b16 %v114
    %v405 = vunpack.c.h.b16 %v114
    %v406 = vunpack.c.l.b16 %v115
    %v407 = vunpack.c.h.b16 %v115
    %v408 = vunpack.c.l.b16 %v116
    %v409 = vunpack.c.h.b16 %v116
    %v410 = vunpack.c.l.b16 %v117
    %v411 = vunpack.c.h.b16 %v117
    %v412 = vunpack.c.l.b16 %v118
    %v413 = vunpack.c.h.b16 %v118
    %v414 = vunpack.c.l.b16 %v119
    %v415 = vunpack.c.h.b16 %v119
    %v416 = vunpack.c.l.b16 %v120
    %v417 = vunpack.c.h.b16 %v120
    %v418 = vunpack.c.l.b16 %v121
    %v419 = vunpack.c.h.b16 %v121
    %v420 = vunpack.c.l.b16 %v122
    %v421 = vunpack.c.h.b16 %v122
    %v422 = vunpack.c.l.b16 %v123
    %v423 = vunpack.c.h.b16 %v123
    %v424 = vunpack.c.l.b16 %v124
    %v425 = vunpack.c.h.b16 %v124
    %v426 = vunpack.c.l.b16 %v125
    %v427 = vunpack.c.h.b16 %v125
    %v428 = vunpack.c.l.b16 %v126
    %v429 = vunpack.c.h.b16 %v126
    %v430 = vunpack.c.l.b16 %v127
    %v431 = vunpack.c.h.b16 %v127
    %v432 = vunpack.c.l.b16 %v128
    %v433 = vunpack.c.h.b16 %v128
    %v434 = vunpack.c.l.b16 %v129
    %v435 = vunpack.c.h.b16 %v129
    %v436 = vunpack.c.l.b16 %v130
    %v437 = vunpack.c.h.b16 %v130
    %v438 = vunpack.c.l.b16 %v131
    %v439 = vunpack.c.h.b16 %v131
    %v440 = vunpack.c.l.b16 %v132
    %v441 = vunpack.c.h.b16 %v132
    %v442 = vunpack.c.l.b16 %v133
    %v443 = vunpack.c.h.b16 %v133
    %v444 = vunpack.c.l.b16 %v134
    %v445 = vunpack.c.h.b16 %v134
    %v446 = vunpack.c.l.b16 %v135
    %v447 = vunpack.c.h.b16 %v135
    %v448 = vunpack.c.l.b16 %v136
    %v449 = vunpack.c.h.b16 %v136
    %v450 = vunpack.c.l.b16 %v137
    %v451 = vunpack.c.h.b16 %v137
    %v452 = vunpack.c.l.b16 %v138
    %v453 = vunpack.c.h.b16 %v138
    %v454 = vunpack.c.l.b16 %v139
    %v455 = vunpack.c.h.b16 %v139
    %v456 = vunpack.c.l.b16 %v140
    %v457 = vunpack.c.h.b16 %v140
    %v458 = vunpack.c.l.b16 %v141
    %v459 = vunpack.c.h.b16 %v141
    %v460 = vunpack.c.l.b16 %v142
    %v461 = vunpack.c.h.b16 %v142
    %v462 = vunpack.c.l.b16 %v143
    %v463 = vunpack.c.h.b16 %v143
    %v464 = vunpack.c.l.b16 %v144
    %v465 = vunpack.c.h.b16 %v144
    %v466 = vunpack.c.l.b16 %v145
    %v467 = vunpack.c.h.b16 %v145
    %v468 = vunpack.c.l.b16 %v146
    %v469 = vunpack.c.h.b16 %v146
    %v470 = vunpack.c.l.b16 %v147
    %v471 = vunpack.c.h.b16 %v147
    %v472 = vunpack.c.l.b16 %v148
    %v473 = vunpack.c.h.b16 %v148
    %v474 = vunpack.c.l.b16 %v149
    %v475 = vunpack.c.h.b16 %v149
    %v476 = vunpack.c.l.b16 %v150
    %v477 = vunpack.c.h.b16 %v150
    %v478 = vunpack.c.l.b16 %v151
    %v479 = vunpack.c.h.b16 %v151
    %v480 = vunpack.c.l.b16 %v152
    %v481 = vunpack.c.h.b16 %v152
    %v482 = vunpack.c.l.b16 %v153
    %v483 = vunpack.c.h.b16 %v153
    %v484 = vunpack.c.l.b16 %v154
    %v485 = vunpack.c.h.b16 %v154
    %v486 = vunpack.c.l.b16 %v155
    %v487 = vunpack.c.h.b16 %v155
    %v488 = vunpack.c.l.b16 %v156
    %v489 = vunpack.c.h.b16 %v156
    %v490 = vunpack.c.l.b16 %v157
    %v491 = vunpack.c.h.b16 %v157
    %v492 = vunpack.c.l.b16 %v158
    %v493 = vunpack.c.h.b16 %v158
    %v494 = vunpack.c.l.b16 %v159
    %v495 = vunpack.c.h.b16 %v159
    %v496 = vunpack.c.l.b16 %v160
    %v497 = vunpack.c.h.b16 %v160
    %v498 = vunpack.c.l.b16 %v161
    %v499 = vunpack.c.h.b16 %v161
    %v500 = vunpack.c.l.b16 %v162
    %v501 = vunpack.c.h.b16 %v162
    %v502 = vunpack.c.l.b16 %v163
    %v503 = vunpack.c.h.b16 %v163
    %v504 = vunpack.c.l.b16 %v164
    %v505 = vunpack.c.h.b16 %v164
    %v506 = vunpack.c.l.b16 %v165
    %v507 = vunpack.c.h.b16 %v165
    %v508 = vunpack.c.l.b16 %v166
    %v509 = vunpack.c.h.b16 %v166
    %v510 = vunpack.c.l.b16 %v167
    %v511 = vunpack.c.h.b16 %v167
    %v512 = vunpack.c.l.b16 %v168
    %v513 = vunpack.c.h.b16 %v168
    %v514 = vunpack.c.l.b16 %v169
    %v515 = vunpack.c.h.b16 %v169
    %v516 = vunpack.c.l.b16 %v170
    %v517 = vunpack.c.h.b16 %v170
    %v518 = vunpack.c.l.b16 %v171
    %v519 = vunpack.c.h.b16 %v171
    %v520 = vunpack.c.l.b16 %v172
    %v521 = vunpack.c.h.b16 %v172
    %v522 = vunpack.c.l.b16 %v173
    %v523 = vunpack.c.h.b16 %v173
    %v524 = vunpack.c.l.b16 %v174
    %v525 = vunpack.c.h.b16 %v174
    %v526 = vunpack.c.l.b16 %v175
    %v527 = vunpack.c.h.b16 %v175
    %v528 = vunpack.c.l.b16 %v176
    %v529 = vunpack.c.h.b16 %v176
    %v530 = vunpack.c.l.b16 %v177
    %v531 = vunpack.c.h.b16 %v177
    %v532 = vunpack.c.l.b16 %v178
    %v533 = vunpack.c.h.b16 %v178
    %v534 = vunpack.c.l.b16 %v179
    %v535 = vunpack.c.h.b16 %v179
    %v536 = vunpack.c.l.b16 %v180
    %v537 = vunpack.c.h.b16 %v180
    %v538 = vunpack.c.l.b16 %v181
    %v539 = vunpack.c.h.b16 %v181
    %v540 = vunpack.c.l.b16 %v182
    %v541 = vunpack.c.h.b16 %v182
    %v542 = vunpack.c.l.b16 %v183
    %v543 = vunpack.c.h.b16 %v183
    %v544 = vunpack.c.l.b16 %v184
    %v545 = vunpack.c.h.b16 %v184
    %v546 = vunpack.c.l.b16 %v185
    %v547 = vunpack.c.h.b16 %v185
    %v548 = vunpack.c.l.b16 %v186
    %v549 = vunpack.c.h.b16 %v186
    %v550 = vunpack.c.l.b16 %v187
    %v551 = vunpack.c.h.b16 %v187
    %v552 = vunpack.c.l.b16 %v188
    %v553 = vunpack.c.h.b16 %v188
    %v554 = vunpack.c.l.b16 %v189
    %v555 = vunpack.c.h.b16 %v189
    %v556 = vunpack.c.l.b16 %v190
    %v557 = vunpack.c.h.b16 %v190
    %v558 = vunpack.c.l.b16 %v191
    %v559 = vunpack.c.h.b16 %v191
    %v560 = vunpack.c.l.b16 %v192
    %v561 = vunpack.c.h.b16 %v192
    %v562 = vunpack.c.l.b16 %v193
    %v563 = vunpack.c.h.b16 %v193
    %v564 = vunpack.c.l.b16 %v194
    %v565 = vunpack.c.h.b16 %v194
    %v566 = vunpack.c.l.b16 %v195
    %v567 = vunpack.c.h.b16 %v195
    %v568 = vunpack.c.l.b16 %v196
    %v569 = vunpack.c.h.b16 %v196
    %v570 = vunpack.c.l.b16 %v197
    %v571 = vunpack.c.h.b16 %v197
    %v572 = vunpack.c.l.b16 %v198
    %v573 = vunpack.c.h.b16 %v198
    %v574 = vunpack.c.l.b16 %v199
    %v575 = vunpack.c.h.b16 %v199
    %v576 = vunpack.c.l.b16 %v200
    %v577 = vunpack.c.h.b16 %v200
    %v578 = vunpack.c.l.b16 %v201
    %v579 = vunpack.c.h.b16 %v201
    %v580 = vunpack.c.l.b16 %v202
    %v581 = vunpack.c.h.b16 %v202
    %v582 = vunpack.c.l.b16 %v203
    %v583 = vunpack.c.h.b16 %v203
    %v584 = vunpack.c.l.b16 %v204
    %v585 = vunpack.c.h.b16 %v204
    %v586 = vunpack.c.l.b16 %v205
    %v587 = vunpack.c.h.b16 %v205
    %v588 = vunpack.c.l.b16 %v206
    %v589 = vunpack.c.h.b16 %v206
    %v590 = vunpack.c.l.b16 %v207
    %v591 = vunpack.c.h.b16 %v207
    %v592 = vpack.c.b16 %v340, %v336
    %v593 = vpack.c.b16 %v341, %v337
    %v594 = vpack.c.b16 %v342, %v338
    %v595 = vpack.c.b16 %v343, %v339
    %v596 = vpack.c.b16 %v348, %v344
    %v597 = vpack.c.b16 %v349, %v345
    %v598 = vpack.c.b16 %v350, %v346
    %v599 = vpack.c.b16 %v351, %v347
    %v600 = vpack.c.b16 %v356, %v352
    %v601 = vpack.c.b16 %v357, %v353
    %v602 = vpack.c.b16 %v358, %v354
    %v603 = vpack.c.b16 %v359, %v355
    %v604 = vpack.c.b16 %v364, %v360
    %v605 = vpack.c.b16 %v365, %v361
    %v606 = vpack.c.b16 %v366, %v362
    %v607 = vpack.c.b16 %v367, %v363
    %v608 = vpack.c.b16 %v372, %v368
    %v609 = vpack.c.b16 %v373, %v369
    %v610 = vpack.c.b16 %v374, %v370
    %v611 = vpack.c.b16 %v375, %v371
    %v612 = vpack.c.b16 %v380, %v376
    %v613 = vpack.c.b16 %v381, %v377
    %v614 = vpack.c.b16 %v382, %v378
    %v615 = vpack.c.b16 %v383, %v379
    %v616 = vpack.c.b16 %v388, %v384
    %v617 = vpack.c.b16 %v389, %v385
    %v618 = vpack.c.b16 %v390, %v386
    %v619 = vpack.c.b16 %v391, %v387
    %v620 = vpack.c.b16 %v396, %v392
    %v621 = vpack.c.b16 %v397, %v393
    %v622 = vpack.c.b16 %v398, %v394
    %v623 = vpack.c.b16 %v399, %v395
    %v624 = vpack.c.b16 %v404, %v400
    %v625 = vpack.c.b16 %v405, %v401
    %v626 = vpack.c.b16 %v406, %v402
    %v627 = vpack.c.b16 %v407, %v403
    %v628 = vpack.c.b16 %v412, %v408
    %v629 = vpack.c.b16 %v413, %v409
    %v630 = vpack.c.b16 %v414, %v410
    %v631 = vpack.c.b16 %v415, %v411
    %v632 = vpack.c.b16 %v420, %v416
    %v633 = vpack.c.b16 %v421, %v417
    %v634 = vpack.c.b16 %v422, %v418
    %v635 = vpack.c.b16 %v423, %v419
    %v636 = vpack.c.b16 %v428, %v424
    %v637 = vpack.c.b16 %v429, %v425
    %v638 = vpack.c.b16 %v430, %v426
    %v639 = vpack.c.b16 %v431, %v427
    %v640 = vpack.c.b16 %v436, %v432
    %v641 = vpack.c.b16 %v437, %v433
    %v642 = vpack.c.b16 %v438, %v434
    %v643 = vpack.c.b16 %v439, %v435
    %v644 = vpack.c.b16 %v444, %v440
    %v645 = vpack.c.b16 %v445, %v441
    %v646 = vpack.c.b16 %v446, %v442
    %v647 = vpack.c.b16 %v447, %v443
    %v648 = vpack.c.b16 %v452, %v448
    %v649 = vpack.c.b16 %v453, %v449
    %v650 = vpack.c.b16 %v454, %v450
    %v651 = vpack.c.b16 %v455, %v451
    %v652 = vpack.c.b16 %v460, %v456
    %v653 = vpack.c.b16 %v461, %v457
    %v654 = vpack.c.b16 %v462, %v458
    %v655 = vpack.c.b16 %v463, %v459
    %v656 = vpack.c.b16 %v468, %v464
    %v657 = vpack.c.b16 %v469, %v465
    %v658 = vpack.c.b16 %v470, %v466
    %v659 = vpack.c.b16 %v471, %v467
    %v660 = vpack.c.b16 %v476, %v472
    %v661 = vpack.c.b16 %v477, %v473
    %v662 = vpack.c.b16 %v478, %v474
    %v663 = vpack.c.b16 %v479, %v475
    %v664 = vpack.c.b16 %v484, %v480
    %v665 = vpack.c.b16 %v485, %v481
    %v666 = vpack.c.b16 %v486, %v482
    %v667 = vpack.c.b16 %v487, %v483
    %v668 = vpack.c.b16 %v492, %v488
    %v669 = vpack.c.b16 %v493, %v489
    %v670 = vpack.c.b16 %v494, %v490
    %v671 = vpack.c.b16 %v495, %v491
    %v672 = vpack.c.b16 %v500, %v496
    %v673 = vpack.c.b16 %v501, %v497
    %v674 = vpack.c.b16 %v502, %v498
    %v675 = vpack.c.b16 %v503, %v499
    %v676 = vpack.c.b16 %v508, %v504
    %v677 = vpack.c.b16 %v509, %v505
    %v678 = vpack.c.b16 %v510, %v506
    %v679 = vpack.c.b16 %v511, %v507
    %v680 = vpack.c.b16 %v516, %v512
    %v681 = vpack.c.b16 %v517, %v513
    %v682 = vpack.c.b16 %v518, %v514
    %v683 = vpack.c.b16 %v519, %v515
    %v684 = vpack.c.b16 %v524, %v520
    %v685 = vpack.c.b16 %v525, %v521
    %v686 = vpack.c.b16 %v526, %v522
    %v687 = vpack.c.b16 %v527, %v523
    %v688 = vpack.c.b16 %v532, %v528
    %v689 = vpack.c.b16 %v533, %v529
    %v690 = vpack.c.b16 %v534, %v530
    %v691 = vpack.c.b16 %v535, %v531
    %v692 = vpack.c.b16 %v540, %v536
    %v693 = vpack.c.b16 %v541, %v537
    %v694 = vpack.c.b16 %v542, %v538
    %v695 = vpack.c.b16 %v543, %v539
    %v696 = vpack.c.b16 %v548, %v544
    %v697 = vpack.c.b16 %v549, %v545
    %v698 = vpack.c.b16 %v550, %v546
    %v699 = vpack.c.b16 %v551, %v547
    %v700 = vpack.c.b16 %v556, %v552
    %v701 = vpack.c.b16 %v557, %v553
    %v702 = vpack.c.b16 %v558, %v554
    %v703 = vpack.c.b16 %v559, %v555
    %v704 = vpack.c.b16 %v564, %v560
    %v705 = vpack.c.b16 %v565, %v561
    %v706 = vpack.c.b16 %v566, %v562
    %v707 = vpack.c.b16 %v567, %v563
    %v708 = vpack.c.b16 %v572, %v568
    %v709 = vpack.c.b16 %v573, %v569
    %v710 = vpack.c.b16 %v574, %v570
    %v711 = vpack.c.b16 %v575, %v571
    %v712 = vpack.c.b16 %v580, %v576
    %v713 = vpack.c.b16 %v581, %v577
    %v714 = vpack.c.b16 %v582, %v578
    %v715 = vpack.c.b16 %v583, %v579
    %v716 = vpack.c.b16 %v588, %v584
    %v717 = vpack.c.b16 %v589, %v585
    %v718 = vpack.c.b16 %v590, %v586
    %v719 = vpack.c.b16 %v591, %v587
    %848 = vmatprep.subr.bf16.mxu0 %v621
    %849 = vmatpush1.bf16.msra.mxu0 %v620
    %850 = vmatprep.subr.bf16.mxu0 %v617
    %851 = vmatpush1.bf16.msra.mxu0 %v616
    %852 = vmatprep.subr.bf16.mxu0 %v613
    %853 = vmatpush1.bf16.msra.mxu0 %v612
    %854 = vmatprep.subr.bf16.mxu0 %v609
    %855 = vmatpush1.bf16.msra.mxu0 %v608
    %856 = vmatprep.subr.bf16.mxu0 %v605
    %857 = vmatpush1.bf16.msra.mxu0 %v604
    %858 = vmatprep.subr.bf16.mxu0 %v601
    %859 = vmatpush1.bf16.msra.mxu0 %v600
    %860 = vmatprep.subr.bf16.mxu0 %v597
    %861 = vmatpush1.bf16.msra.mxu0 %v596
    %862 = vmatprep.subr.bf16.mxu0 %v593
    %863 = vmatpush1.bf16.msra.mxu0 %v592
    %864 = vmatprep.subr.bf16.mxu0 %v653
    %865 = vmatpush2.bf16.msra.mxu0 %v652
    %866 = vmatprep.subr.bf16.mxu0 %v649
    %867 = vmatpush2.bf16.msra.mxu0 %v648
    %868 = vmatprep.subr.bf16.mxu0 %v645
    %869 = vmatpush2.bf16.msra.mxu0 %v644
    %870 = vmatprep.subr.bf16.mxu0 %v641
    %871 = vmatpush2.bf16.msra.mxu0 %v640
    %872 = vmatprep.subr.bf16.mxu0 %v637
    %873 = vmatpush2.bf16.msra.mxu0 %v636
    %874 = vmatprep.subr.bf16.mxu0 %v633
    %875 = vmatpush2.bf16.msra.mxu0 %v632
    %876 = vmatprep.subr.bf16.mxu0 %v629
    %877 = vmatpush2.bf16.msra.mxu0 %v628
    %878 = vmatprep.subr.bf16.mxu0 %v625
    %879 = vmatpush2.bf16.msra.mxu0 %v624
    %880 = vmatprep.mubr.bf16.mxu0 %v77
    %881 = vmatmul.mubr.bf16.gmra.mxu0 %v76
    %v882 = vpop.f32.mrf.mxu0
    %v883 = vadd.f32 0.0, %v882
    %v884 = vpop.f32.mrf.mxu0
    %v885 = vadd.f32 0.0, %v884
    %v886 = vpop.f32.mrf.mxu0
    %v887 = vpop.f32.mrf.mxu0
    %888 = vdwg.mxu0
    %889 = vmatprep.subr.bf16.mxu0 %v685
    %890 = vmatpush1.bf16.msra.mxu0 %v684
    %891 = vmatprep.subr.bf16.mxu0 %v681
    %892 = vmatpush1.bf16.msra.mxu0 %v680
    %893 = vmatprep.subr.bf16.mxu0 %v677
    %894 = vmatpush1.bf16.msra.mxu0 %v676
    %895 = vmatprep.subr.bf16.mxu0 %v673
    %896 = vmatpush1.bf16.msra.mxu0 %v672
    %897 = vmatprep.subr.bf16.mxu0 %v669
    %898 = vmatpush1.bf16.msra.mxu0 %v668
    %899 = vmatprep.subr.bf16.mxu0 %v665
    %900 = vmatpush1.bf16.msra.mxu0 %v664
    %901 = vmatprep.subr.bf16.mxu0 %v661
    %902 = vmatpush1.bf16.msra.mxu0 %v660
    %903 = vmatprep.subr.bf16.mxu0 %v657
    %904 = vmatpush1.bf16.msra.mxu0 %v656
    %905 = vmatprep.subr.bf16.mxu0 %v717
    %906 = vmatpush2.bf16.msra.mxu0 %v716
    %907 = vmatprep.subr.bf16.mxu0 %v713
    %908 = vmatpush2.bf16.msra.mxu0 %v712
    %909 = vmatprep.subr.bf16.mxu0 %v709
    %910 = vmatpush2.bf16.msra.mxu0 %v708
    %911 = vmatprep.subr.bf16.mxu0 %v705
    %912 = vmatpush2.bf16.msra.mxu0 %v704
    %913 = vmatprep.subr.bf16.mxu0 %v701
    %914 = vmatpush2.bf16.msra.mxu0 %v700
    %915 = vmatprep.subr.bf16.mxu0 %v697
    %916 = vmatpush2.bf16.msra.mxu0 %v696
    %917 = vmatprep.subr.bf16.mxu0 %v693
    %918 = vmatpush2.bf16.msra.mxu0 %v692
    %919 = vmatprep.subr.bf16.mxu0 %v689
    %920 = vmatpush2.bf16.msra.mxu0 %v688
    %921 = vmatprep.mubr.bf16.mxu0 %v79
    %922 = vmatmul.mubr.bf16.gmra.mxu0 %v78
    %v923 = vpop.f32.mrf.mxu0
    %v924 = vadd.f32 %v883, %v923
    %v925 = vpop.f32.mrf.mxu0
    %v926 = vadd.f32 %v885, %v925
    %v927 = vpop.f32.mrf.mxu0
    %v928 = vpop.f32.mrf.mxu0
    %929 = vdwg.mxu0
    %930 = vmatprep.subr.bf16.mxu0 %v623
    %931 = vmatpush1.bf16.msra.mxu0 %v622
    %932 = vmatprep.subr.bf16.mxu0 %v619
    %933 = vmatpush1.bf16.msra.mxu0 %v618
    %934 = vmatprep.subr.bf16.mxu0 %v615
    %935 = vmatpush1.bf16.msra.mxu0 %v614
    %936 = vmatprep.subr.bf16.mxu0 %v611
    %937 = vmatpush1.bf16.msra.mxu0 %v610
    %938 = vmatprep.subr.bf16.mxu0 %v607
    %939 = vmatpush1.bf16.msra.mxu0 %v606
    %940 = vmatprep.subr.bf16.mxu0 %v603
    %941 = vmatpush1.bf16.msra.mxu0 %v602
    %942 = vmatprep.subr.bf16.mxu0 %v599
    %943 = vmatpush1.bf16.msra.mxu0 %v598
    %944 = vmatprep.subr.bf16.mxu0 %v595
    %945 = vmatpush1.bf16.msra.mxu0 %v594
    %946 = vmatprep.subr.bf16.mxu0 %v655
    %947 = vmatpush2.bf16.msra.mxu0 %v654
    %948 = vmatprep.subr.bf16.mxu0 %v651
    %949 = vmatpush2.bf16.msra.mxu0 %v650
    %950 = vmatprep.subr.bf16.mxu0 %v647
    %951 = vmatpush2.bf16.msra.mxu0 %v646
    %952 = vmatprep.subr.bf16.mxu0 %v643
    %953 = vmatpush2.bf16.msra.mxu0 %v642
    %954 = vmatprep.subr.bf16.mxu0 %v639
    %955 = vmatpush2.bf16.msra.mxu0 %v638
    %956 = vmatprep.subr.bf16.mxu0 %v635
    %957 = vmatpush2.bf16.msra.mxu0 %v634
    %958 = vmatprep.subr.bf16.mxu0 %v631
    %959 = vmatpush2.bf16.msra.mxu0 %v630
    %960 = vmatprep.subr.bf16.mxu0 %v627
    %961 = vmatpush2.bf16.msra.mxu0 %v626
    %962 = vmatprep.mubr.bf16.mxu0 %v77
    %963 = vmatmul.mubr.bf16.gmra.mxu0 %v76
    %v964 = vpop.f32.mrf.mxu0
    %v965 = vadd.f32 0.0, %v964
    %v966 = vpop.f32.mrf.mxu0
    %v967 = vadd.f32 0.0, %v966
    %v968 = vpop.f32.mrf.mxu0
    %v969 = vpop.f32.mrf.mxu0
    %970 = vdwg.mxu0
    %971 = vmatprep.subr.bf16.mxu0 %v687
    %972 = vmatpush1.bf16.msra.mxu0 %v686
    %973 = vmatprep.subr.bf16.mxu0 %v683
    %974 = vmatpush1.bf16.msra.mxu0 %v682
    %975 = vmatprep.subr.bf16.mxu0 %v679
    %976 = vmatpush1.bf16.msra.mxu0 %v678
    %977 = vmatprep.subr.bf16.mxu0 %v675
    %978 = vmatpush1.bf16.msra.mxu0 %v674
    %979 = vmatprep.subr.bf16.mxu0 %v671
    %980 = vmatpush1.bf16.msra.mxu0 %v670
    %981 = vmatprep.subr.bf16.mxu0 %v667
    %982 = vmatpush1.bf16.msra.mxu0 %v666
    %983 = vmatprep.subr.bf16.mxu0 %v663
    %984 = vmatpush1.bf16.msra.mxu0 %v662
    %985 = vmatprep.subr.bf16.mxu0 %v659
    %986 = vmatpush1.bf16.msra.mxu0 %v658
    %987 = vmatprep.subr.bf16.mxu0 %v719
    %988 = vmatpush2.bf16.msra.mxu0 %v718
    %989 = vmatprep.subr.bf16.mxu0 %v715
    %990 = vmatpush2.bf16.msra.mxu0 %v714
    %991 = vmatprep.subr.bf16.mxu0 %v711
    %992 = vmatpush2.bf16.msra.mxu0 %v710
    %993 = vmatprep.subr.bf16.mxu0 %v707
    %994 = vmatpush2.bf16.msra.mxu0 %v706
    %995 = vmatprep.subr.bf16.mxu0 %v703
    %996 = vmatpush2.bf16.msra.mxu0 %v702
    %997 = vmatprep.subr.bf16.mxu0 %v699
    %998 = vmatpush2.bf16.msra.mxu0 %v698
    %999 = vmatprep.subr.bf16.mxu0 %v695
    %1000 = vmatpush2.bf16.msra.mxu0 %v694
    %1001 = vmatprep.subr.bf16.mxu0 %v691
    %1002 = vmatpush2.bf16.msra.mxu0 %v690
    %1003 = vmatprep.mubr.bf16.mxu0 %v79
    %1004 = vmatmul.mubr.bf16.gmra.mxu0 %v78
    %v1005 = vpop.f32.mrf.mxu0
    %v1006 = vadd.f32 %v965, %v1005
    %v1007 = vpop.f32.mrf.mxu0
    %v1008 = vadd.f32 %v967, %v1007
    %v1009 = vpop.f32.mrf.mxu0
    %v1010 = vpop.f32.mrf.mxu0
    %1011 = vdwg.mxu0
    %v1012 = vld [vmem:[#allocation7] sm:$0xff]
    %v1013 = vrot.slane %v924, 4
    %v1014 = vadd.f32 %v924, %v1013
    %v1015 = vrot.slane %v1014, 2
    %v1016 = vadd.f32 %v1014, %v1015
    %v1017 = vrot.slane %v1016, 1
    %v1018 = vadd.f32 %v1016, %v1017
    %v1019 = vrot.slane %v926, 4
    %v1020 = vadd.f32 %v926, %v1019
    %v1021 = vrot.slane %v1020, 2
    %v1022 = vadd.f32 %v1020, %v1021
    %v1023 = vrot.slane %v1022, 1
    %v1024 = vadd.f32 %v1022, %v1023
    %v1025 = vrot.slane %v1006, 4
    %v1026 = vadd.f32 %v1006, %v1025
    %v1027 = vrot.slane %v1026, 2
    %v1028 = vadd.f32 %v1026, %v1027
    %v1029 = vrot.slane %v1028, 1
    %v1030 = vadd.f32 %v1028, %v1029
    %v1031 = vrot.slane %v1008, 4
    %v1032 = vadd.f32 %v1008, %v1031
    %v1033 = vrot.slane %v1032, 2
    %v1034 = vadd.f32 %v1032, %v1033
    %v1035 = vrot.slane %v1034, 1
    %v1036 = vadd.f32 %v1034, %v1035
    %v1037 = vmul.f32 %v924, %v924
    %v1038 = vmul.f32 %v926, %v926
    %v1039 = vmul.f32 %v1006, %v1006
    %v1040 = vmul.f32 %v1008, %v1008
    %v1041 = vrot.slane %v1037, 4
    %v1042 = vadd.f32 %v1037, %v1041
    %v1043 = vrot.slane %v1042, 2
    %v1044 = vadd.f32 %v1042, %v1043
    %v1045 = vrot.slane %v1044, 1
    %v1046 = vadd.f32 %v1044, %v1045
    %v1047 = vrot.slane %v1038, 4
    %v1048 = vadd.f32 %v1038, %v1047
    %v1049 = vrot.slane %v1048, 2
    %v1050 = vadd.f32 %v1048, %v1049
    %v1051 = vrot.slane %v1050, 1
    %v1052 = vadd.f32 %v1050, %v1051
    %v1053 = vrot.slane %v1039, 4
    %v1054 = vadd.f32 %v1039, %v1053
    %v1055 = vrot.slane %v1054, 2
    %v1056 = vadd.f32 %v1054, %v1055
    %v1057 = vrot.slane %v1056, 1
    %v1058 = vadd.f32 %v1056, %v1057
    %v1059 = vrot.slane %v1040, 4
    %v1060 = vadd.f32 %v1040, %v1059
    %v1061 = vrot.slane %v1060, 2
    %v1062 = vadd.f32 %v1060, %v1061
    %v1063 = vrot.slane %v1062, 1
    %v1064 = vadd.f32 %v1062, %v1063
    %v1065 = vmul.f32 %v1018, 0.125
    %v1066 = vmul.f32 %v1024, 0.125
    %v1067 = vmul.f32 %v1030, 0.125
    %v1068 = vmul.f32 %v1036, 0.125
    %v1069 = vmul.f32 %v1046, 0.125
    %v1070 = vmul.f32 %v1052, 0.125
    %v1071 = vmul.f32 %v1058, 0.125
    %v1072 = vmul.f32 %v1064, 0.125
    %v1073 = vmul.f32 %v1065, %v1065
    %v1074 = vmul.f32 %v1066, %v1066
    %v1075 = vmul.f32 %v1067, %v1067
    %v1076 = vmul.f32 %v1068, %v1068
    %v1077 = vsub.f32 %v1069, %v1073
    %v1078 = vsub.f32 %v1070, %v1074
    %v1079 = vsub.f32 %v1071, %v1075
    %v1080 = vsub.f32 %v1072, %v1076
    %v1081 = vmax.f32 %v1077, 0.0
    %v1082 = vmax.f32 %v1078, 0.0
    %v1083 = vmax.f32 %v1079, 0.0
    %v1084 = vmax.f32 %v1080, 0.0
    %v1085 = vadd.f32 %v1081, 1e-05
    %v1086 = vadd.f32 %v1082, 1e-05
    %v1087 = vadd.f32 %v1083, 1e-05
    %v1088 = vadd.f32 %v1084, 1e-05
    %v1089 = vrsqrt.pop %v1085
    %v1090 = vrsqrt.pop %v1086
    %v1091 = vrsqrt.pop %v1087
    %v1092 = vrsqrt.pop %v1088
    %v1097 = vcombine.low %v1089, %v1090
    %v1098 = vcombine.low %v1091, %v1092
    %v1100 = vunpack.c.l.s4 1966171168
    %v1101 = vunpack.c.0.s8 %v1100
    %v1102 = vlaneseq
    %v1103 = vshrl.u32 %v1102, 7
    %v1104 = vsub.s32 %v1101, %v1103
    %v1105 = vrot.slane %v1097, %v1104
    %v1107 = vunpack.c.l.s4 1966171168
    %v1108 = vunpack.c.0.s8 %v1107
    %v1109 = vlaneseq
    %v1110 = vshrl.u32 %v1109, 7
    %v1111 = vsub.s32 %v1108, %v1110
    %v1112 = vrot.slane %v1098, %v1111
    %v1113 = vcombine.low %v1105, %v1112
    %v1115 = vunpack.c.l.s4 1966171168
    %v1116 = vunpack.c.0.s8 %v1115
    %v1117 = vlaneseq
    %v1118 = vshrl.u32 %v1117, 7
    %v1119 = vsub.s32 %v1116, %v1118
    %v1120 = vrot.slane %v1113, %v1119
    %v1122 = vmul.f32 %v1012, %v1120
    %v1124 = vlaneseq
    %v1125 = vshrl.u32 %v1124, 7
    %v1126 = vsub.s32 0, %v1125
    %v1127 = vrot.slane %v1122, %v1126
    %v1128 = vlaneseq
    %v1129 = vshrl.u32 %v1128, 7
    %v1130 = vsub.s32 1, %v1129
    %v1131 = vrot.slane %v1122, %v1130
    %v1132 = vlaneseq
    %v1133 = vshrl.u32 %v1132, 7
    %v1134 = vsub.s32 2, %v1133
    %v1135 = vrot.slane %v1122, %v1134
    %v1136 = vlaneseq
    %v1137 = vshrl.u32 %v1136, 7
    %v1138 = vsub.s32 3, %v1137
    %v1139 = vrot.slane %v1122, %v1138
    %v1144 = vmul.f32 %v1065, %v1127
    %v1145 = vmul.f32 %v1066, %v1131
    %v1146 = vmul.f32 %v1067, %v1135
    %v1147 = vmul.f32 %v1068, %v1139
    %v1149 = vrot.slane %v1012, 4
    %v1155 = vcombine.low %v1144, %v1145
    %v1156 = vcombine.low %v1146, %v1147
    %v1158 = vunpack.c.l.s4 1966171168
    %v1159 = vunpack.c.0.s8 %v1158
    %v1160 = vlaneseq
    %v1161 = vshrl.u32 %v1160, 7
    %v1162 = vsub.s32 %v1159, %v1161
    %v1163 = vrot.slane %v1155, %v1162
    %v1165 = vunpack.c.l.s4 1966171168
    %v1166 = vunpack.c.0.s8 %v1165
    %v1167 = vlaneseq
    %v1168 = vshrl.u32 %v1167, 7
    %v1169 = vsub.s32 %v1166, %v1168
    %v1170 = vrot.slane %v1156, %v1169
    %v1171 = vcombine.low %v1163, %v1170
    %v1173 = vunpack.c.l.s4 1966171168
    %v1174 = vunpack.c.0.s8 %v1173
    %v1175 = vlaneseq
    %v1176 = vshrl.u32 %v1175, 7
    %v1177 = vsub.s32 %v1174, %v1176
    %v1178 = vrot.slane %v1171, %v1177
    %v1180 = vsub.f32 %v1149, %v1178
    %v1181 = vmul.f32 %v924, %v1127
    %v1182 = vmul.f32 %v926, %v1131
    %v1183 = vmul.f32 %v1006, %v1135
    %v1184 = vmul.f32 %v1008, %v1139
    %v1186 = vlaneseq
    %v1187 = vshrl.u32 %v1186, 7
    %v1188 = vsub.s32 0, %v1187
    %v1189 = vrot.slane %v1180, %v1188
    %v1190 = vlaneseq
    %v1191 = vshrl.u32 %v1190, 7
    %v1192 = vsub.s32 1, %v1191
    %v1193 = vrot.slane %v1180, %v1192
    %v1194 = vlaneseq
    %v1195 = vshrl.u32 %v1194, 7
    %v1196 = vsub.s32 2, %v1195
    %v1197 = vrot.slane %v1180, %v1196
    %v1198 = vlaneseq
    %v1199 = vshrl.u32 %v1198, 7
    %v1200 = vsub.s32 3, %v1199
    %v1201 = vrot.slane %v1180, %v1200
    %v1206 = vadd.f32 %v1181, %v1189
    %v1207 = vadd.f32 %v1182, %v1193
    %v1208 = vadd.f32 %v1183, %v1197
    %v1209 = vadd.f32 %v1184, %v1201
    %v1210 = vmax.f32 %v1206, 0.0
    %v1211 = vmax.f32 %v1207, 0.0
    %v1212 = vmax.f32 %v1208, 0.0
    %v1213 = vmax.f32 %v1209, 0.0
    %v1214 = vpack.c.bf16 %v1210, %v1210
    %v1215 = vpack.c.bf16 %v1211, %v1211
    %v1216 = vpack.c.bf16 %v1212, %v1212
    %v1217 = vpack.c.bf16 %v1213, %v1213
    %s1218 = scalar_lea.vmem [#allocation5], 1024
    %v1219 = vld [vmem:[%s1218] sm:$0xff]
    %v1220 = vld [vmem:[%s1218 + $0x8] sm:$0xff]
    %v1221 = vld [vmem:[%s1218 + $0x10] sm:$0xff]
    %v1222 = vld [vmem:[%s1218 + $0x18] sm:$0xff]
    %v1223 = vld [vmem:[%s1218 + $0x20] sm:$0xff]
    %v1224 = vld [vmem:[%s1218 + $0x28] sm:$0xff]
    %v1225 = vld [vmem:[%s1218 + $0x30] sm:$0xff]
    %v1226 = vld [vmem:[%s1218 + $0x38] sm:$0xff]
    %v1227 = vld [vmem:[%s1218 + $0x40] sm:$0xff]
    %v1228 = vld [vmem:[%s1218 + $0x48] sm:$0xff]
    %v1229 = vld [vmem:[%s1218 + $0x50] sm:$0xff]
    %v1230 = vld [vmem:[%s1218 + $0x58] sm:$0xff]
    %v1231 = vld [vmem:[%s1218 + $0x60] sm:$0xff]
    %v1232 = vld [vmem:[%s1218 + $0x68] sm:$0xff]
    %v1233 = vld [vmem:[%s1218 + $0x70] sm:$0xff]
    %v1234 = vld [vmem:[%s1218 + $0x78] sm:$0xff]
    %v1235 = vld [vmem:[%s1218 + $0x80] sm:$0xff]
    %v1236 = vld [vmem:[%s1218 + $0x88] sm:$0xff]
    %v1237 = vld [vmem:[%s1218 + $0x90] sm:$0xff]
    %v1238 = vld [vmem:[%s1218 + $0x98] sm:$0xff]
    %v1239 = vld [vmem:[%s1218 + $0xa0] sm:$0xff]
    %v1240 = vld [vmem:[%s1218 + $0xa8] sm:$0xff]
    %v1241 = vld [vmem:[%s1218 + $0xb0] sm:$0xff]
    %v1242 = vld [vmem:[%s1218 + $0xb8] sm:$0xff]
    %v1243 = vld [vmem:[%s1218 + $0xc0] sm:$0xff]
    %v1244 = vld [vmem:[%s1218 + $0xc8] sm:$0xff]
    %v1245 = vld [vmem:[%s1218 + $0xd0] sm:$0xff]
    %v1246 = vld [vmem:[%s1218 + $0xd8] sm:$0xff]
    %v1247 = vld [vmem:[%s1218 + $0xe0] sm:$0xff]
    %v1248 = vld [vmem:[%s1218 + $0xe8] sm:$0xff]
    %v1249 = vld [vmem:[%s1218 + $0xf0] sm:$0xff]
    %v1250 = vld [vmem:[%s1218 + $0xf8] sm:$0xff]
    %v1251 = vld [vmem:[%s1218 + $0x100] sm:$0xff]
    %v1252 = vld [vmem:[%s1218 + $0x108] sm:$0xff]
    %v1253 = vld [vmem:[%s1218 + $0x110] sm:$0xff]
    %v1254 = vld [vmem:[%s1218 + $0x118] sm:$0xff]
    %v1255 = vld [vmem:[%s1218 + $0x120] sm:$0xff]
    %v1256 = vld [vmem:[%s1218 + $0x128] sm:$0xff]
    %v1257 = vld [vmem:[%s1218 + $0x130] sm:$0xff]
    %v1258 = vld [vmem:[%s1218 + $0x138] sm:$0xff]
    %v1259 = vld [vmem:[%s1218 + $0x140] sm:$0xff]
    %v1260 = vld [vmem:[%s1218 + $0x148] sm:$0xff]
    %v1261 = vld [vmem:[%s1218 + $0x150] sm:$0xff]
    %v1262 = vld [vmem:[%s1218 + $0x158] sm:$0xff]
    %v1263 = vld [vmem:[%s1218 + $0x160] sm:$0xff]
    %v1264 = vld [vmem:[%s1218 + $0x168] sm:$0xff]
    %v1265 = vld [vmem:[%s1218 + $0x170] sm:$0xff]
    %v1266 = vld [vmem:[%s1218 + $0x178] sm:$0xff]
    %v1267 = vld [vmem:[%s1218 + $0x180] sm:$0xff]
    %v1268 = vld [vmem:[%s1218 + $0x188] sm:$0xff]
    %v1269 = vld [vmem:[%s1218 + $0x190] sm:$0xff]
    %v1270 = vld [vmem:[%s1218 + $0x198] sm:$0xff]
    %v1271 = vld [vmem:[%s1218 + $0x1a0] sm:$0xff]
    %v1272 = vld [vmem:[%s1218 + $0x1a8] sm:$0xff]
    %v1273 = vld [vmem:[%s1218 + $0x1b0] sm:$0xff]
    %v1274 = vld [vmem:[%s1218 + $0x1b8] sm:$0xff]
    %v1275 = vld [vmem:[%s1218 + $0x1c0] sm:$0xff]
    %v1276 = vld [vmem:[%s1218 + $0x1c8] sm:$0xff]
    %v1277 = vld [vmem:[%s1218 + $0x1d0] sm:$0xff]
    %v1278 = vld [vmem:[%s1218 + $0x1d8] sm:$0xff]
    %v1279 = vld [vmem:[%s1218 + $0x1e0] sm:$0xff]
    %v1280 = vld [vmem:[%s1218 + $0x1e8] sm:$0xff]
    %v1281 = vld [vmem:[%s1218 + $0x1f0] sm:$0xff]
    %v1282 = vld [vmem:[%s1218 + $0x1f8] sm:$0xff]
    %v1283 = vld [vmem:[%s1218 + $0x200] sm:$0xff]
    %v1284 = vld [vmem:[%s1218 + $0x208] sm:$0xff]
    %v1285 = vld [vmem:[%s1218 + $0x210] sm:$0xff]
    %v1286 = vld [vmem:[%s1218 + $0x218] sm:$0xff]
    %v1287 = vld [vmem:[%s1218 + $0x220] sm:$0xff]
    %v1288 = vld [vmem:[%s1218 + $0x228] sm:$0xff]
    %v1289 = vld [vmem:[%s1218 + $0x230] sm:$0xff]
    %v1290 = vld [vmem:[%s1218 + $0x238] sm:$0xff]
    %v1291 = vld [vmem:[%s1218 + $0x240] sm:$0xff]
    %v1292 = vld [vmem:[%s1218 + $0x248] sm:$0xff]
    %v1293 = vld [vmem:[%s1218 + $0x250] sm:$0xff]
    %v1294 = vld [vmem:[%s1218 + $0x258] sm:$0xff]
    %v1295 = vld [vmem:[%s1218 + $0x260] sm:$0xff]
    %v1296 = vld [vmem:[%s1218 + $0x268] sm:$0xff]
    %v1297 = vld [vmem:[%s1218 + $0x270] sm:$0xff]
    %v1298 = vld [vmem:[%s1218 + $0x278] sm:$0xff]
    %v1299 = vld [vmem:[%s1218 + $0x280] sm:$0xff]
    %v1300 = vld [vmem:[%s1218 + $0x288] sm:$0xff]
    %v1301 = vld [vmem:[%s1218 + $0x290] sm:$0xff]
    %v1302 = vld [vmem:[%s1218 + $0x298] sm:$0xff]
    %v1303 = vld [vmem:[%s1218 + $0x2a0] sm:$0xff]
    %v1304 = vld [vmem:[%s1218 + $0x2a8] sm:$0xff]
    %v1305 = vld [vmem:[%s1218 + $0x2b0] sm:$0xff]
    %v1306 = vld [vmem:[%s1218 + $0x2b8] sm:$0xff]
    %v1307 = vld [vmem:[%s1218 + $0x2c0] sm:$0xff]
    %v1308 = vld [vmem:[%s1218 + $0x2c8] sm:$0xff]
    %v1309 = vld [vmem:[%s1218 + $0x2d0] sm:$0xff]
    %v1310 = vld [vmem:[%s1218 + $0x2d8] sm:$0xff]
    %v1311 = vld [vmem:[%s1218 + $0x2e0] sm:$0xff]
    %v1312 = vld [vmem:[%s1218 + $0x2e8] sm:$0xff]
    %v1313 = vld [vmem:[%s1218 + $0x2f0] sm:$0xff]
    %v1314 = vld [vmem:[%s1218 + $0x2f8] sm:$0xff]
    %v1315 = vld [vmem:[%s1218 + $0x300] sm:$0xff]
    %v1316 = vld [vmem:[%s1218 + $0x308] sm:$0xff]
    %v1317 = vld [vmem:[%s1218 + $0x310] sm:$0xff]
    %v1318 = vld [vmem:[%s1218 + $0x318] sm:$0xff]
    %v1319 = vld [vmem:[%s1218 + $0x320] sm:$0xff]
    %v1320 = vld [vmem:[%s1218 + $0x328] sm:$0xff]
    %v1321 = vld [vmem:[%s1218 + $0x330] sm:$0xff]
    %v1322 = vld [vmem:[%s1218 + $0x338] sm:$0xff]
    %v1323 = vld [vmem:[%s1218 + $0x340] sm:$0xff]
    %v1324 = vld [vmem:[%s1218 + $0x348] sm:$0xff]
    %v1325 = vld [vmem:[%s1218 + $0x350] sm:$0xff]
    %v1326 = vld [vmem:[%s1218 + $0x358] sm:$0xff]
    %v1327 = vld [vmem:[%s1218 + $0x360] sm:$0xff]
    %v1328 = vld [vmem:[%s1218 + $0x368] sm:$0xff]
    %v1329 = vld [vmem:[%s1218 + $0x370] sm:$0xff]
    %v1330 = vld [vmem:[%s1218 + $0x378] sm:$0xff]
    %v1331 = vld [vmem:[%s1218 + $0x380] sm:$0xff]
    %v1332 = vld [vmem:[%s1218 + $0x388] sm:$0xff]
    %v1333 = vld [vmem:[%s1218 + $0x390] sm:$0xff]
    %v1334 = vld [vmem:[%s1218 + $0x398] sm:$0xff]
    %v1335 = vld [vmem:[%s1218 + $0x3a0] sm:$0xff]
    %v1336 = vld [vmem:[%s1218 + $0x3a8] sm:$0xff]
    %v1337 = vld [vmem:[%s1218 + $0x3b0] sm:$0xff]
    %v1338 = vld [vmem:[%s1218 + $0x3b8] sm:$0xff]
    %v1339 = vld [vmem:[%s1218 + $0x3c0] sm:$0xff]
    %v1340 = vld [vmem:[%s1218 + $0x3c8] sm:$0xff]
    %v1341 = vld [vmem:[%s1218 + $0x3d0] sm:$0xff]
    %v1342 = vld [vmem:[%s1218 + $0x3d8] sm:$0xff]
    %v1343 = vld [vmem:[%s1218 + $0x3e0] sm:$0xff]
    %v1344 = vld [vmem:[%s1218 + $0x3e8] sm:$0xff]
    %v1345 = vld [vmem:[%s1218 + $0x3f0] sm:$0xff]
    %v1346 = vld [vmem:[%s1218 + $0x3f8] sm:$0xff]
    %v1475 = vunpack.c.l.b16 %v1219
    %v1476 = vunpack.c.h.b16 %v1219
    %v1477 = vunpack.c.l.b16 %v1220
    %v1478 = vunpack.c.h.b16 %v1220
    %v1479 = vunpack.c.l.b16 %v1221
    %v1480 = vunpack.c.h.b16 %v1221
    %v1481 = vunpack.c.l.b16 %v1222
    %v1482 = vunpack.c.h.b16 %v1222
    %v1483 = vunpack.c.l.b16 %v1223
    %v1484 = vunpack.c.h.b16 %v1223
    %v1485 = vunpack.c.l.b16 %v1224
    %v1486 = vunpack.c.h.b16 %v1224
    %v1487 = vunpack.c.l.b16 %v1225
    %v1488 = vunpack.c.h.b16 %v1225
    %v1489 = vunpack.c.l.b16 %v1226
    %v1490 = vunpack.c.h.b16 %v1226
    %v1491 = vunpack.c.l.b16 %v1227
    %v1492 = vunpack.c.h.b16 %v1227
    %v1493 = vunpack.c.l.b16 %v1228
    %v1494 = vunpack.c.h.b16 %v1228
    %v1495 = vunpack.c.l.b16 %v1229
    %v1496 = vunpack.c.h.b16 %v1229
    %v1497 = vunpack.c.l.b16 %v1230
    %v1498 = vunpack.c.h.b16 %v1230
    %v1499 = vunpack.c.l.b16 %v1231
    %v1500 = vunpack.c.h.b16 %v1231
    %v1501 = vunpack.c.l.b16 %v1232
    %v1502 = vunpack.c.h.b16 %v1232
    %v1503 = vunpack.c.l.b16 %v1233
    %v1504 = vunpack.c.h.b16 %v1233
    %v1505 = vunpack.c.l.b16 %v1234
    %v1506 = vunpack.c.h.b16 %v1234
    %v1507 = vunpack.c.l.b16 %v1235
    %v1508 = vunpack.c.h.b16 %v1235
    %v1509 = vunpack.c.l.b16 %v1236
    %v1510 = vunpack.c.h.b16 %v1236
    %v1511 = vunpack.c.l.b16 %v1237
    %v1512 = vunpack.c.h.b16 %v1237
    %v1513 = vunpack.c.l.b16 %v1238
    %v1514 = vunpack.c.h.b16 %v1238
    %v1515 = vunpack.c.l.b16 %v1239
    %v1516 = vunpack.c.h.b16 %v1239
    %v1517 = vunpack.c.l.b16 %v1240
    %v1518 = vunpack.c.h.b16 %v1240
    %v1519 = vunpack.c.l.b16 %v1241
    %v1520 = vunpack.c.h.b16 %v1241
    %v1521 = vunpack.c.l.b16 %v1242
    %v1522 = vunpack.c.h.b16 %v1242
    %v1523 = vunpack.c.l.b16 %v1243
    %v1524 = vunpack.c.h.b16 %v1243
    %v1525 = vunpack.c.l.b16 %v1244
    %v1526 = vunpack.c.h.b16 %v1244
    %v1527 = vunpack.c.l.b16 %v1245
    %v1528 = vunpack.c.h.b16 %v1245
    %v1529 = vunpack.c.l.b16 %v1246
    %v1530 = vunpack.c.h.b16 %v1246
    %v1531 = vunpack.c.l.b16 %v1247
    %v1532 = vunpack.c.h.b16 %v1247
    %v1533 = vunpack.c.l.b16 %v1248
    %v1534 = vunpack.c.h.b16 %v1248
    %v1535 = vunpack.c.l.b16 %v1249
    %v1536 = vunpack.c.h.b16 %v1249
    %v1537 = vunpack.c.l.b16 %v1250
    %v1538 = vunpack.c.h.b16 %v1250
    %v1539 = vunpack.c.l.b16 %v1251
    %v1540 = vunpack.c.h.b16 %v1251
    %v1541 = vunpack.c.l.b16 %v1252
    %v1542 = vunpack.c.h.b16 %v1252
    %v1543 = vunpack.c.l.b16 %v1253
    %v1544 = vunpack.c.h.b16 %v1253
    %v1545 = vunpack.c.l.b16 %v1254
    %v1546 = vunpack.c.h.b16 %v1254
    %v1547 = vunpack.c.l.b16 %v1255
    %v1548 = vunpack.c.h.b16 %v1255
    %v1549 = vunpack.c.l.b16 %v1256
    %v1550 = vunpack.c.h.b16 %v1256
    %v1551 = vunpack.c.l.b16 %v1257
    %v1552 = vunpack.c.h.b16 %v1257
    %v1553 = vunpack.c.l.b16 %v1258
    %v1554 = vunpack.c.h.b16 %v1258
    %v1555 = vunpack.c.l.b16 %v1259
    %v1556 = vunpack.c.h.b16 %v1259
    %v1557 = vunpack.c.l.b16 %v1260
    %v1558 = vunpack.c.h.b16 %v1260
    %v1559 = vunpack.c.l.b16 %v1261
    %v1560 = vunpack.c.h.b16 %v1261
    %v1561 = vunpack.c.l.b16 %v1262
    %v1562 = vunpack.c.h.b16 %v1262
    %v1563 = vunpack.c.l.b16 %v1263
    %v1564 = vunpack.c.h.b16 %v1263
    %v1565 = vunpack.c.l.b16 %v1264
    %v1566 = vunpack.c.h.b16 %v1264
    %v1567 = vunpack.c.l.b16 %v1265
    %v1568 = vunpack.c.h.b16 %v1265
    %v1569 = vunpack.c.l.b16 %v1266
    %v1570 = vunpack.c.h.b16 %v1266
    %v1571 = vunpack.c.l.b16 %v1267
    %v1572 = vunpack.c.h.b16 %v1267
    %v1573 = vunpack.c.l.b16 %v1268
    %v1574 = vunpack.c.h.b16 %v1268
    %v1575 = vunpack.c.l.b16 %v1269
    %v1576 = vunpack.c.h.b16 %v1269
    %v1577 = vunpack.c.l.b16 %v1270
    %v1578 = vunpack.c.h.b16 %v1270
    %v1579 = vunpack.c.l.b16 %v1271
    %v1580 = vunpack.c.h.b16 %v1271
    %v1581 = vunpack.c.l.b16 %v1272
    %v1582 = vunpack.c.h.b16 %v1272
    %v1583 = vunpack.c.l.b16 %v1273
    %v1584 = vunpack.c.h.b16 %v1273
    %v1585 = vunpack.c.l.b16 %v1274
    %v1586 = vunpack.c.h.b16 %v1274
    %v1587 = vunpack.c.l.b16 %v1275
    %v1588 = vunpack.c.h.b16 %v1275
    %v1589 = vunpack.c.l.b16 %v1276
    %v1590 = vunpack.c.h.b16 %v1276
    %v1591 = vunpack.c.l.b16 %v1277
    %v1592 = vunpack.c.h.b16 %v1277
    %v1593 = vunpack.c.l.b16 %v1278
    %v1594 = vunpack.c.h.b16 %v1278
    %v1595 = vunpack.c.l.b16 %v1279
    %v1596 = vunpack.c.h.b16 %v1279
    %v1597 = vunpack.c.l.b16 %v1280
    %v1598 = vunpack.c.h.b16 %v1280
    %v1599 = vunpack.c.l.b16 %v1281
    %v1600 = vunpack.c.h.b16 %v1281
    %v1601 = vunpack.c.l.b16 %v1282
    %v1602 = vunpack.c.h.b16 %v1282
    %v1603 = vunpack.c.l.b16 %v1283
    %v1604 = vunpack.c.h.b16 %v1283
    %v1605 = vunpack.c.l.b16 %v1284
    %v1606 = vunpack.c.h.b16 %v1284
    %v1607 = vunpack.c.l.b16 %v1285
    %v1608 = vunpack.c.h.b16 %v1285
    %v1609 = vunpack.c.l.b16 %v1286
    %v1610 = vunpack.c.h.b16 %v1286
    %v1611 = vunpack.c.l.b16 %v1287
    %v1612 = vunpack.c.h.b16 %v1287
    %v1613 = vunpack.c.l.b16 %v1288
    %v1614 = vunpack.c.h.b16 %v1288
    %v1615 = vunpack.c.l.b16 %v1289
    %v1616 = vunpack.c.h.b16 %v1289
    %v1617 = vunpack.c.l.b16 %v1290
    %v1618 = vunpack.c.h.b16 %v1290
    %v1619 = vunpack.c.l.b16 %v1291
    %v1620 = vunpack.c.h.b16 %v1291
    %v1621 = vunpack.c.l.b16 %v1292
    %v1622 = vunpack.c.h.b16 %v1292
    %v1623 = vunpack.c.l.b16 %v1293
    %v1624 = vunpack.c.h.b16 %v1293
    %v1625 = vunpack.c.l.b16 %v1294
    %v1626 = vunpack.c.h.b16 %v1294
    %v1627 = vunpack.c.l.b16 %v1295
    %v1628 = vunpack.c.h.b16 %v1295
    %v1629 = vunpack.c.l.b16 %v1296
    %v1630 = vunpack.c.h.b16 %v1296
    %v1631 = vunpack.c.l.b16 %v1297
    %v1632 = vunpack.c.h.b16 %v1297
    %v1633 = vunpack.c.l.b16 %v1298
    %v1634 = vunpack.c.h.b16 %v1298
    %v1635 = vunpack.c.l.b16 %v1299
    %v1636 = vunpack.c.h.b16 %v1299
    %v1637 = vunpack.c.l.b16 %v1300
    %v1638 = vunpack.c.h.b16 %v1300
    %v1639 = vunpack.c.l.b16 %v1301
    %v1640 = vunpack.c.h.b16 %v1301
    %v1641 = vunpack.c.l.b16 %v1302
    %v1642 = vunpack.c.h.b16 %v1302
    %v1643 = vunpack.c.l.b16 %v1303
    %v1644 = vunpack.c.h.b16 %v1303
    %v1645 = vunpack.c.l.b16 %v1304
    %v1646 = vunpack.c.h.b16 %v1304
    %v1647 = vunpack.c.l.b16 %v1305
    %v1648 = vunpack.c.h.b16 %v1305
    %v1649 = vunpack.c.l.b16 %v1306
    %v1650 = vunpack.c.h.b16 %v1306
    %v1651 = vunpack.c.l.b16 %v1307
    %v1652 = vunpack.c.h.b16 %v1307
    %v1653 = vunpack.c.l.b16 %v1308
    %v1654 = vunpack.c.h.b16 %v1308
    %v1655 = vunpack.c.l.b16 %v1309
    %v1656 = vunpack.c.h.b16 %v1309
    %v1657 = vunpack.c.l.b16 %v1310
    %v1658 = vunpack.c.h.b16 %v1310
    %v1659 = vunpack.c.l.b16 %v1311
    %v1660 = vunpack.c.h.b16 %v1311
    %v1661 = vunpack.c.l.b16 %v1312
    %v1662 = vunpack.c.h.b16 %v1312
    %v1663 = vunpack.c.l.b16 %v1313
    %v1664 = vunpack.c.h.b16 %v1313
    %v1665 = vunpack.c.l.b16 %v1314
    %v1666 = vunpack.c.h.b16 %v1314
    %v1667 = vunpack.c.l.b16 %v1315
    %v1668 = vunpack.c.h.b16 %v1315
    %v1669 = vunpack.c.l.b16 %v1316
    %v1670 = vunpack.c.h.b16 %v1316
    %v1671 = vunpack.c.l.b16 %v1317
    %v1672 = vunpack.c.h.b16 %v1317
    %v1673 = vunpack.c.l.b16 %v1318
    %v1674 = vunpack.c.h.b16 %v1318
    %v1675 = vunpack.c.l.b16 %v1319
    %v1676 = vunpack.c.h.b16 %v1319
    %v1677 = vunpack.c.l.b16 %v1320
    %v1678 = vunpack.c.h.b16 %v1320
    %v1679 = vunpack.c.l.b16 %v1321
    %v1680 = vunpack.c.h.b16 %v1321
    %v1681 = vunpack.c.l.b16 %v1322
    %v1682 = vunpack.c.h.b16 %v1322
    %v1683 = vunpack.c.l.b16 %v1323
    %v1684 = vunpack.c.h.b16 %v1323
    %v1685 = vunpack.c.l.b16 %v1324
    %v1686 = vunpack.c.h.b16 %v1324
    %v1687 = vunpack.c.l.b16 %v1325
    %v1688 = vunpack.c.h.b16 %v1325
    %v1689 = vunpack.c.l.b16 %v1326
    %v1690 = vunpack.c.h.b16 %v1326
    %v1691 = vunpack.c.l.b16 %v1327
    %v1692 = vunpack.c.h.b16 %v1327
    %v1693 = vunpack.c.l.b16 %v1328
    %v1694 = vunpack.c.h.b16 %v1328
    %v1695 = vunpack.c.l.b16 %v1329
    %v1696 = vunpack.c.h.b16 %v1329
    %v1697 = vunpack.c.l.b16 %v1330
    %v1698 = vunpack.c.h.b16 %v1330
    %v1699 = vunpack.c.l.b16 %v1331
    %v1700 = vunpack.c.h.b16 %v1331
    %v1701 = vunpack.c.l.b16 %v1332
    %v1702 = vunpack.c.h.b16 %v1332
    %v1703 = vunpack.c.l.b16 %v1333
    %v1704 = vunpack.c.h.b16 %v1333
    %v1705 = vunpack.c.l.b16 %v1334
    %v1706 = vunpack.c.h.b16 %v1334
    %v1707 = vunpack.c.l.b16 %v1335
    %v1708 = vunpack.c.h.b16 %v1335
    %v1709 = vunpack.c.l.b16 %v1336
    %v1710 = vunpack.c.h.b16 %v1336
    %v1711 = vunpack.c.l.b16 %v1337
    %v1712 = vunpack.c.h.b16 %v1337
    %v1713 = vunpack.c.l.b16 %v1338
    %v1714 = vunpack.c.h.b16 %v1338
    %v1715 = vunpack.c.l.b16 %v1339
    %v1716 = vunpack.c.h.b16 %v1339
    %v1717 = vunpack.c.l.b16 %v1340
    %v1718 = vunpack.c.h.b16 %v1340
    %v1719 = vunpack.c.l.b16 %v1341
    %v1720 = vunpack.c.h.b16 %v1341
    %v1721 = vunpack.c.l.b16 %v1342
    %v1722 = vunpack.c.h.b16 %v1342
    %v1723 = vunpack.c.l.b16 %v1343
    %v1724 = vunpack.c.h.b16 %v1343
    %v1725 = vunpack.c.l.b16 %v1344
    %v1726 = vunpack.c.h.b16 %v1344
    %v1727 = vunpack.c.l.b16 %v1345
    %v1728 = vunpack.c.h.b16 %v1345
    %v1729 = vunpack.c.l.b16 %v1346
    %v1730 = vunpack.c.h.b16 %v1346
    %v1731 = vpack.c.b16 %v1479, %v1475
    %v1732 = vpack.c.b16 %v1480, %v1476
    %v1733 = vpack.c.b16 %v1481, %v1477
    %v1734 = vpack.c.b16 %v1482, %v1478
    %v1735 = vpack.c.b16 %v1487, %v1483
    %v1736 = vpack.c.b16 %v1488, %v1484
    %v1737 = vpack.c.b16 %v1489, %v1485
    %v1738 = vpack.c.b16 %v1490, %v1486
    %v1739 = vpack.c.b16 %v1495, %v1491
    %v1740 = vpack.c.b16 %v1496, %v1492
    %v1741 = vpack.c.b16 %v1497, %v1493
    %v1742 = vpack.c.b16 %v1498, %v1494
    %v1743 = vpack.c.b16 %v1503, %v1499
    %v1744 = vpack.c.b16 %v1504, %v1500
    %v1745 = vpack.c.b16 %v1505, %v1501
    %v1746 = vpack.c.b16 %v1506, %v1502
    %v1747 = vpack.c.b16 %v1511, %v1507
    %v1748 = vpack.c.b16 %v1512, %v1508
    %v1749 = vpack.c.b16 %v1513, %v1509
    %v1750 = vpack.c.b16 %v1514, %v1510
    %v1751 = vpack.c.b16 %v1519, %v1515
    %v1752 = vpack.c.b16 %v1520, %v1516
    %v1753 = vpack.c.b16 %v1521, %v1517
    %v1754 = vpack.c.b16 %v1522, %v1518
    %v1755 = vpack.c.b16 %v1527, %v1523
    %v1756 = vpack.c.b16 %v1528, %v1524
    %v1757 = vpack.c.b16 %v1529, %v1525
    %v1758 = vpack.c.b16 %v1530, %v1526
    %v1759 = vpack.c.b16 %v1535, %v1531
    %v1760 = vpack.c.b16 %v1536, %v1532
    %v1761 = vpack.c.b16 %v1537, %v1533
    %v1762 = vpack.c.b16 %v1538, %v1534
    %v1763 = vpack.c.b16 %v1543, %v1539
    %v1764 = vpack.c.b16 %v1544, %v1540
    %v1765 = vpack.c.b16 %v1545, %v1541
    %v1766 = vpack.c.b16 %v1546, %v1542
    %v1767 = vpack.c.b16 %v1551, %v1547
    %v1768 = vpack.c.b16 %v1552, %v1548
    %v1769 = vpack.c.b16 %v1553, %v1549
    %v1770 = vpack.c.b16 %v1554, %v1550
    %v1771 = vpack.c.b16 %v1559, %v1555
    %v1772 = vpack.c.b16 %v1560, %v1556
    %v1773 = vpack.c.b16 %v1561, %v1557
    %v1774 = vpack.c.b16 %v1562, %v1558
    %v1775 = vpack.c.b16 %v1567, %v1563
    %v1776 = vpack.c.b16 %v1568, %v1564
    %v1777 = vpack.c.b16 %v1569, %v1565
    %v1778 = vpack.c.b16 %v1570, %v1566
    %v1779 = vpack.c.b16 %v1575, %v1571
    %v1780 = vpack.c.b16 %v1576, %v1572
    %v1781 = vpack.c.b16 %v1577, %v1573
    %v1782 = vpack.c.b16 %v1578, %v1574
    %v1783 = vpack.c.b16 %v1583, %v1579
    %v1784 = vpack.c.b16 %v1584, %v1580
    %v1785 = vpack.c.b16 %v1585, %v1581
    %v1786 = vpack.c.b16 %v1586, %v1582
    %v1787 = vpack.c.b16 %v1591, %v1587
    %v1788 = vpack.c.b16 %v1592, %v1588
    %v1789 = vpack.c.b16 %v1593, %v1589
    %v1790 = vpack.c.b16 %v1594, %v1590
    %v1791 = vpack.c.b16 %v1599, %v1595
    %v1792 = vpack.c.b16 %v1600, %v1596
    %v1793 = vpack.c.b16 %v1601, %v1597
    %v1794 = vpack.c.b16 %v1602, %v1598
    %v1795 = vpack.c.b16 %v1607, %v1603
    %v1796 = vpack.c.b16 %v1608, %v1604
    %v1797 = vpack.c.b16 %v1609, %v1605
    %v1798 = vpack.c.b16 %v1610, %v1606
    %v1799 = vpack.c.b16 %v1615, %v1611
    %v1800 = vpack.c.b16 %v1616, %v1612
    %v1801 = vpack.c.b16 %v1617, %v1613
    %v1802 = vpack.c.b16 %v1618, %v1614
    %v1803 = vpack.c.b16 %v1623, %v1619
    %v1804 = vpack.c.b16 %v1624, %v1620
    %v1805 = vpack.c.b16 %v1625, %v1621
    %v1806 = vpack.c.b16 %v1626, %v1622
    %v1807 = vpack.c.b16 %v1631, %v1627
    %v1808 = vpack.c.b16 %v1632, %v1628
    %v1809 = vpack.c.b16 %v1633, %v1629
    %v1810 = vpack.c.b16 %v1634, %v1630
    %v1811 = vpack.c.b16 %v1639, %v1635
    %v1812 = vpack.c.b16 %v1640, %v1636
    %v1813 = vpack.c.b16 %v1641, %v1637
    %v1814 = vpack.c.b16 %v1642, %v1638
    %v1815 = vpack.c.b16 %v1647, %v1643
    %v1816 = vpack.c.b16 %v1648, %v1644
    %v1817 = vpack.c.b16 %v1649, %v1645
    %v1818 = vpack.c.b16 %v1650, %v1646
    %v1819 = vpack.c.b16 %v1655, %v1651
    %v1820 = vpack.c.b16 %v1656, %v1652
    %v1821 = vpack.c.b16 %v1657, %v1653
    %v1822 = vpack.c.b16 %v1658, %v1654
    %v1823 = vpack.c.b16 %v1663, %v1659
    %v1824 = vpack.c.b16 %v1664, %v1660
    %v1825 = vpack.c.b16 %v1665, %v1661
    %v1826 = vpack.c.b16 %v1666, %v1662
    %v1827 = vpack.c.b16 %v1671, %v1667
    %v1828 = vpack.c.b16 %v1672, %v1668
    %v1829 = vpack.c.b16 %v1673, %v1669
    %v1830 = vpack.c.b16 %v1674, %v1670
    %v1831 = vpack.c.b16 %v1679, %v1675
    %v1832 = vpack.c.b16 %v1680, %v1676
    %v1833 = vpack.c.b16 %v1681, %v1677
    %v1834 = vpack.c.b16 %v1682, %v1678
    %v1835 = vpack.c.b16 %v1687, %v1683
    %v1836 = vpack.c.b16 %v1688, %v1684
    %v1837 = vpack.c.b16 %v1689, %v1685
    %v1838 = vpack.c.b16 %v1690, %v1686
    %v1839 = vpack.c.b16 %v1695, %v1691
    %v1840 = vpack.c.b16 %v1696, %v1692
    %v1841 = vpack.c.b16 %v1697, %v1693
    %v1842 = vpack.c.b16 %v1698, %v1694
    %v1843 = vpack.c.b16 %v1703, %v1699
    %v1844 = vpack.c.b16 %v1704, %v1700
    %v1845 = vpack.c.b16 %v1705, %v1701
    %v1846 = vpack.c.b16 %v1706, %v1702
    %v1847 = vpack.c.b16 %v1711, %v1707
    %v1848 = vpack.c.b16 %v1712, %v1708
    %v1849 = vpack.c.b16 %v1713, %v1709
    %v1850 = vpack.c.b16 %v1714, %v1710
    %v1851 = vpack.c.b16 %v1719, %v1715
    %v1852 = vpack.c.b16 %v1720, %v1716
    %v1853 = vpack.c.b16 %v1721, %v1717
    %v1854 = vpack.c.b16 %v1722, %v1718
    %v1855 = vpack.c.b16 %v1727, %v1723
    %v1856 = vpack.c.b16 %v1728, %v1724
    %v1857 = vpack.c.b16 %v1729, %v1725
    %v1858 = vpack.c.b16 %v1730, %v1726
    %1987 = vmatprep.subr.bf16.mxu0 %v1760
    %1988 = vmatpush1.bf16.msra.mxu0 %v1759
    %1989 = vmatprep.subr.bf16.mxu0 %v1756
    %1990 = vmatpush1.bf16.msra.mxu0 %v1755
    %1991 = vmatprep.subr.bf16.mxu0 %v1752
    %1992 = vmatpush1.bf16.msra.mxu0 %v1751
    %1993 = vmatprep.subr.bf16.mxu0 %v1748
    %1994 = vmatpush1.bf16.msra.mxu0 %v1747
    %1995 = vmatprep.subr.bf16.mxu0 %v1744
    %1996 = vmatpush1.bf16.msra.mxu0 %v1743
    %1997 = vmatprep.subr.bf16.mxu0 %v1740
    %1998 = vmatpush1.bf16.msra.mxu0 %v1739
    %1999 = vmatprep.subr.bf16.mxu0 %v1736
    %2000 = vmatpush1.bf16.msra.mxu0 %v1735
    %2001 = vmatprep.subr.bf16.mxu0 %v1732
    %2002 = vmatpush1.bf16.msra.mxu0 %v1731
    %2003 = vmatprep.subr.bf16.mxu0 %v1792
    %2004 = vmatpush2.bf16.msra.mxu0 %v1791
    %2005 = vmatprep.subr.bf16.mxu0 %v1788
    %2006 = vmatpush2.bf16.msra.mxu0 %v1787
    %2007 = vmatprep.subr.bf16.mxu0 %v1784
    %2008 = vmatpush2.bf16.msra.mxu0 %v1783
    %2009 = vmatprep.subr.bf16.mxu0 %v1780
    %2010 = vmatpush2.bf16.msra.mxu0 %v1779
    %2011 = vmatprep.subr.bf16.mxu0 %v1776
    %2012 = vmatpush2.bf16.msra.mxu0 %v1775
    %2013 = vmatprep.subr.bf16.mxu0 %v1772
    %2014 = vmatpush2.bf16.msra.mxu0 %v1771
    %2015 = vmatprep.subr.bf16.mxu0 %v1768
    %2016 = vmatpush2.bf16.msra.mxu0 %v1767
    %2017 = vmatprep.subr.bf16.mxu0 %v1764
    %2018 = vmatpush2.bf16.msra.mxu0 %v1763
    %2019 = vmatprep.mubr.bf16.mxu0 %v1215
    %2020 = vmatmul.mubr.bf16.gmra.mxu0 %v1214
    %v2021 = vpop.f32.mrf.mxu0
    %v2022 = vadd.f32 0.0, %v2021
    %v2023 = vpop.f32.mrf.mxu0
    %v2024 = vadd.f32 0.0, %v2023
    %v2025 = vpop.f32.mrf.mxu0
    %v2026 = vpop.f32.mrf.mxu0
    %2027 = vdwg.mxu0
    %2028 = vmatprep.subr.bf16.mxu0 %v1824
    %2029 = vmatpush1.bf16.msra.mxu0 %v1823
    %2030 = vmatprep.subr.bf16.mxu0 %v1820
    %2031 = vmatpush1.bf16.msra.mxu0 %v1819
    %2032 = vmatprep.subr.bf16.mxu0 %v1816
    %2033 = vmatpush1.bf16.msra.mxu0 %v1815
    %2034 = vmatprep.subr.bf16.mxu0 %v1812
    %2035 = vmatpush1.bf16.msra.mxu0 %v1811
    %2036 = vmatprep.subr.bf16.mxu0 %v1808
    %2037 = vmatpush1.bf16.msra.mxu0 %v1807
    %2038 = vmatprep.subr.bf16.mxu0 %v1804
    %2039 = vmatpush1.bf16.msra.mxu0 %v1803
    %2040 = vmatprep.subr.bf16.mxu0 %v1800
    %2041 = vmatpush1.bf16.msra.mxu0 %v1799
    %2042 = vmatprep.subr.bf16.mxu0 %v1796
    %2043 = vmatpush1.bf16.msra.mxu0 %v1795
    %2044 = vmatprep.subr.bf16.mxu0 %v1856
    %2045 = vmatpush2.bf16.msra.mxu0 %v1855
    %2046 = vmatprep.subr.bf16.mxu0 %v1852
    %2047 = vmatpush2.bf16.msra.mxu0 %v1851
    %2048 = vmatprep.subr.bf16.mxu0 %v1848
    %2049 = vmatpush2.bf16.msra.mxu0 %v1847
    %2050 = vmatprep.subr.bf16.mxu0 %v1844
    %2051 = vmatpush2.bf16.msra.mxu0 %v1843
    %2052 = vmatprep.subr.bf16.mxu0 %v1840
    %2053 = vmatpush2.bf16.msra.mxu0 %v1839
    %2054 = vmatprep.subr.bf16.mxu0 %v1836
    %2055 = vmatpush2.bf16.msra.mxu0 %v1835
    %2056 = vmatprep.subr.bf16.mxu0 %v1832
    %2057 = vmatpush2.bf16.msra.mxu0 %v1831
    %2058 = vmatprep.subr.bf16.mxu0 %v1828
    %2059 = vmatpush2.bf16.msra.mxu0 %v1827
    %2060 = vmatprep.mubr.bf16.mxu0 %v1217
    %2061 = vmatmul.mubr.bf16.gmra.mxu0 %v1216
    %v2062 = vpop.f32.mrf.mxu0
    %v2063 = vadd.f32 %v2022, %v2062
    %v2064 = vpop.f32.mrf.mxu0
    %v2065 = vadd.f32 %v2024, %v2064
    %v2066 = vpop.f32.mrf.mxu0
    %v2067 = vpop.f32.mrf.mxu0
    %2068 = vdwg.mxu0
    %2069 = vmatprep.subr.bf16.mxu0 %v1762
    %2070 = vmatpush1.bf16.msra.mxu0 %v1761
    %2071 = vmatprep.subr.bf16.mxu0 %v1758
    %2072 = vmatpush1.bf16.msra.mxu0 %v1757
    %2073 = vmatprep.subr.bf16.mxu0 %v1754
    %2074 = vmatpush1.bf16.msra.mxu0 %v1753
    %2075 = vmatprep.subr.bf16.mxu0 %v1750
    %2076 = vmatpush1.bf16.msra.mxu0 %v1749
    %2077 = vmatprep.subr.bf16.mxu0 %v1746
    %2078 = vmatpush1.bf16.msra.mxu0 %v1745
    %2079 = vmatprep.subr.bf16.mxu0 %v1742
    %2080 = vmatpush1.bf16.msra.mxu0 %v1741
    %2081 = vmatprep.subr.bf16.mxu0 %v1738
    %2082 = vmatpush1.bf16.msra.mxu0 %v1737
    %2083 = vmatprep.subr.bf16.mxu0 %v1734
    %2084 = vmatpush1.bf16.msra.mxu0 %v1733
    %2085 = vmatprep.subr.bf16.mxu0 %v1794
    %2086 = vmatpush2.bf16.msra.mxu0 %v1793
    %2087 = vmatprep.subr.bf16.mxu0 %v1790
    %2088 = vmatpush2.bf16.msra.mxu0 %v1789
    %2089 = vmatprep.subr.bf16.mxu0 %v1786
    %2090 = vmatpush2.bf16.msra.mxu0 %v1785
    %2091 = vmatprep.subr.bf16.mxu0 %v1782
    %2092 = vmatpush2.bf16.msra.mxu0 %v1781
    %2093 = vmatprep.subr.bf16.mxu0 %v1778
    %2094 = vmatpush2.bf16.msra.mxu0 %v1777
    %2095 = vmatprep.subr.bf16.mxu0 %v1774
    %2096 = vmatpush2.bf16.msra.mxu0 %v1773
    %2097 = vmatprep.subr.bf16.mxu0 %v1770
    %2098 = vmatpush2.bf16.msra.mxu0 %v1769
    %2099 = vmatprep.subr.bf16.mxu0 %v1766
    %2100 = vmatpush2.bf16.msra.mxu0 %v1765
    %2101 = vmatprep.mubr.bf16.mxu0 %v1215
    %2102 = vmatmul.mubr.bf16.gmra.mxu0 %v1214
    %v2103 = vpop.f32.mrf.mxu0
    %v2104 = vadd.f32 0.0, %v2103
    %v2105 = vpop.f32.mrf.mxu0
    %v2106 = vadd.f32 0.0, %v2105
    %v2107 = vpop.f32.mrf.mxu0
    %v2108 = vpop.f32.mrf.mxu0
    %2109 = vdwg.mxu0
    %2110 = vmatprep.subr.bf16.mxu0 %v1826
    %2111 = vmatpush1.bf16.msra.mxu0 %v1825
    %2112 = vmatprep.subr.bf16.mxu0 %v1822
    %2113 = vmatpush1.bf16.msra.mxu0 %v1821
    %2114 = vmatprep.subr.bf16.mxu0 %v1818
    %2115 = vmatpush1.bf16.msra.mxu0 %v1817
    %2116 = vmatprep.subr.bf16.mxu0 %v1814
    %2117 = vmatpush1.bf16.msra.mxu0 %v1813
    %2118 = vmatprep.subr.bf16.mxu0 %v1810
    %2119 = vmatpush1.bf16.msra.mxu0 %v1809
    %2120 = vmatprep.subr.bf16.mxu0 %v1806
    %2121 = vmatpush1.bf16.msra.mxu0 %v1805
    %2122 = vmatprep.subr.bf16.mxu0 %v1802
    %2123 = vmatpush1.bf16.msra.mxu0 %v1801
    %2124 = vmatprep.subr.bf16.mxu0 %v1798
    %2125 = vmatpush1.bf16.msra.mxu0 %v1797
    %2126 = vmatprep.subr.bf16.mxu0 %v1858
    %2127 = vmatpush2.bf16.msra.mxu0 %v1857
    %2128 = vmatprep.subr.bf16.mxu0 %v1854
    %2129 = vmatpush2.bf16.msra.mxu0 %v1853
    %2130 = vmatprep.subr.bf16.mxu0 %v1850
    %2131 = vmatpush2.bf16.msra.mxu0 %v1849
    %2132 = vmatprep.subr.bf16.mxu0 %v1846
    %2133 = vmatpush2.bf16.msra.mxu0 %v1845
    %2134 = vmatprep.subr.bf16.mxu0 %v1842
    %2135 = vmatpush2.bf16.msra.mxu0 %v1841
    %2136 = vmatprep.subr.bf16.mxu0 %v1838
    %2137 = vmatpush2.bf16.msra.mxu0 %v1837
    %2138 = vmatprep.subr.bf16.mxu0 %v1834
    %2139 = vmatpush2.bf16.msra.mxu0 %v1833
    %2140 = vmatprep.subr.bf16.mxu0 %v1830
    %2141 = vmatpush2.bf16.msra.mxu0 %v1829
    %2142 = vmatprep.mubr.bf16.mxu0 %v1217
    %2143 = vmatmul.mubr.bf16.gmra.mxu0 %v1216
    %v2144 = vpop.f32.mrf.mxu0
    %v2145 = vadd.f32 %v2104, %v2144
    %v2146 = vpop.f32.mrf.mxu0
    %v2147 = vadd.f32 %v2106, %v2146
    %v2148 = vpop.f32.mrf.mxu0
    %v2149 = vpop.f32.mrf.mxu0
    %2150 = vdwg.mxu0
    %s2151 = scalar_lea.vmem [#allocation7], 8
    %v2152 = vld [vmem:[%s2151] sm:$0xff]
    %v2153 = vrot.slane %v2063, 4
    %v2154 = vadd.f32 %v2063, %v2153
    %v2155 = vrot.slane %v2154, 2
    %v2156 = vadd.f32 %v2154, %v2155
    %v2157 = vrot.slane %v2156, 1
    %v2158 = vadd.f32 %v2156, %v2157
    %v2159 = vrot.slane %v2065, 4
    %v2160 = vadd.f32 %v2065, %v2159
    %v2161 = vrot.slane %v2160, 2
    %v2162 = vadd.f32 %v2160, %v2161
    %v2163 = vrot.slane %v2162, 1
    %v2164 = vadd.f32 %v2162, %v2163
    %v2165 = vrot.slane %v2145, 4
    %v2166 = vadd.f32 %v2145, %v2165
    %v2167 = vrot.slane %v2166, 2
    %v2168 = vadd.f32 %v2166, %v2167
    %v2169 = vrot.slane %v2168, 1
    %v2170 = vadd.f32 %v2168, %v2169
    %v2171 = vrot.slane %v2147, 4
    %v2172 = vadd.f32 %v2147, %v2171
    %v2173 = vrot.slane %v2172, 2
    %v2174 = vadd.f32 %v2172, %v2173
    %v2175 = vrot.slane %v2174, 1
    %v2176 = vadd.f32 %v2174, %v2175
    %v2177 = vmul.f32 %v2063, %v2063
    %v2178 = vmul.f32 %v2065, %v2065
    %v2179 = vmul.f32 %v2145, %v2145
    %v2180 = vmul.f32 %v2147, %v2147
    %v2181 = vrot.slane %v2177, 4
    %v2182 = vadd.f32 %v2177, %v2181
    %v2183 = vrot.slane %v2182, 2
    %v2184 = vadd.f32 %v2182, %v2183
    %v2185 = vrot.slane %v2184, 1
    %v2186 = vadd.f32 %v2184, %v2185
    %v2187 = vrot.slane %v2178, 4
    %v2188 = vadd.f32 %v2178, %v2187
    %v2189 = vrot.slane %v2188, 2
    %v2190 = vadd.f32 %v2188, %v2189
    %v2191 = vrot.slane %v2190, 1
    %v2192 = vadd.f32 %v2190, %v2191
    %v2193 = vrot.slane %v2179, 4
    %v2194 = vadd.f32 %v2179, %v2193
    %v2195 = vrot.slane %v2194, 2
    %v2196 = vadd.f32 %v2194, %v2195
    %v2197 = vrot.slane %v2196, 1
    %v2198 = vadd.f32 %v2196, %v2197
    %v2199 = vrot.slane %v2180, 4
    %v2200 = vadd.f32 %v2180, %v2199
    %v2201 = vrot.slane %v2200, 2
    %v2202 = vadd.f32 %v2200, %v2201
    %v2203 = vrot.slane %v2202, 1
    %v2204 = vadd.f32 %v2202, %v2203
    %v2205 = vmul.f32 %v2158, 0.125
    %v2206 = vmul.f32 %v2164, 0.125
    %v2207 = vmul.f32 %v2170, 0.125
    %v2208 = vmul.f32 %v2176, 0.125
    %v2209 = vmul.f32 %v2186, 0.125
    %v2210 = vmul.f32 %v2192, 0.125
    %v2211 = vmul.f32 %v2198, 0.125
    %v2212 = vmul.f32 %v2204, 0.125
    %v2213 = vmul.f32 %v2205, %v2205
    %v2214 = vmul.f32 %v2206, %v2206
    %v2215 = vmul.f32 %v2207, %v2207
    %v2216 = vmul.f32 %v2208, %v2208
    %v2217 = vsub.f32 %v2209, %v2213
    %v2218 = vsub.f32 %v2210, %v2214
    %v2219 = vsub.f32 %v2211, %v2215
    %v2220 = vsub.f32 %v2212, %v2216
    %v2221 = vmax.f32 %v2217, 0.0
    %v2222 = vmax.f32 %v2218, 0.0
    %v2223 = vmax.f32 %v2219, 0.0
    %v2224 = vmax.f32 %v2220, 0.0
    %v2225 = vadd.f32 %v2221, 1e-05
    %v2226 = vadd.f32 %v2222, 1e-05
    %v2227 = vadd.f32 %v2223, 1e-05
    %v2228 = vadd.f32 %v2224, 1e-05
    %v2229 = vrsqrt.pop %v2225
    %v2230 = vrsqrt.pop %v2226
    %v2231 = vrsqrt.pop %v2227
    %v2232 = vrsqrt.pop %v2228
    %v2237 = vcombine.low %v2229, %v2230
    %v2238 = vcombine.low %v2231, %v2232
    %v2240 = vunpack.c.l.s4 1966171168
    %v2241 = vunpack.c.0.s8 %v2240
    %v2242 = vlaneseq
    %v2243 = vshrl.u32 %v2242, 7
    %v2244 = vsub.s32 %v2241, %v2243
    %v2245 = vrot.slane %v2237, %v2244
    %v2247 = vunpack.c.l.s4 1966171168
    %v2248 = vunpack.c.0.s8 %v2247
    %v2249 = vlaneseq
    %v2250 = vshrl.u32 %v2249, 7
    %v2251 = vsub.s32 %v2248, %v2250
    %v2252 = vrot.slane %v2238, %v2251
    %v2253 = vcombine.low %v2245, %v2252
    %v2255 = vunpack.c.l.s4 1966171168
    %v2256 = vunpack.c.0.s8 %v2255
    %v2257 = vlaneseq
    %v2258 = vshrl.u32 %v2257, 7
    %v2259 = vsub.s32 %v2256, %v2258
    %v2260 = vrot.slane %v2253, %v2259
    %v2262 = vmul.f32 %v2152, %v2260
    %v2264 = vlaneseq
    %v2265 = vshrl.u32 %v2264, 7
    %v2266 = vsub.s32 0, %v2265
    %v2267 = vrot.slane %v2262, %v2266
    %v2268 = vlaneseq
    %v2269 = vshrl.u32 %v2268, 7
    %v2270 = vsub.s32 1, %v2269
    %v2271 = vrot.slane %v2262, %v2270
    %v2272 = vlaneseq
    %v2273 = vshrl.u32 %v2272, 7
    %v2274 = vsub.s32 2, %v2273
    %v2275 = vrot.slane %v2262, %v2274
    %v2276 = vlaneseq
    %v2277 = vshrl.u32 %v2276, 7
    %v2278 = vsub.s32 3, %v2277
    %v2279 = vrot.slane %v2262, %v2278
    %v2284 = vmul.f32 %v2205, %v2267
    %v2285 = vmul.f32 %v2206, %v2271
    %v2286 = vmul.f32 %v2207, %v2275
    %v2287 = vmul.f32 %v2208, %v2279
    %v2289 = vrot.slane %v2152, 4
    %v2295 = vcombine.low %v2284, %v2285
    %v2296 = vcombine.low %v2286, %v2287
    %v2298 = vunpack.c.l.s4 1966171168
    %v2299 = vunpack.c.0.s8 %v2298
    %v2300 = vlaneseq
    %v2301 = vshrl.u32 %v2300, 7
    %v2302 = vsub.s32 %v2299, %v2301
    %v2303 = vrot.slane %v2295, %v2302
    %v2305 = vunpack.c.l.s4 1966171168
    %v2306 = vunpack.c.0.s8 %v2305
    %v2307 = vlaneseq
    %v2308 = vshrl.u32 %v2307, 7
    %v2309 = vsub.s32 %v2306, %v2308
    %v2310 = vrot.slane %v2296, %v2309
    %v2311 = vcombine.low %v2303, %v2310
    %v2313 = vunpack.c.l.s4 1966171168
    %v2314 = vunpack.c.0.s8 %v2313
    %v2315 = vlaneseq
    %v2316 = vshrl.u32 %v2315, 7
    %v2317 = vsub.s32 %v2314, %v2316
    %v2318 = vrot.slane %v2311, %v2317
    %v2320 = vsub.f32 %v2289, %v2318
    %v2321 = vmul.f32 %v2063, %v2267
    %v2322 = vmul.f32 %v2065, %v2271
    %v2323 = vmul.f32 %v2145, %v2275
    %v2324 = vmul.f32 %v2147, %v2279
    %v2326 = vlaneseq
    %v2327 = vshrl.u32 %v2326, 7
    %v2328 = vsub.s32 0, %v2327
    %v2329 = vrot.slane %v2320, %v2328
    %v2330 = vlaneseq
    %v2331 = vshrl.u32 %v2330, 7
    %v2332 = vsub.s32 1, %v2331
    %v2333 = vrot.slane %v2320, %v2332
    %v2334 = vlaneseq
    %v2335 = vshrl.u32 %v2334, 7
    %v2336 = vsub.s32 2, %v2335
    %v2337 = vrot.slane %v2320, %v2336
    %v2338 = vlaneseq
    %v2339 = vshrl.u32 %v2338, 7
    %v2340 = vsub.s32 3, %v2339
    %v2341 = vrot.slane %v2320, %v2340
    %v2346 = vadd.f32 %v2321, %v2329
    %v2347 = vadd.f32 %v2322, %v2333
    %v2348 = vadd.f32 %v2323, %v2337
    %v2349 = vadd.f32 %v2324, %v2341
    %v2350 = vmax.f32 %v2346, 0.0
    %v2351 = vmax.f32 %v2347, 0.0
    %v2352 = vmax.f32 %v2348, 0.0
    %v2353 = vmax.f32 %v2349, 0.0
    %v2354 = vpack.c.bf16 %v2350, %v2350
    %v2355 = vpack.c.bf16 %v2351, %v2351
    %v2356 = vpack.c.bf16 %v2352, %v2352
    %v2357 = vpack.c.bf16 %v2353, %v2353
    %s2358 = scalar_lea.vmem [#allocation5], 2048
    %v2359 = vld [vmem:[%s2358] sm:$0xff]
    %v2360 = vld [vmem:[%s2358 + $0x8] sm:$0xff]
    %v2361 = vld [vmem:[%s2358 + $0x10] sm:$0xff]
    %v2362 = vld [vmem:[%s2358 + $0x18] sm:$0xff]
    %v2363 = vld [vmem:[%s2358 + $0x20] sm:$0xff]
    %v2364 = vld [vmem:[%s2358 + $0x28] sm:$0xff]
    %v2365 = vld [vmem:[%s2358 + $0x30] sm:$0xff]
    %v2366 = vld [vmem:[%s2358 + $0x38] sm:$0xff]
    %v2367 = vld [vmem:[%s2358 + $0x40] sm:$0xff]
    %v2368 = vld [vmem:[%s2358 + $0x48] sm:$0xff]
    %v2369 = vld [vmem:[%s2358 + $0x50] sm:$0xff]
    %v2370 = vld [vmem:[%s2358 + $0x58] sm:$0xff]
    %v2371 = vld [vmem:[%s2358 + $0x60] sm:$0xff]
    %v2372 = vld [vmem:[%s2358 + $0x68] sm:$0xff]
    %v2373 = vld [vmem:[%s2358 + $0x70] sm:$0xff]
    %v2374 = vld [vmem:[%s2358 + $0x78] sm:$0xff]
    %v2375 = vld [vmem:[%s2358 + $0x80] sm:$0xff]
    %v2376 = vld [vmem:[%s2358 + $0x88] sm:$0xff]
    %v2377 = vld [vmem:[%s2358 + $0x90] sm:$0xff]
    %v2378 = vld [vmem:[%s2358 + $0x98] sm:$0xff]
    %v2379 = vld [vmem:[%s2358 + $0xa0] sm:$0xff]
    %v2380 = vld [vmem:[%s2358 + $0xa8] sm:$0xff]
    %v2381 = vld [vmem:[%s2358 + $0xb0] sm:$0xff]
    %v2382 = vld [vmem:[%s2358 + $0xb8] sm:$0xff]
    %v2383 = vld [vmem:[%s2358 + $0xc0] sm:$0xff]
    %v2384 = vld [vmem:[%s2358 + $0xc8] sm:$0xff]
    %v2385 = vld [vmem:[%s2358 + $0xd0] sm:$0xff]
    %v2386 = vld [vmem:[%s2358 + $0xd8] sm:$0xff]
    %v2387 = vld [vmem:[%s2358 + $0xe0] sm:$0xff]
    %v2388 = vld [vmem:[%s2358 + $0xe8] sm:$0xff]
    %v2389 = vld [vmem:[%s2358 + $0xf0] sm:$0xff]
    %v2390 = vld [vmem:[%s2358 + $0xf8] sm:$0xff]
    %v2391 = vld [vmem:[%s2358 + $0x100] sm:$0xff]
    %v2392 = vld [vmem:[%s2358 + $0x108] sm:$0xff]
    %v2393 = vld [vmem:[%s2358 + $0x110] sm:$0xff]
    %v2394 = vld [vmem:[%s2358 + $0x118] sm:$0xff]
    %v2395 = vld [vmem:[%s2358 + $0x120] sm:$0xff]
    %v2396 = vld [vmem:[%s2358 + $0x128] sm:$0xff]
    %v2397 = vld [vmem:[%s2358 + $0x130] sm:$0xff]
    %v2398 = vld [vmem:[%s2358 + $0x138] sm:$0xff]
    %v2399 = vld [vmem:[%s2358 + $0x140] sm:$0xff]
    %v2400 = vld [vmem:[%s2358 + $0x148] sm:$0xff]
    %v2401 = vld [vmem:[%s2358 + $0x150] sm:$0xff]
    %v2402 = vld [vmem:[%s2358 + $0x158] sm:$0xff]
    %v2403 = vld [vmem:[%s2358 + $0x160] sm:$0xff]
    %v2404 = vld [vmem:[%s2358 + $0x168] sm:$0xff]
    %v2405 = vld [vmem:[%s2358 + $0x170] sm:$0xff]
    %v2406 = vld [vmem:[%s2358 + $0x178] sm:$0xff]
    %v2407 = vld [vmem:[%s2358 + $0x180] sm:$0xff]
    %v2408 = vld [vmem:[%s2358 + $0x188] sm:$0xff]
    %v2409 = vld [vmem:[%s2358 + $0x190] sm:$0xff]
    %v2410 = vld [vmem:[%s2358 + $0x198] sm:$0xff]
    %v2411 = vld [vmem:[%s2358 + $0x1a0] sm:$0xff]
    %v2412 = vld [vmem:[%s2358 + $0x1a8] sm:$0xff]
    %v2413 = vld [vmem:[%s2358 + $0x1b0] sm:$0xff]
    %v2414 = vld [vmem:[%s2358 + $0x1b8] sm:$0xff]
    %v2415 = vld [vmem:[%s2358 + $0x1c0] sm:$0xff]
    %v2416 = vld [vmem:[%s2358 + $0x1c8] sm:$0xff]
    %v2417 = vld [vmem:[%s2358 + $0x1d0] sm:$0xff]
    %v2418 = vld [vmem:[%s2358 + $0x1d8] sm:$0xff]
    %v2419 = vld [vmem:[%s2358 + $0x1e0] sm:$0xff]
    %v2420 = vld [vmem:[%s2358 + $0x1e8] sm:$0xff]
    %v2421 = vld [vmem:[%s2358 + $0x1f0] sm:$0xff]
    %v2422 = vld [vmem:[%s2358 + $0x1f8] sm:$0xff]
    %v2423 = vld [vmem:[%s2358 + $0x200] sm:$0xff]
    %v2424 = vld [vmem:[%s2358 + $0x208] sm:$0xff]
    %v2425 = vld [vmem:[%s2358 + $0x210] sm:$0xff]
    %v2426 = vld [vmem:[%s2358 + $0x218] sm:$0xff]
    %v2427 = vld [vmem:[%s2358 + $0x220] sm:$0xff]
    %v2428 = vld [vmem:[%s2358 + $0x228] sm:$0xff]
    %v2429 = vld [vmem:[%s2358 + $0x230] sm:$0xff]
    %v2430 = vld [vmem:[%s2358 + $0x238] sm:$0xff]
    %v2431 = vld [vmem:[%s2358 + $0x240] sm:$0xff]
    %v2432 = vld [vmem:[%s2358 + $0x248] sm:$0xff]
    %v2433 = vld [vmem:[%s2358 + $0x250] sm:$0xff]
    %v2434 = vld [vmem:[%s2358 + $0x258] sm:$0xff]
    %v2435 = vld [vmem:[%s2358 + $0x260] sm:$0xff]
    %v2436 = vld [vmem:[%s2358 + $0x268] sm:$0xff]
    %v2437 = vld [vmem:[%s2358 + $0x270] sm:$0xff]
    %v2438 = vld [vmem:[%s2358 + $0x278] sm:$0xff]
    %v2439 = vld [vmem:[%s2358 + $0x280] sm:$0xff]
    %v2440 = vld [vmem:[%s2358 + $0x288] sm:$0xff]
    %v2441 = vld [vmem:[%s2358 + $0x290] sm:$0xff]
    %v2442 = vld [vmem:[%s2358 + $0x298] sm:$0xff]
    %v2443 = vld [vmem:[%s2358 + $0x2a0] sm:$0xff]
    %v2444 = vld [vmem:[%s2358 + $0x2a8] sm:$0xff]
    %v2445 = vld [vmem:[%s2358 + $0x2b0] sm:$0xff]
    %v2446 = vld [vmem:[%s2358 + $0x2b8] sm:$0xff]
    %v2447 = vld [vmem:[%s2358 + $0x2c0] sm:$0xff]
    %v2448 = vld [vmem:[%s2358 + $0x2c8] sm:$0xff]
    %v2449 = vld [vmem:[%s2358 + $0x2d0] sm:$0xff]
    %v2450 = vld [vmem:[%s2358 + $0x2d8] sm:$0xff]
    %v2451 = vld [vmem:[%s2358 + $0x2e0] sm:$0xff]
    %v2452 = vld [vmem:[%s2358 + $0x2e8] sm:$0xff]
    %v2453 = vld [vmem:[%s2358 + $0x2f0] sm:$0xff]
    %v2454 = vld [vmem:[%s2358 + $0x2f8] sm:$0xff]
    %v2455 = vld [vmem:[%s2358 + $0x300] sm:$0xff]
    %v2456 = vld [vmem:[%s2358 + $0x308] sm:$0xff]
    %v2457 = vld [vmem:[%s2358 + $0x310] sm:$0xff]
    %v2458 = vld [vmem:[%s2358 + $0x318] sm:$0xff]
    %v2459 = vld [vmem:[%s2358 + $0x320] sm:$0xff]
    %v2460 = vld [vmem:[%s2358 + $0x328] sm:$0xff]
    %v2461 = vld [vmem:[%s2358 + $0x330] sm:$0xff]
    %v2462 = vld [vmem:[%s2358 + $0x338] sm:$0xff]
    %v2463 = vld [vmem:[%s2358 + $0x340] sm:$0xff]
    %v2464 = vld [vmem:[%s2358 + $0x348] sm:$0xff]
    %v2465 = vld [vmem:[%s2358 + $0x350] sm:$0xff]
    %v2466 = vld [vmem:[%s2358 + $0x358] sm:$0xff]
    %v2467 = vld [vmem:[%s2358 + $0x360] sm:$0xff]
    %v2468 = vld [vmem:[%s2358 + $0x368] sm:$0xff]
    %v2469 = vld [vmem:[%s2358 + $0x370] sm:$0xff]
    %v2470 = vld [vmem:[%s2358 + $0x378] sm:$0xff]
    %v2471 = vld [vmem:[%s2358 + $0x380] sm:$0xff]
    %v2472 = vld [vmem:[%s2358 + $0x388] sm:$0xff]
    %v2473 = vld [vmem:[%s2358 + $0x390] sm:$0xff]
    %v2474 = vld [vmem:[%s2358 + $0x398] sm:$0xff]
    %v2475 = vld [vmem:[%s2358 + $0x3a0] sm:$0xff]
    %v2476 = vld [vmem:[%s2358 + $0x3a8] sm:$0xff]
    %v2477 = vld [vmem:[%s2358 + $0x3b0] sm:$0xff]
    %v2478 = vld [vmem:[%s2358 + $0x3b8] sm:$0xff]
    %v2479 = vld [vmem:[%s2358 + $0x3c0] sm:$0xff]
    %v2480 = vld [vmem:[%s2358 + $0x3c8] sm:$0xff]
    %v2481 = vld [vmem:[%s2358 + $0x3d0] sm:$0xff]
    %v2482 = vld [vmem:[%s2358 + $0x3d8] sm:$0xff]
    %v2483 = vld [vmem:[%s2358 + $0x3e0] sm:$0xff]
    %v2484 = vld [vmem:[%s2358 + $0x3e8] sm:$0xff]
    %v2485 = vld [vmem:[%s2358 + $0x3f0] sm:$0xff]
    %v2486 = vld [vmem:[%s2358 + $0x3f8] sm:$0xff]
    %v2615 = vunpack.c.l.b16 %v2359
    %v2616 = vunpack.c.h.b16 %v2359
    %v2617 = vunpack.c.l.b16 %v2360
    %v2618 = vunpack.c.h.b16 %v2360
    %v2619 = vunpack.c.l.b16 %v2361
    %v2620 = vunpack.c.h.b16 %v2361
    %v2621 = vunpack.c.l.b16 %v2362
    %v2622 = vunpack.c.h.b16 %v2362
    %v2623 = vunpack.c.l.b16 %v2363
    %v2624 = vunpack.c.h.b16 %v2363
    %v2625 = vunpack.c.l.b16 %v2364
    %v2626 = vunpack.c.h.b16 %v2364
    %v2627 = vunpack.c.l.b16 %v2365
    %v2628 = vunpack.c.h.b16 %v2365
    %v2629 = vunpack.c.l.b16 %v2366
    %v2630 = vunpack.c.h.b16 %v2366
    %v2631 = vunpack.c.l.b16 %v2367
    %v2632 = vunpack.c.h.b16 %v2367
    %v2633 = vunpack.c.l.b16 %v2368
    %v2634 = vunpack.c.h.b16 %v2368
    %v2635 = vunpack.c.l.b16 %v2369
    %v2636 = vunpack.c.h.b16 %v2369
    %v2637 = vunpack.c.l.b16 %v2370
    %v2638 = vunpack.c.h.b16 %v2370
    %v2639 = vunpack.c.l.b16 %v2371
    %v2640 = vunpack.c.h.b16 %v2371
    %v2641 = vunpack.c.l.b16 %v2372
    %v2642 = vunpack.c.h.b16 %v2372
    %v2643 = vunpack.c.l.b16 %v2373
    %v2644 = vunpack.c.h.b16 %v2373
    %v2645 = vunpack.c.l.b16 %v2374
    %v2646 = vunpack.c.h.b16 %v2374
    %v2647 = vunpack.c.l.b16 %v2375
    %v2648 = vunpack.c.h.b16 %v2375
    %v2649 = vunpack.c.l.b16 %v2376
    %v2650 = vunpack.c.h.b16 %v2376
    %v2651 = vunpack.c.l.b16 %v2377
    %v2652 = vunpack.c.h.b16 %v2377
    %v2653 = vunpack.c.l.b16 %v2378
    %v2654 = vunpack.c.h.b16 %v2378
    %v2655 = vunpack.c.l.b16 %v2379
    %v2656 = vunpack.c.h.b16 %v2379
    %v2657 = vunpack.c.l.b16 %v2380
    %v2658 = vunpack.c.h.b16 %v2380
    %v2659 = vunpack.c.l.b16 %v2381
    %v2660 = vunpack.c.h.b16 %v2381
    %v2661 = vunpack.c.l.b16 %v2382
    %v2662 = vunpack.c.h.b16 %v2382
    %v2663 = vunpack.c.l.b16 %v2383
    %v2664 = vunpack.c.h.b16 %v2383
    %v2665 = vunpack.c.l.b16 %v2384
    %v2666 = vunpack.c.h.b16 %v2384
    %v2667 = vunpack.c.l.b16 %v2385
    %v2668 = vunpack.c.h.b16 %v2385
    %v2669 = vunpack.c.l.b16 %v2386
    %v2670 = vunpack.c.h.b16 %v2386
    %v2671 = vunpack.c.l.b16 %v2387
    %v2672 = vunpack.c.h.b16 %v2387
    %v2673 = vunpack.c.l.b16 %v2388
    %v2674 = vunpack.c.h.b16 %v2388
    %v2675 = vunpack.c.l.b16 %v2389
    %v2676 = vunpack.c.h.b16 %v2389
    %v2677 = vunpack.c.l.b16 %v2390
    %v2678 = vunpack.c.h.b16 %v2390
    %v2679 = vunpack.c.l.b16 %v2391
    %v2680 = vunpack.c.h.b16 %v2391
    %v2681 = vunpack.c.l.b16 %v2392
    %v2682 = vunpack.c.h.b16 %v2392
    %v2683 = vunpack.c.l.b16 %v2393
    %v2684 = vunpack.c.h.b16 %v2393
    %v2685 = vunpack.c.l.b16 %v2394
    %v2686 = vunpack.c.h.b16 %v2394
    %v2687 = vunpack.c.l.b16 %v2395
    %v2688 = vunpack.c.h.b16 %v2395
    %v2689 = vunpack.c.l.b16 %v2396
    %v2690 = vunpack.c.h.b16 %v2396
    %v2691 = vunpack.c.l.b16 %v2397
    %v2692 = vunpack.c.h.b16 %v2397
    %v2693 = vunpack.c.l.b16 %v2398
    %v2694 = vunpack.c.h.b16 %v2398
    %v2695 = vunpack.c.l.b16 %v2399
    %v2696 = vunpack.c.h.b16 %v2399
    %v2697 = vunpack.c.l.b16 %v2400
    %v2698 = vunpack.c.h.b16 %v2400
    %v2699 = vunpack.c.l.b16 %v2401
    %v2700 = vunpack.c.h.b16 %v2401
    %v2701 = vunpack.c.l.b16 %v2402
    %v2702 = vunpack.c.h.b16 %v2402
    %v2703 = vunpack.c.l.b16 %v2403
    %v2704 = vunpack.c.h.b16 %v2403
    %v2705 = vunpack.c.l.b16 %v2404
    %v2706 = vunpack.c.h.b16 %v2404
    %v2707 = vunpack.c.l.b16 %v2405
    %v2708 = vunpack.c.h.b16 %v2405
    %v2709 = vunpack.c.l.b16 %v2406
    %v2710 = vunpack.c.h.b16 %v2406
    %v2711 = vunpack.c.l.b16 %v2407
    %v2712 = vunpack.c.h.b16 %v2407
    %v2713 = vunpack.c.l.b16 %v2408
    %v2714 = vunpack.c.h.b16 %v2408
    %v2715 = vunpack.c.l.b16 %v2409
    %v2716 = vunpack.c.h.b16 %v2409
    %v2717 = vunpack.c.l.b16 %v2410
    %v2718 = vunpack.c.h.b16 %v2410
    %v2719 = vunpack.c.l.b16 %v2411
    %v2720 = vunpack.c.h.b16 %v2411
    %v2721 = vunpack.c.l.b16 %v2412
    %v2722 = vunpack.c.h.b16 %v2412
    %v2723 = vunpack.c.l.b16 %v2413
    %v2724 = vunpack.c.h.b16 %v2413
    %v2725 = vunpack.c.l.b16 %v2414
    %v2726 = vunpack.c.h.b16 %v2414
    %v2727 = vunpack.c.l.b16 %v2415
    %v2728 = vunpack.c.h.b16 %v2415
    %v2729 = vunpack.c.l.b16 %v2416
    %v2730 = vunpack.c.h.b16 %v2416
    %v2731 = vunpack.c.l.b16 %v2417
    %v2732 = vunpack.c.h.b16 %v2417
    %v2733 = vunpack.c.l.b16 %v2418
    %v2734 = vunpack.c.h.b16 %v2418
    %v2735 = vunpack.c.l.b16 %v2419
    %v2736 = vunpack.c.h.b16 %v2419
    %v2737 = vunpack.c.l.b16 %v2420
    %v2738 = vunpack.c.h.b16 %v2420
    %v2739 = vunpack.c.l.b16 %v2421
    %v2740 = vunpack.c.h.b16 %v2421
    %v2741 = vunpack.c.l.b16 %v2422
    %v2742 = vunpack.c.h.b16 %v2422
    %v2743 = vunpack.c.l.b16 %v2423
    %v2744 = vunpack.c.h.b16 %v2423
    %v2745 = vunpack.c.l.b16 %v2424
    %v2746 = vunpack.c.h.b16 %v2424
    %v2747 = vunpack.c.l.b16 %v2425
    %v2748 = vunpack.c.h.b16 %v2425
    %v2749 = vunpack.c.l.b16 %v2426
    %v2750 = vunpack.c.h.b16 %v2426
    %v2751 = vunpack.c.l.b16 %v2427
    %v2752 = vunpack.c.h.b16 %v2427
    %v2753 = vunpack.c.l.b16 %v2428
    %v2754 = vunpack.c.h.b16 %v2428
    %v2755 = vunpack.c.l.b16 %v2429
    %v2756 = vunpack.c.h.b16 %v2429
    %v2757 = vunpack.c.l.b16 %v2430
    %v2758 = vunpack.c.h.b16 %v2430
    %v2759 = vunpack.c.l.b16 %v2431
    %v2760 = vunpack.c.h.b16 %v2431
    %v2761 = vunpack.c.l.b16 %v2432
    %v2762 = vunpack.c.h.b16 %v2432
    %v2763 = vunpack.c.l.b16 %v2433
    %v2764 = vunpack.c.h.b16 %v2433
    %v2765 = vunpack.c.l.b16 %v2434
    %v2766 = vunpack.c.h.b16 %v2434
    %v2767 = vunpack.c.l.b16 %v2435
    %v2768 = vunpack.c.h.b16 %v2435
    %v2769 = vunpack.c.l.b16 %v2436
    %v2770 = vunpack.c.h.b16 %v2436
    %v2771 = vunpack.c.l.b16 %v2437
    %v2772 = vunpack.c.h.b16 %v2437
    %v2773 = vunpack.c.l.b16 %v2438
    %v2774 = vunpack.c.h.b16 %v2438
    %v2775 = vunpack.c.l.b16 %v2439
    %v2776 = vunpack.c.h.b16 %v2439
    %v2777 = vunpack.c.l.b16 %v2440
    %v2778 = vunpack.c.h.b16 %v2440
    %v2779 = vunpack.c.l.b16 %v2441
    %v2780 = vunpack.c.h.b16 %v2441
    %v2781 = vunpack.c.l.b16 %v2442
    %v2782 = vunpack.c.h.b16 %v2442
    %v2783 = vunpack.c.l.b16 %v2443
    %v2784 = vunpack.c.h.b16 %v2443
    %v2785 = vunpack.c.l.b16 %v2444
    %v2786 = vunpack.c.h.b16 %v2444
    %v2787 = vunpack.c.l.b16 %v2445
    %v2788 = vunpack.c.h.b16 %v2445
    %v2789 = vunpack.c.l.b16 %v2446
    %v2790 = vunpack.c.h.b16 %v2446
    %v2791 = vunpack.c.l.b16 %v2447
    %v2792 = vunpack.c.h.b16 %v2447
    %v2793 = vunpack.c.l.b16 %v2448
    %v2794 = vunpack.c.h.b16 %v2448
    %v2795 = vunpack.c.l.b16 %v2449
    %v2796 = vunpack.c.h.b16 %v2449
    %v2797 = vunpack.c.l.b16 %v2450
    %v2798 = vunpack.c.h.b16 %v2450
    %v2799 = vunpack.c.l.b16 %v2451
    %v2800 = vunpack.c.h.b16 %v2451
    %v2801 = vunpack.c.l.b16 %v2452
    %v2802 = vunpack.c.h.b16 %v2452
    %v2803 = vunpack.c.l.b16 %v2453
    %v2804 = vunpack.c.h.b16 %v2453
    %v2805 = vunpack.c.l.b16 %v2454
    %v2806 = vunpack.c.h.b16 %v2454
    %v2807 = vunpack.c.l.b16 %v2455
    %v2808 = vunpack.c.h.b16 %v2455
    %v2809 = vunpack.c.l.b16 %v2456
    %v2810 = vunpack.c.h.b16 %v2456
    %v2811 = vunpack.c.l.b16 %v2457
    %v2812 = vunpack.c.h.b16 %v2457
    %v2813 = vunpack.c.l.b16 %v2458
    %v2814 = vunpack.c.h.b16 %v2458
    %v2815 = vunpack.c.l.b16 %v2459
    %v2816 = vunpack.c.h.b16 %v2459
    %v2817 = vunpack.c.l.b16 %v2460
    %v2818 = vunpack.c.h.b16 %v2460
    %v2819 = vunpack.c.l.b16 %v2461
    %v2820 = vunpack.c.h.b16 %v2461
    %v2821 = vunpack.c.l.b16 %v2462
    %v2822 = vunpack.c.h.b16 %v2462
    %v2823 = vunpack.c.l.b16 %v2463
    %v2824 = vunpack.c.h.b16 %v2463
    %v2825 = vunpack.c.l.b16 %v2464
    %v2826 = vunpack.c.h.b16 %v2464
    %v2827 = vunpack.c.l.b16 %v2465
    %v2828 = vunpack.c.h.b16 %v2465
    %v2829 = vunpack.c.l.b16 %v2466
    %v2830 = vunpack.c.h.b16 %v2466
    %v2831 = vunpack.c.l.b16 %v2467
    %v2832 = vunpack.c.h.b16 %v2467
    %v2833 = vunpack.c.l.b16 %v2468
    %v2834 = vunpack.c.h.b16 %v2468
    %v2835 = vunpack.c.l.b16 %v2469
    %v2836 = vunpack.c.h.b16 %v2469
    %v2837 = vunpack.c.l.b16 %v2470
    %v2838 = vunpack.c.h.b16 %v2470
    %v2839 = vunpack.c.l.b16 %v2471
    %v2840 = vunpack.c.h.b16 %v2471
    %v2841 = vunpack.c.l.b16 %v2472
    %v2842 = vunpack.c.h.b16 %v2472
    %v2843 = vunpack.c.l.b16 %v2473
    %v2844 = vunpack.c.h.b16 %v2473
    %v2845 = vunpack.c.l.b16 %v2474
    %v2846 = vunpack.c.h.b16 %v2474
    %v2847 = vunpack.c.l.b16 %v2475
    %v2848 = vunpack.c.h.b16 %v2475
    %v2849 = vunpack.c.l.b16 %v2476
    %v2850 = vunpack.c.h.b16 %v2476
    %v2851 = vunpack.c.l.b16 %v2477
    %v2852 = vunpack.c.h.b16 %v2477
    %v2853 = vunpack.c.l.b16 %v2478
    %v2854 = vunpack.c.h.b16 %v2478
    %v2855 = vunpack.c.l.b16 %v2479
    %v2856 = vunpack.c.h.b16 %v2479
    %v2857 = vunpack.c.l.b16 %v2480
    %v2858 = vunpack.c.h.b16 %v2480
    %v2859 = vunpack.c.l.b16 %v2481
    %v2860 = vunpack.c.h.b16 %v2481
    %v2861 = vunpack.c.l.b16 %v2482
    %v2862 = vunpack.c.h.b16 %v2482
    %v2863 = vunpack.c.l.b16 %v2483
    %v2864 = vunpack.c.h.b16 %v2483
    %v2865 = vunpack.c.l.b16 %v2484
    %v2866 = vunpack.c.h.b16 %v2484
    %v2867 = vunpack.c.l.b16 %v2485
    %v2868 = vunpack.c.h.b16 %v2485
    %v2869 = vunpack.c.l.b16 %v2486
    %v2870 = vunpack.c.h.b16 %v2486
    %v2871 = vpack.c.b16 %v2619, %v2615
    %v2872 = vpack.c.b16 %v2620, %v2616
    %v2873 = vpack.c.b16 %v2621, %v2617
    %v2874 = vpack.c.b16 %v2622, %v2618
    %v2875 = vpack.c.b16 %v2627, %v2623
    %v2876 = vpack.c.b16 %v2628, %v2624
    %v2877 = vpack.c.b16 %v2629, %v2625
    %v2878 = vpack.c.b16 %v2630, %v2626
    %v2879 = vpack.c.b16 %v2635, %v2631
    %v2880 = vpack.c.b16 %v2636, %v2632
    %v2881 = vpack.c.b16 %v2637, %v2633
    %v2882 = vpack.c.b16 %v2638, %v2634
    %v2883 = vpack.c.b16 %v2643, %v2639
    %v2884 = vpack.c.b16 %v2644, %v2640
    %v2885 = vpack.c.b16 %v2645, %v2641
    %v2886 = vpack.c.b16 %v2646, %v2642
    %v2887 = vpack.c.b16 %v2651, %v2647
    %v2888 = vpack.c.b16 %v2652, %v2648
    %v2889 = vpack.c.b16 %v2653, %v2649
    %v2890 = vpack.c.b16 %v2654, %v2650
    %v2891 = vpack.c.b16 %v2659, %v2655
    %v2892 = vpack.c.b16 %v2660, %v2656
    %v2893 = vpack.c.b16 %v2661, %v2657
    %v2894 = vpack.c.b16 %v2662, %v2658
    %v2895 = vpack.c.b16 %v2667, %v2663
    %v2896 = vpack.c.b16 %v2668, %v2664
    %v2897 = vpack.c.b16 %v2669, %v2665
    %v2898 = vpack.c.b16 %v2670, %v2666
    %v2899 = vpack.c.b16 %v2675, %v2671
    %v2900 = vpack.c.b16 %v2676, %v2672
    %v2901 = vpack.c.b16 %v2677, %v2673
    %v2902 = vpack.c.b16 %v2678, %v2674
    %v2903 = vpack.c.b16 %v2683, %v2679
    %v2904 = vpack.c.b16 %v2684, %v2680
    %v2905 = vpack.c.b16 %v2685, %v2681
    %v2906 = vpack.c.b16 %v2686, %v2682
    %v2907 = vpack.c.b16 %v2691, %v2687
    %v2908 = vpack.c.b16 %v2692, %v2688
    %v2909 = vpack.c.b16 %v2693, %v2689
    %v2910 = vpack.c.b16 %v2694, %v2690
    %v2911 = vpack.c.b16 %v2699, %v2695
    %v2912 = vpack.c.b16 %v2700, %v2696
    %v2913 = vpack.c.b16 %v2701, %v2697
    %v2914 = vpack.c.b16 %v2702, %v2698
    %v2915 = vpack.c.b16 %v2707, %v2703
    %v2916 = vpack.c.b16 %v2708, %v2704
    %v2917 = vpack.c.b16 %v2709, %v2705
    %v2918 = vpack.c.b16 %v2710, %v2706
    %v2919 = vpack.c.b16 %v2715, %v2711
    %v2920 = vpack.c.b16 %v2716, %v2712
    %v2921 = vpack.c.b16 %v2717, %v2713
    %v2922 = vpack.c.b16 %v2718, %v2714
    %v2923 = vpack.c.b16 %v2723, %v2719
    %v2924 = vpack.c.b16 %v2724, %v2720
    %v2925 = vpack.c.b16 %v2725, %v2721
    %v2926 = vpack.c.b16 %v2726, %v2722
    %v2927 = vpack.c.b16 %v2731, %v2727
    %v2928 = vpack.c.b16 %v2732, %v2728
    %v2929 = vpack.c.b16 %v2733, %v2729
    %v2930 = vpack.c.b16 %v2734, %v2730
    %v2931 = vpack.c.b16 %v2739, %v2735
    %v2932 = vpack.c.b16 %v2740, %v2736
    %v2933 = vpack.c.b16 %v2741, %v2737
    %v2934 = vpack.c.b16 %v2742, %v2738
    %v2935 = vpack.c.b16 %v2747, %v2743
    %v2936 = vpack.c.b16 %v2748, %v2744
    %v2937 = vpack.c.b16 %v2749, %v2745
    %v2938 = vpack.c.b16 %v2750, %v2746
    %v2939 = vpack.c.b16 %v2755, %v2751
    %v2940 = vpack.c.b16 %v2756, %v2752
    %v2941 = vpack.c.b16 %v2757, %v2753
    %v2942 = vpack.c.b16 %v2758, %v2754
    %v2943 = vpack.c.b16 %v2763, %v2759
    %v2944 = vpack.c.b16 %v2764, %v2760
    %v2945 = vpack.c.b16 %v2765, %v2761
    %v2946 = vpack.c.b16 %v2766, %v2762
    %v2947 = vpack.c.b16 %v2771, %v2767
    %v2948 = vpack.c.b16 %v2772, %v2768
    %v2949 = vpack.c.b16 %v2773, %v2769
    %v2950 = vpack.c.b16 %v2774, %v2770
    %v2951 = vpack.c.b16 %v2779, %v2775
    %v2952 = vpack.c.b16 %v2780, %v2776
    %v2953 = vpack.c.b16 %v2781, %v2777
    %v2954 = vpack.c.b16 %v2782, %v2778
    %v2955 = vpack.c.b16 %v2787, %v2783
    %v2956 = vpack.c.b16 %v2788, %v2784
    %v2957 = vpack.c.b16 %v2789, %v2785
    %v2958 = vpack.c.b16 %v2790, %v2786
    %v2959 = vpack.c.b16 %v2795, %v2791
    %v2960 = vpack.c.b16 %v2796, %v2792
    %v2961 = vpack.c.b16 %v2797, %v2793
    %v2962 = vpack.c.b16 %v2798, %v2794
    %v2963 = vpack.c.b16 %v2803, %v2799
    %v2964 = vpack.c.b16 %v2804, %v2800
    %v2965 = vpack.c.b16 %v2805, %v2801
    %v2966 = vpack.c.b16 %v2806, %v2802
    %v2967 = vpack.c.b16 %v2811, %v2807
    %v2968 = vpack.c.b16 %v2812, %v2808
    %v2969 = vpack.c.b16 %v2813, %v2809
    %v2970 = vpack.c.b16 %v2814, %v2810
    %v2971 = vpack.c.b16 %v2819, %v2815
    %v2972 = vpack.c.b16 %v2820, %v2816
    %v2973 = vpack.c.b16 %v2821, %v2817
    %v2974 = vpack.c.b16 %v2822, %v2818
    %v2975 = vpack.c.b16 %v2827, %v2823
    %v2976 = vpack.c.b16 %v2828, %v2824
    %v2977 = vpack.c.b16 %v2829, %v2825
    %v2978 = vpack.c.b16 %v2830, %v2826
    %v2979 = vpack.c.b16 %v2835, %v2831
    %v2980 = vpack.c.b16 %v2836, %v2832
    %v2981 = vpack.c.b16 %v2837, %v2833
    %v2982 = vpack.c.b16 %v2838, %v2834
    %v2983 = vpack.c.b16 %v2843, %v2839
    %v2984 = vpack.c.b16 %v2844, %v2840
    %v2985 = vpack.c.b16 %v2845, %v2841
    %v2986 = vpack.c.b16 %v2846, %v2842
    %v2987 = vpack.c.b16 %v2851, %v2847
    %v2988 = vpack.c.b16 %v2852, %v2848
    %v2989 = vpack.c.b16 %v2853, %v2849
    %v2990 = vpack.c.b16 %v2854, %v2850
    %v2991 = vpack.c.b16 %v2859, %v2855
    %v2992 = vpack.c.b16 %v2860, %v2856
    %v2993 = vpack.c.b16 %v2861, %v2857
    %v2994 = vpack.c.b16 %v2862, %v2858
    %v2995 = vpack.c.b16 %v2867, %v2863
    %v2996 = vpack.c.b16 %v2868, %v2864
    %v2997 = vpack.c.b16 %v2869, %v2865
    %v2998 = vpack.c.b16 %v2870, %v2866
    %3127 = vmatprep.subr.bf16.mxu0 %v2900
    %3128 = vmatpush1.bf16.msra.mxu0 %v2899
    %3129 = vmatprep.subr.bf16.mxu0 %v2896
    %3130 = vmatpush1.bf16.msra.mxu0 %v2895
    %3131 = vmatprep.subr.bf16.mxu0 %v2892
    %3132 = vmatpush1.bf16.msra.mxu0 %v2891
    %3133 = vmatprep.subr.bf16.mxu0 %v2888
    %3134 = vmatpush1.bf16.msra.mxu0 %v2887
    %3135 = vmatprep.subr.bf16.mxu0 %v2884
    %3136 = vmatpush1.bf16.msra.mxu0 %v2883
    %3137 = vmatprep.subr.bf16.mxu0 %v2880
    %3138 = vmatpush1.bf16.msra.mxu0 %v2879
    %3139 = vmatprep.subr.bf16.mxu0 %v2876
    %3140 = vmatpush1.bf16.msra.mxu0 %v2875
    %3141 = vmatprep.subr.bf16.mxu0 %v2872
    %3142 = vmatpush1.bf16.msra.mxu0 %v2871
    %3143 = vmatprep.subr.bf16.mxu0 %v2932
    %3144 = vmatpush2.bf16.msra.mxu0 %v2931
    %3145 = vmatprep.subr.bf16.mxu0 %v2928
    %3146 = vmatpush2.bf16.msra.mxu0 %v2927
    %3147 = vmatprep.subr.bf16.mxu0 %v2924
    %3148 = vmatpush2.bf16.msra.mxu0 %v2923
    %3149 = vmatprep.subr.bf16.mxu0 %v2920
    %3150 = vmatpush2.bf16.msra.mxu0 %v2919
    %3151 = vmatprep.subr.bf16.mxu0 %v2916
    %3152 = vmatpush2.bf16.msra.mxu0 %v2915
    %3153 = vmatprep.subr.bf16.mxu0 %v2912
    %3154 = vmatpush2.bf16.msra.mxu0 %v2911
    %3155 = vmatprep.subr.bf16.mxu0 %v2908
    %3156 = vmatpush2.bf16.msra.mxu0 %v2907
    %3157 = vmatprep.subr.bf16.mxu0 %v2904
    %3158 = vmatpush2.bf16.msra.mxu0 %v2903
    %3159 = vmatprep.mubr.bf16.mxu0 %v2355
    %3160 = vmatmul.mubr.bf16.gmra.mxu0 %v2354
    %v3161 = vpop.f32.mrf.mxu0
    %v3162 = vadd.f32 0.0, %v3161
    %v3163 = vpop.f32.mrf.mxu0
    %v3164 = vadd.f32 0.0, %v3163
    %v3165 = vpop.f32.mrf.mxu0
    %v3166 = vpop.f32.mrf.mxu0
    %3167 = vdwg.mxu0
    %3168 = vmatprep.subr.bf16.mxu0 %v2964
    %3169 = vmatpush1.bf16.msra.mxu0 %v2963
    %3170 = vmatprep.subr.bf16.mxu0 %v2960
    %3171 = vmatpush1.bf16.msra.mxu0 %v2959
    %3172 = vmatprep.subr.bf16.mxu0 %v2956
    %3173 = vmatpush1.bf16.msra.mxu0 %v2955
    %3174 = vmatprep.subr.bf16.mxu0 %v2952
    %3175 = vmatpush1.bf16.msra.mxu0 %v2951
    %3176 = vmatprep.subr.bf16.mxu0 %v2948
    %3177 = vmatpush1.bf16.msra.mxu0 %v2947
    %3178 = vmatprep.subr.bf16.mxu0 %v2944
    %3179 = vmatpush1.bf16.msra.mxu0 %v2943
    %3180 = vmatprep.subr.bf16.mxu0 %v2940
    %3181 = vmatpush1.bf16.msra.mxu0 %v2939
    %3182 = vmatprep.subr.bf16.mxu0 %v2936
    %3183 = vmatpush1.bf16.msra.mxu0 %v2935
    %3184 = vmatprep.subr.bf16.mxu0 %v2996
    %3185 = vmatpush2.bf16.msra.mxu0 %v2995
    %3186 = vmatprep.subr.bf16.mxu0 %v2992
    %3187 = vmatpush2.bf16.msra.mxu0 %v2991
    %3188 = vmatprep.subr.bf16.mxu0 %v2988
    %3189 = vmatpush2.bf16.msra.mxu0 %v2987
    %3190 = vmatprep.subr.bf16.mxu0 %v2984
    %3191 = vmatpush2.bf16.msra.mxu0 %v2983
    %3192 = vmatprep.subr.bf16.mxu0 %v2980
    %3193 = vmatpush2.bf16.msra.mxu0 %v2979
    %3194 = vmatprep.subr.bf16.mxu0 %v2976
    %3195 = vmatpush2.bf16.msra.mxu0 %v2975
    %3196 = vmatprep.subr.bf16.mxu0 %v2972
    %3197 = vmatpush2.bf16.msra.mxu0 %v2971
    %3198 = vmatprep.subr.bf16.mxu0 %v2968
    %3199 = vmatpush2.bf16.msra.mxu0 %v2967
    %3200 = vmatprep.mubr.bf16.mxu0 %v2357
    %3201 = vmatmul.mubr.bf16.gmra.mxu0 %v2356
    %v3202 = vpop.f32.mrf.mxu0
    %v3203 = vadd.f32 %v3162, %v3202
    %v3204 = vpop.f32.mrf.mxu0
    %v3205 = vadd.f32 %v3164, %v3204
    %v3206 = vpop.f32.mrf.mxu0
    %v3207 = vpop.f32.mrf.mxu0
    %3208 = vdwg.mxu0
    %3209 = vmatprep.subr.bf16.mxu0 %v2902
    %3210 = vmatpush1.bf16.msra.mxu0 %v2901
    %3211 = vmatprep.subr.bf16.mxu0 %v2898
    %3212 = vmatpush1.bf16.msra.mxu0 %v2897
    %3213 = vmatprep.subr.bf16.mxu0 %v2894
    %3214 = vmatpush1.bf16.msra.mxu0 %v2893
    %3215 = vmatprep.subr.bf16.mxu0 %v2890
    %3216 = vmatpush1.bf16.msra.mxu0 %v2889
    %3217 = vmatprep.subr.bf16.mxu0 %v2886
    %3218 = vmatpush1.bf16.msra.mxu0 %v2885
    %3219 = vmatprep.subr.bf16.mxu0 %v2882
    %3220 = vmatpush1.bf16.msra.mxu0 %v2881
    %3221 = vmatprep.subr.bf16.mxu0 %v2878
    %3222 = vmatpush1.bf16.msra.mxu0 %v2877
    %3223 = vmatprep.subr.bf16.mxu0 %v2874
    %3224 = vmatpush1.bf16.msra.mxu0 %v2873
    %3225 = vmatprep.subr.bf16.mxu0 %v2934
    %3226 = vmatpush2.bf16.msra.mxu0 %v2933
    %3227 = vmatprep.subr.bf16.mxu0 %v2930
    %3228 = vmatpush2.bf16.msra.mxu0 %v2929
    %3229 = vmatprep.subr.bf16.mxu0 %v2926
    %3230 = vmatpush2.bf16.msra.mxu0 %v2925
    %3231 = vmatprep.subr.bf16.mxu0 %v2922
    %3232 = vmatpush2.bf16.msra.mxu0 %v2921
    %3233 = vmatprep.subr.bf16.mxu0 %v2918
    %3234 = vmatpush2.bf16.msra.mxu0 %v2917
    %3235 = vmatprep.subr.bf16.mxu0 %v2914
    %3236 = vmatpush2.bf16.msra.mxu0 %v2913
    %3237 = vmatprep.subr.bf16.mxu0 %v2910
    %3238 = vmatpush2.bf16.msra.mxu0 %v2909
    %3239 = vmatprep.subr.bf16.mxu0 %v2906
    %3240 = vmatpush2.bf16.msra.mxu0 %v2905
    %3241 = vmatprep.mubr.bf16.mxu0 %v2355
    %3242 = vmatmul.mubr.bf16.gmra.mxu0 %v2354
    %v3243 = vpop.f32.mrf.mxu0
    %v3244 = vadd.f32 0.0, %v3243
    %v3245 = vpop.f32.mrf.mxu0
    %v3246 = vadd.f32 0.0, %v3245
    %v3247 = vpop.f32.mrf.mxu0
    %v3248 = vpop.f32.mrf.mxu0
    %3249 = vdwg.mxu0
    %3250 = vmatprep.subr.bf16.mxu0 %v2966
    %3251 = vmatpush1.bf16.msra.mxu0 %v2965
    %3252 = vmatprep.subr.bf16.mxu0 %v2962
    %3253 = vmatpush1.bf16.msra.mxu0 %v2961
    %3254 = vmatprep.subr.bf16.mxu0 %v2958
    %3255 = vmatpush1.bf16.msra.mxu0 %v2957
    %3256 = vmatprep.subr.bf16.mxu0 %v2954
    %3257 = vmatpush1.bf16.msra.mxu0 %v2953
    %3258 = vmatprep.subr.bf16.mxu0 %v2950
    %3259 = vmatpush1.bf16.msra.mxu0 %v2949
    %3260 = vmatprep.subr.bf16.mxu0 %v2946
    %3261 = vmatpush1.bf16.msra.mxu0 %v2945
    %3262 = vmatprep.subr.bf16.mxu0 %v2942
    %3263 = vmatpush1.bf16.msra.mxu0 %v2941
    %3264 = vmatprep.subr.bf16.mxu0 %v2938
    %3265 = vmatpush1.bf16.msra.mxu0 %v2937
    %3266 = vmatprep.subr.bf16.mxu0 %v2998
    %3267 = vmatpush2.bf16.msra.mxu0 %v2997
    %3268 = vmatprep.subr.bf16.mxu0 %v2994
    %3269 = vmatpush2.bf16.msra.mxu0 %v2993
    %3270 = vmatprep.subr.bf16.mxu0 %v2990
    %3271 = vmatpush2.bf16.msra.mxu0 %v2989
    %3272 = vmatprep.subr.bf16.mxu0 %v2986
    %3273 = vmatpush2.bf16.msra.mxu0 %v2985
    %3274 = vmatprep.subr.bf16.mxu0 %v2982
    %3275 = vmatpush2.bf16.msra.mxu0 %v2981
    %3276 = vmatprep.subr.bf16.mxu0 %v2978
    %3277 = vmatpush2.bf16.msra.mxu0 %v2977
    %3278 = vmatprep.subr.bf16.mxu0 %v2974
    %3279 = vmatpush2.bf16.msra.mxu0 %v2973
    %3280 = vmatprep.subr.bf16.mxu0 %v2970
    %3281 = vmatpush2.bf16.msra.mxu0 %v2969
    %3282 = vmatprep.mubr.bf16.mxu0 %v2357
    %3283 = vmatmul.mubr.bf16.gmra.mxu0 %v2356
    %v3284 = vpop.f32.mrf.mxu0
    %v3285 = vadd.f32 %v3244, %v3284
    %v3286 = vpop.f32.mrf.mxu0
    %v3287 = vadd.f32 %v3246, %v3286
    %v3288 = vpop.f32.mrf.mxu0
    %v3289 = vpop.f32.mrf.mxu0
    %3290 = vdwg.mxu0
    %s3291 = scalar_lea.vmem [#allocation7], 16
    %v3292 = vld [vmem:[%s3291] sm:$0xff]
    %v3293 = vrot.slane %v3203, 4
    %v3294 = vadd.f32 %v3203, %v3293
    %v3295 = vrot.slane %v3294, 2
    %v3296 = vadd.f32 %v3294, %v3295
    %v3297 = vrot.slane %v3296, 1
    %v3298 = vadd.f32 %v3296, %v3297
    %v3299 = vrot.slane %v3205, 4
    %v3300 = vadd.f32 %v3205, %v3299
    %v3301 = vrot.slane %v3300, 2
    %v3302 = vadd.f32 %v3300, %v3301
    %v3303 = vrot.slane %v3302, 1
    %v3304 = vadd.f32 %v3302, %v3303
    %v3305 = vrot.slane %v3285, 4
    %v3306 = vadd.f32 %v3285, %v3305
    %v3307 = vrot.slane %v3306, 2
    %v3308 = vadd.f32 %v3306, %v3307
    %v3309 = vrot.slane %v3308, 1
    %v3310 = vadd.f32 %v3308, %v3309
    %v3311 = vrot.slane %v3287, 4
    %v3312 = vadd.f32 %v3287, %v3311
    %v3313 = vrot.slane %v3312, 2
    %v3314 = vadd.f32 %v3312, %v3313
    %v3315 = vrot.slane %v3314, 1
    %v3316 = vadd.f32 %v3314, %v3315
    %v3317 = vmul.f32 %v3203, %v3203
    %v3318 = vmul.f32 %v3205, %v3205
    %v3319 = vmul.f32 %v3285, %v3285
    %v3320 = vmul.f32 %v3287, %v3287
    %v3321 = vrot.slane %v3317, 4
    %v3322 = vadd.f32 %v3317, %v3321
    %v3323 = vrot.slane %v3322, 2
    %v3324 = vadd.f32 %v3322, %v3323
    %v3325 = vrot.slane %v3324, 1
    %v3326 = vadd.f32 %v3324, %v3325
    %v3327 = vrot.slane %v3318, 4
    %v3328 = vadd.f32 %v3318, %v3327
    %v3329 = vrot.slane %v3328, 2
    %v3330 = vadd.f32 %v3328, %v3329
    %v3331 = vrot.slane %v3330, 1
    %v3332 = vadd.f32 %v3330, %v3331
    %v3333 = vrot.slane %v3319, 4
    %v3334 = vadd.f32 %v3319, %v3333
    %v3335 = vrot.slane %v3334, 2
    %v3336 = vadd.f32 %v3334, %v3335
    %v3337 = vrot.slane %v3336, 1
    %v3338 = vadd.f32 %v3336, %v3337
    %v3339 = vrot.slane %v3320, 4
    %v3340 = vadd.f32 %v3320, %v3339
    %v3341 = vrot.slane %v3340, 2
    %v3342 = vadd.f32 %v3340, %v3341
    %v3343 = vrot.slane %v3342, 1
    %v3344 = vadd.f32 %v3342, %v3343
    %v3345 = vmul.f32 %v3298, 0.125
    %v3346 = vmul.f32 %v3304, 0.125
    %v3347 = vmul.f32 %v3310, 0.125
    %v3348 = vmul.f32 %v3316, 0.125
    %v3349 = vmul.f32 %v3326, 0.125
    %v3350 = vmul.f32 %v3332, 0.125
    %v3351 = vmul.f32 %v3338, 0.125
    %v3352 = vmul.f32 %v3344, 0.125
    %v3353 = vmul.f32 %v3345, %v3345
    %v3354 = vmul.f32 %v3346, %v3346
    %v3355 = vmul.f32 %v3347, %v3347
    %v3356 = vmul.f32 %v3348, %v3348
    %v3357 = vsub.f32 %v3349, %v3353
    %v3358 = vsub.f32 %v3350, %v3354
    %v3359 = vsub.f32 %v3351, %v3355
    %v3360 = vsub.f32 %v3352, %v3356
    %v3361 = vmax.f32 %v3357, 0.0
    %v3362 = vmax.f32 %v3358, 0.0
    %v3363 = vmax.f32 %v3359, 0.0
    %v3364 = vmax.f32 %v3360, 0.0
    %v3365 = vadd.f32 %v3361, 1e-05
    %v3366 = vadd.f32 %v3362, 1e-05
    %v3367 = vadd.f32 %v3363, 1e-05
    %v3368 = vadd.f32 %v3364, 1e-05
    %v3369 = vrsqrt.pop %v3365
    %v3370 = vrsqrt.pop %v3366
    %v3371 = vrsqrt.pop %v3367
    %v3372 = vrsqrt.pop %v3368
    %v3377 = vcombine.low %v3369, %v3370
    %v3378 = vcombine.low %v3371, %v3372
    %v3380 = vunpack.c.l.s4 1966171168
    %v3381 = vunpack.c.0.s8 %v3380
    %v3382 = vlaneseq
    %v3383 = vshrl.u32 %v3382, 7
    %v3384 = vsub.s32 %v3381, %v3383
    %v3385 = vrot.slane %v3377, %v3384
    %v3387 = vunpack.c.l.s4 1966171168
    %v3388 = vunpack.c.0.s8 %v3387
    %v3389 = vlaneseq
    %v3390 = vshrl.u32 %v3389, 7
    %v3391 = vsub.s32 %v3388, %v3390
    %v3392 = vrot.slane %v3378, %v3391
    %v3393 = vcombine.low %v3385, %v3392
    %v3395 = vunpack.c.l.s4 1966171168
    %v3396 = vunpack.c.0.s8 %v3395
    %v3397 = vlaneseq
    %v3398 = vshrl.u32 %v3397, 7
    %v3399 = vsub.s32 %v3396, %v3398
    %v3400 = vrot.slane %v3393, %v3399
    %v3402 = vmul.f32 %v3292, %v3400
    %v3404 = vlaneseq
    %v3405 = vshrl.u32 %v3404, 7
    %v3406 = vsub.s32 0, %v3405
    %v3407 = vrot.slane %v3402, %v3406
    %v3408 = vlaneseq
    %v3409 = vshrl.u32 %v3408, 7
    %v3410 = vsub.s32 1, %v3409
    %v3411 = vrot.slane %v3402, %v3410
    %v3412 = vlaneseq
    %v3413 = vshrl.u32 %v3412, 7
    %v3414 = vsub.s32 2, %v3413
    %v3415 = vrot.slane %v3402, %v3414
    %v3416 = vlaneseq
    %v3417 = vshrl.u32 %v3416, 7
    %v3418 = vsub.s32 3, %v3417
    %v3419 = vrot.slane %v3402, %v3418
    %v3424 = vmul.f32 %v3345, %v3407
    %v3425 = vmul.f32 %v3346, %v3411
    %v3426 = vmul.f32 %v3347, %v3415
    %v3427 = vmul.f32 %v3348, %v3419
    %v3429 = vrot.slane %v3292, 4
    %v3435 = vcombine.low %v3424, %v3425
    %v3436 = vcombine.low %v3426, %v3427
    %v3438 = vunpack.c.l.s4 1966171168
    %v3439 = vunpack.c.0.s8 %v3438
    %v3440 = vlaneseq
    %v3441 = vshrl.u32 %v3440, 7
    %v3442 = vsub.s32 %v3439, %v3441
    %v3443 = vrot.slane %v3435, %v3442
    %v3445 = vunpack.c.l.s4 1966171168
    %v3446 = vunpack.c.0.s8 %v3445
    %v3447 = vlaneseq
    %v3448 = vshrl.u32 %v3447, 7
    %v3449 = vsub.s32 %v3446, %v3448
    %v3450 = vrot.slane %v3436, %v3449
    %v3451 = vcombine.low %v3443, %v3450
    %v3453 = vunpack.c.l.s4 1966171168
    %v3454 = vunpack.c.0.s8 %v3453
    %v3455 = vlaneseq
    %v3456 = vshrl.u32 %v3455, 7
    %v3457 = vsub.s32 %v3454, %v3456
    %v3458 = vrot.slane %v3451, %v3457
    %v3460 = vsub.f32 %v3429, %v3458
    %v3461 = vmul.f32 %v3203, %v3407
    %v3462 = vmul.f32 %v3205, %v3411
    %v3463 = vmul.f32 %v3285, %v3415
    %v3464 = vmul.f32 %v3287, %v3419
    %v3466 = vlaneseq
    %v3467 = vshrl.u32 %v3466, 7
    %v3468 = vsub.s32 0, %v3467
    %v3469 = vrot.slane %v3460, %v3468
    %v3470 = vlaneseq
    %v3471 = vshrl.u32 %v3470, 7
    %v3472 = vsub.s32 1, %v3471
    %v3473 = vrot.slane %v3460, %v3472
    %v3474 = vlaneseq
    %v3475 = vshrl.u32 %v3474, 7
    %v3476 = vsub.s32 2, %v3475
    %v3477 = vrot.slane %v3460, %v3476
    %v3478 = vlaneseq
    %v3479 = vshrl.u32 %v3478, 7
    %v3480 = vsub.s32 3, %v3479
    %v3481 = vrot.slane %v3460, %v3480
    %v3486 = vadd.f32 %v3461, %v3469
    %v3487 = vadd.f32 %v3462, %v3473
    %v3488 = vadd.f32 %v3463, %v3477
    %v3489 = vadd.f32 %v3464, %v3481
    %v3490 = vmax.f32 %v3486, 0.0
    %v3491 = vmax.f32 %v3487, 0.0
    %v3492 = vmax.f32 %v3488, 0.0
    %v3493 = vmax.f32 %v3489, 0.0
    %v3494 = vpack.c.bf16 %v3490, %v3490
    %v3495 = vpack.c.bf16 %v3491, %v3491
    %v3496 = vpack.c.bf16 %v3492, %v3492
    %v3497 = vpack.c.bf16 %v3493, %v3493
    %s3498 = scalar_lea.vmem [#allocation5], 3072
    %v3499 = vld [vmem:[%s3498] sm:$0xff]
    %v3500 = vld [vmem:[%s3498 + $0x8] sm:$0xff]
    %v3501 = vld [vmem:[%s3498 + $0x10] sm:$0xff]
    %v3502 = vld [vmem:[%s3498 + $0x18] sm:$0xff]
    %v3503 = vld [vmem:[%s3498 + $0x20] sm:$0xff]
    %v3504 = vld [vmem:[%s3498 + $0x28] sm:$0xff]
    %v3505 = vld [vmem:[%s3498 + $0x30] sm:$0xff]
    %v3506 = vld [vmem:[%s3498 + $0x38] sm:$0xff]
    %v3507 = vld [vmem:[%s3498 + $0x40] sm:$0xff]
    %v3508 = vld [vmem:[%s3498 + $0x48] sm:$0xff]
    %v3509 = vld [vmem:[%s3498 + $0x50] sm:$0xff]
    %v3510 = vld [vmem:[%s3498 + $0x58] sm:$0xff]
    %v3511 = vld [vmem:[%s3498 + $0x60] sm:$0xff]
    %v3512 = vld [vmem:[%s3498 + $0x68] sm:$0xff]
    %v3513 = vld [vmem:[%s3498 + $0x70] sm:$0xff]
    %v3514 = vld [vmem:[%s3498 + $0x78] sm:$0xff]
    %v3515 = vld [vmem:[%s3498 + $0x80] sm:$0xff]
    %v3516 = vld [vmem:[%s3498 + $0x88] sm:$0xff]
    %v3517 = vld [vmem:[%s3498 + $0x90] sm:$0xff]
    %v3518 = vld [vmem:[%s3498 + $0x98] sm:$0xff]
    %v3519 = vld [vmem:[%s3498 + $0xa0] sm:$0xff]
    %v3520 = vld [vmem:[%s3498 + $0xa8] sm:$0xff]
    %v3521 = vld [vmem:[%s3498 + $0xb0] sm:$0xff]
    %v3522 = vld [vmem:[%s3498 + $0xb8] sm:$0xff]
    %v3523 = vld [vmem:[%s3498 + $0xc0] sm:$0xff]
    %v3524 = vld [vmem:[%s3498 + $0xc8] sm:$0xff]
    %v3525 = vld [vmem:[%s3498 + $0xd0] sm:$0xff]
    %v3526 = vld [vmem:[%s3498 + $0xd8] sm:$0xff]
    %v3527 = vld [vmem:[%s3498 + $0xe0] sm:$0xff]
    %v3528 = vld [vmem:[%s3498 + $0xe8] sm:$0xff]
    %v3529 = vld [vmem:[%s3498 + $0xf0] sm:$0xff]
    %v3530 = vld [vmem:[%s3498 + $0xf8] sm:$0xff]
    %v3531 = vld [vmem:[%s3498 + $0x100] sm:$0xff]
    %v3532 = vld [vmem:[%s3498 + $0x108] sm:$0xff]
    %v3533 = vld [vmem:[%s3498 + $0x110] sm:$0xff]
    %v3534 = vld [vmem:[%s3498 + $0x118] sm:$0xff]
    %v3535 = vld [vmem:[%s3498 + $0x120] sm:$0xff]
    %v3536 = vld [vmem:[%s3498 + $0x128] sm:$0xff]
    %v3537 = vld [vmem:[%s3498 + $0x130] sm:$0xff]
    %v3538 = vld [vmem:[%s3498 + $0x138] sm:$0xff]
    %v3539 = vld [vmem:[%s3498 + $0x140] sm:$0xff]
    %v3540 = vld [vmem:[%s3498 + $0x148] sm:$0xff]
    %v3541 = vld [vmem:[%s3498 + $0x150] sm:$0xff]
    %v3542 = vld [vmem:[%s3498 + $0x158] sm:$0xff]
    %v3543 = vld [vmem:[%s3498 + $0x160] sm:$0xff]
    %v3544 = vld [vmem:[%s3498 + $0x168] sm:$0xff]
    %v3545 = vld [vmem:[%s3498 + $0x170] sm:$0xff]
    %v3546 = vld [vmem:[%s3498 + $0x178] sm:$0xff]
    %v3547 = vld [vmem:[%s3498 + $0x180] sm:$0xff]
    %v3548 = vld [vmem:[%s3498 + $0x188] sm:$0xff]
    %v3549 = vld [vmem:[%s3498 + $0x190] sm:$0xff]
    %v3550 = vld [vmem:[%s3498 + $0x198] sm:$0xff]
    %v3551 = vld [vmem:[%s3498 + $0x1a0] sm:$0xff]
    %v3552 = vld [vmem:[%s3498 + $0x1a8] sm:$0xff]
    %v3553 = vld [vmem:[%s3498 + $0x1b0] sm:$0xff]
    %v3554 = vld [vmem:[%s3498 + $0x1b8] sm:$0xff]
    %v3555 = vld [vmem:[%s3498 + $0x1c0] sm:$0xff]
    %v3556 = vld [vmem:[%s3498 + $0x1c8] sm:$0xff]
    %v3557 = vld [vmem:[%s3498 + $0x1d0] sm:$0xff]
    %v3558 = vld [vmem:[%s3498 + $0x1d8] sm:$0xff]
    %v3559 = vld [vmem:[%s3498 + $0x1e0] sm:$0xff]
    %v3560 = vld [vmem:[%s3498 + $0x1e8] sm:$0xff]
    %v3561 = vld [vmem:[%s3498 + $0x1f0] sm:$0xff]
    %v3562 = vld [vmem:[%s3498 + $0x1f8] sm:$0xff]
    %v3563 = vld [vmem:[%s3498 + $0x200] sm:$0xff]
    %v3564 = vld [vmem:[%s3498 + $0x208] sm:$0xff]
    %v3565 = vld [vmem:[%s3498 + $0x210] sm:$0xff]
    %v3566 = vld [vmem:[%s3498 + $0x218] sm:$0xff]
    %v3567 = vld [vmem:[%s3498 + $0x220] sm:$0xff]
    %v3568 = vld [vmem:[%s3498 + $0x228] sm:$0xff]
    %v3569 = vld [vmem:[%s3498 + $0x230] sm:$0xff]
    %v3570 = vld [vmem:[%s3498 + $0x238] sm:$0xff]
    %v3571 = vld [vmem:[%s3498 + $0x240] sm:$0xff]
    %v3572 = vld [vmem:[%s3498 + $0x248] sm:$0xff]
    %v3573 = vld [vmem:[%s3498 + $0x250] sm:$0xff]
    %v3574 = vld [vmem:[%s3498 + $0x258] sm:$0xff]
    %v3575 = vld [vmem:[%s3498 + $0x260] sm:$0xff]
    %v3576 = vld [vmem:[%s3498 + $0x268] sm:$0xff]
    %v3577 = vld [vmem:[%s3498 + $0x270] sm:$0xff]
    %v3578 = vld [vmem:[%s3498 + $0x278] sm:$0xff]
    %v3579 = vld [vmem:[%s3498 + $0x280] sm:$0xff]
    %v3580 = vld [vmem:[%s3498 + $0x288] sm:$0xff]
    %v3581 = vld [vmem:[%s3498 + $0x290] sm:$0xff]
    %v3582 = vld [vmem:[%s3498 + $0x298] sm:$0xff]
    %v3583 = vld [vmem:[%s3498 + $0x2a0] sm:$0xff]
    %v3584 = vld [vmem:[%s3498 + $0x2a8] sm:$0xff]
    %v3585 = vld [vmem:[%s3498 + $0x2b0] sm:$0xff]
    %v3586 = vld [vmem:[%s3498 + $0x2b8] sm:$0xff]
    %v3587 = vld [vmem:[%s3498 + $0x2c0] sm:$0xff]
    %v3588 = vld [vmem:[%s3498 + $0x2c8] sm:$0xff]
    %v3589 = vld [vmem:[%s3498 + $0x2d0] sm:$0xff]
    %v3590 = vld [vmem:[%s3498 + $0x2d8] sm:$0xff]
    %v3591 = vld [vmem:[%s3498 + $0x2e0] sm:$0xff]
    %v3592 = vld [vmem:[%s3498 + $0x2e8] sm:$0xff]
    %v3593 = vld [vmem:[%s3498 + $0x2f0] sm:$0xff]
    %v3594 = vld [vmem:[%s3498 + $0x2f8] sm:$0xff]
    %v3595 = vld [vmem:[%s3498 + $0x300] sm:$0xff]
    %v3596 = vld [vmem:[%s3498 + $0x308] sm:$0xff]
    %v3597 = vld [vmem:[%s3498 + $0x310] sm:$0xff]
    %v3598 = vld [vmem:[%s3498 + $0x318] sm:$0xff]
    %v3599 = vld [vmem:[%s3498 + $0x320] sm:$0xff]
    %v3600 = vld [vmem:[%s3498 + $0x328] sm:$0xff]
    %v3601 = vld [vmem:[%s3498 + $0x330] sm:$0xff]
    %v3602 = vld [vmem:[%s3498 + $0x338] sm:$0xff]
    %v3603 = vld [vmem:[%s3498 + $0x340] sm:$0xff]
    %v3604 = vld [vmem:[%s3498 + $0x348] sm:$0xff]
    %v3605 = vld [vmem:[%s3498 + $0x350] sm:$0xff]
    %v3606 = vld [vmem:[%s3498 + $0x358] sm:$0xff]
    %v3607 = vld [vmem:[%s3498 + $0x360] sm:$0xff]
    %v3608 = vld [vmem:[%s3498 + $0x368] sm:$0xff]
    %v3609 = vld [vmem:[%s3498 + $0x370] sm:$0xff]
    %v3610 = vld [vmem:[%s3498 + $0x378] sm:$0xff]
    %v3611 = vld [vmem:[%s3498 + $0x380] sm:$0xff]
    %v3612 = vld [vmem:[%s3498 + $0x388] sm:$0xff]
    %v3613 = vld [vmem:[%s3498 + $0x390] sm:$0xff]
    %v3614 = vld [vmem:[%s3498 + $0x398] sm:$0xff]
    %v3615 = vld [vmem:[%s3498 + $0x3a0] sm:$0xff]
    %v3616 = vld [vmem:[%s3498 + $0x3a8] sm:$0xff]
    %v3617 = vld [vmem:[%s3498 + $0x3b0] sm:$0xff]
    %v3618 = vld [vmem:[%s3498 + $0x3b8] sm:$0xff]
    %v3619 = vld [vmem:[%s3498 + $0x3c0] sm:$0xff]
    %v3620 = vld [vmem:[%s3498 + $0x3c8] sm:$0xff]
    %v3621 = vld [vmem:[%s3498 + $0x3d0] sm:$0xff]
    %v3622 = vld [vmem:[%s3498 + $0x3d8] sm:$0xff]
    %v3623 = vld [vmem:[%s3498 + $0x3e0] sm:$0xff]
    %v3624 = vld [vmem:[%s3498 + $0x3e8] sm:$0xff]
    %v3625 = vld [vmem:[%s3498 + $0x3f0] sm:$0xff]
    %v3626 = vld [vmem:[%s3498 + $0x3f8] sm:$0xff]
    %v3755 = vunpack.c.l.b16 %v3499
    %v3756 = vunpack.c.h.b16 %v3499
    %v3757 = vunpack.c.l.b16 %v3500
    %v3758 = vunpack.c.h.b16 %v3500
    %v3759 = vunpack.c.l.b16 %v3501
    %v3760 = vunpack.c.h.b16 %v3501
    %v3761 = vunpack.c.l.b16 %v3502
    %v3762 = vunpack.c.h.b16 %v3502
    %v3763 = vunpack.c.l.b16 %v3503
    %v3764 = vunpack.c.h.b16 %v3503
    %v3765 = vunpack.c.l.b16 %v3504
    %v3766 = vunpack.c.h.b16 %v3504
    %v3767 = vunpack.c.l.b16 %v3505
    %v3768 = vunpack.c.h.b16 %v3505
    %v3769 = vunpack.c.l.b16 %v3506
    %v3770 = vunpack.c.h.b16 %v3506
    %v3771 = vunpack.c.l.b16 %v3507
    %v3772 = vunpack.c.h.b16 %v3507
    %v3773 = vunpack.c.l.b16 %v3508
    %v3774 = vunpack.c.h.b16 %v3508
    %v3775 = vunpack.c.l.b16 %v3509
    %v3776 = vunpack.c.h.b16 %v3509
    %v3777 = vunpack.c.l.b16 %v3510
    %v3778 = vunpack.c.h.b16 %v3510
    %v3779 = vunpack.c.l.b16 %v3511
    %v3780 = vunpack.c.h.b16 %v3511
    %v3781 = vunpack.c.l.b16 %v3512
    %v3782 = vunpack.c.h.b16 %v3512
    %v3783 = vunpack.c.l.b16 %v3513
    %v3784 = vunpack.c.h.b16 %v3513
    %v3785 = vunpack.c.l.b16 %v3514
    %v3786 = vunpack.c.h.b16 %v3514
    %v3787 = vunpack.c.l.b16 %v3515
    %v3788 = vunpack.c.h.b16 %v3515
    %v3789 = vunpack.c.l.b16 %v3516
    %v3790 = vunpack.c.h.b16 %v3516
    %v3791 = vunpack.c.l.b16 %v3517
    %v3792 = vunpack.c.h.b16 %v3517
    %v3793 = vunpack.c.l.b16 %v3518
    %v3794 = vunpack.c.h.b16 %v3518
    %v3795 = vunpack.c.l.b16 %v3519
    %v3796 = vunpack.c.h.b16 %v3519
    %v3797 = vunpack.c.l.b16 %v3520
    %v3798 = vunpack.c.h.b16 %v3520
    %v3799 = vunpack.c.l.b16 %v3521
    %v3800 = vunpack.c.h.b16 %v3521
    %v3801 = vunpack.c.l.b16 %v3522
    %v3802 = vunpack.c.h.b16 %v3522
    %v3803 = vunpack.c.l.b16 %v3523
    %v3804 = vunpack.c.h.b16 %v3523
    %v3805 = vunpack.c.l.b16 %v3524
    %v3806 = vunpack.c.h.b16 %v3524
    %v3807 = vunpack.c.l.b16 %v3525
    %v3808 = vunpack.c.h.b16 %v3525
    %v3809 = vunpack.c.l.b16 %v3526
    %v3810 = vunpack.c.h.b16 %v3526
    %v3811 = vunpack.c.l.b16 %v3527
    %v3812 = vunpack.c.h.b16 %v3527
    %v3813 = vunpack.c.l.b16 %v3528
    %v3814 = vunpack.c.h.b16 %v3528
    %v3815 = vunpack.c.l.b16 %v3529
    %v3816 = vunpack.c.h.b16 %v3529
    %v3817 = vunpack.c.l.b16 %v3530
    %v3818 = vunpack.c.h.b16 %v3530
    %v3819 = vunpack.c.l.b16 %v3531
    %v3820 = vunpack.c.h.b16 %v3531
    %v3821 = vunpack.c.l.b16 %v3532
    %v3822 = vunpack.c.h.b16 %v3532
    %v3823 = vunpack.c.l.b16 %v3533
    %v3824 = vunpack.c.h.b16 %v3533
    %v3825 = vunpack.c.l.b16 %v3534
    %v3826 = vunpack.c.h.b16 %v3534
    %v3827 = vunpack.c.l.b16 %v3535
    %v3828 = vunpack.c.h.b16 %v3535
    %v3829 = vunpack.c.l.b16 %v3536
    %v3830 = vunpack.c.h.b16 %v3536
    %v3831 = vunpack.c.l.b16 %v3537
    %v3832 = vunpack.c.h.b16 %v3537
    %v3833 = vunpack.c.l.b16 %v3538
    %v3834 = vunpack.c.h.b16 %v3538
    %v3835 = vunpack.c.l.b16 %v3539
    %v3836 = vunpack.c.h.b16 %v3539
    %v3837 = vunpack.c.l.b16 %v3540
    %v3838 = vunpack.c.h.b16 %v3540
    %v3839 = vunpack.c.l.b16 %v3541
    %v3840 = vunpack.c.h.b16 %v3541
    %v3841 = vunpack.c.l.b16 %v3542
    %v3842 = vunpack.c.h.b16 %v3542
    %v3843 = vunpack.c.l.b16 %v3543
    %v3844 = vunpack.c.h.b16 %v3543
    %v3845 = vunpack.c.l.b16 %v3544
    %v3846 = vunpack.c.h.b16 %v3544
    %v3847 = vunpack.c.l.b16 %v3545
    %v3848 = vunpack.c.h.b16 %v3545
    %v3849 = vunpack.c.l.b16 %v3546
    %v3850 = vunpack.c.h.b16 %v3546
    %v3851 = vunpack.c.l.b16 %v3547
    %v3852 = vunpack.c.h.b16 %v3547
    %v3853 = vunpack.c.l.b16 %v3548
    %v3854 = vunpack.c.h.b16 %v3548
    %v3855 = vunpack.c.l.b16 %v3549
    %v3856 = vunpack.c.h.b16 %v3549
    %v3857 = vunpack.c.l.b16 %v3550
    %v3858 = vunpack.c.h.b16 %v3550
    %v3859 = vunpack.c.l.b16 %v3551
    %v3860 = vunpack.c.h.b16 %v3551
    %v3861 = vunpack.c.l.b16 %v3552
    %v3862 = vunpack.c.h.b16 %v3552
    %v3863 = vunpack.c.l.b16 %v3553
    %v3864 = vunpack.c.h.b16 %v3553
    %v3865 = vunpack.c.l.b16 %v3554
    %v3866 = vunpack.c.h.b16 %v3554
    %v3867 = vunpack.c.l.b16 %v3555
    %v3868 = vunpack.c.h.b16 %v3555
    %v3869 = vunpack.c.l.b16 %v3556
    %v3870 = vunpack.c.h.b16 %v3556
    %v3871 = vunpack.c.l.b16 %v3557
    %v3872 = vunpack.c.h.b16 %v3557
    %v3873 = vunpack.c.l.b16 %v3558
    %v3874 = vunpack.c.h.b16 %v3558
    %v3875 = vunpack.c.l.b16 %v3559
    %v3876 = vunpack.c.h.b16 %v3559
    %v3877 = vunpack.c.l.b16 %v3560
    %v3878 = vunpack.c.h.b16 %v3560
    %v3879 = vunpack.c.l.b16 %v3561
    %v3880 = vunpack.c.h.b16 %v3561
    %v3881 = vunpack.c.l.b16 %v3562
    %v3882 = vunpack.c.h.b16 %v3562
    %v3883 = vunpack.c.l.b16 %v3563
    %v3884 = vunpack.c.h.b16 %v3563
    %v3885 = vunpack.c.l.b16 %v3564
    %v3886 = vunpack.c.h.b16 %v3564
    %v3887 = vunpack.c.l.b16 %v3565
    %v3888 = vunpack.c.h.b16 %v3565
    %v3889 = vunpack.c.l.b16 %v3566
    %v3890 = vunpack.c.h.b16 %v3566
    %v3891 = vunpack.c.l.b16 %v3567
    %v3892 = vunpack.c.h.b16 %v3567
    %v3893 = vunpack.c.l.b16 %v3568
    %v3894 = vunpack.c.h.b16 %v3568
    %v3895 = vunpack.c.l.b16 %v3569
    %v3896 = vunpack.c.h.b16 %v3569
    %v3897 = vunpack.c.l.b16 %v3570
    %v3898 = vunpack.c.h.b16 %v3570
    %v3899 = vunpack.c.l.b16 %v3571
    %v3900 = vunpack.c.h.b16 %v3571
    %v3901 = vunpack.c.l.b16 %v3572
    %v3902 = vunpack.c.h.b16 %v3572
    %v3903 = vunpack.c.l.b16 %v3573
    %v3904 = vunpack.c.h.b16 %v3573
    %v3905 = vunpack.c.l.b16 %v3574
    %v3906 = vunpack.c.h.b16 %v3574
    %v3907 = vunpack.c.l.b16 %v3575
    %v3908 = vunpack.c.h.b16 %v3575
    %v3909 = vunpack.c.l.b16 %v3576
    %v3910 = vunpack.c.h.b16 %v3576
    %v3911 = vunpack.c.l.b16 %v3577
    %v3912 = vunpack.c.h.b16 %v3577
    %v3913 = vunpack.c.l.b16 %v3578
    %v3914 = vunpack.c.h.b16 %v3578
    %v3915 = vunpack.c.l.b16 %v3579
    %v3916 = vunpack.c.h.b16 %v3579
    %v3917 = vunpack.c.l.b16 %v3580
    %v3918 = vunpack.c.h.b16 %v3580
    %v3919 = vunpack.c.l.b16 %v3581
    %v3920 = vunpack.c.h.b16 %v3581
    %v3921 = vunpack.c.l.b16 %v3582
    %v3922 = vunpack.c.h.b16 %v3582
    %v3923 = vunpack.c.l.b16 %v3583
    %v3924 = vunpack.c.h.b16 %v3583
    %v3925 = vunpack.c.l.b16 %v3584
    %v3926 = vunpack.c.h.b16 %v3584
    %v3927 = vunpack.c.l.b16 %v3585
    %v3928 = vunpack.c.h.b16 %v3585
    %v3929 = vunpack.c.l.b16 %v3586
    %v3930 = vunpack.c.h.b16 %v3586
    %v3931 = vunpack.c.l.b16 %v3587
    %v3932 = vunpack.c.h.b16 %v3587
    %v3933 = vunpack.c.l.b16 %v3588
    %v3934 = vunpack.c.h.b16 %v3588
    %v3935 = vunpack.c.l.b16 %v3589
    %v3936 = vunpack.c.h.b16 %v3589
    %v3937 = vunpack.c.l.b16 %v3590
    %v3938 = vunpack.c.h.b16 %v3590
    %v3939 = vunpack.c.l.b16 %v3591
    %v3940 = vunpack.c.h.b16 %v3591
    %v3941 = vunpack.c.l.b16 %v3592
    %v3942 = vunpack.c.h.b16 %v3592
    %v3943 = vunpack.c.l.b16 %v3593
    %v3944 = vunpack.c.h.b16 %v3593
    %v3945 = vunpack.c.l.b16 %v3594
    %v3946 = vunpack.c.h.b16 %v3594
    %v3947 = vunpack.c.l.b16 %v3595
    %v3948 = vunpack.c.h.b16 %v3595
    %v3949 = vunpack.c.l.b16 %v3596
    %v3950 = vunpack.c.h.b16 %v3596
    %v3951 = vunpack.c.l.b16 %v3597
    %v3952 = vunpack.c.h.b16 %v3597
    %v3953 = vunpack.c.l.b16 %v3598
    %v3954 = vunpack.c.h.b16 %v3598
    %v3955 = vunpack.c.l.b16 %v3599
    %v3956 = vunpack.c.h.b16 %v3599
    %v3957 = vunpack.c.l.b16 %v3600
    %v3958 = vunpack.c.h.b16 %v3600
    %v3959 = vunpack.c.l.b16 %v3601
    %v3960 = vunpack.c.h.b16 %v3601
    %v3961 = vunpack.c.l.b16 %v3602
    %v3962 = vunpack.c.h.b16 %v3602
    %v3963 = vunpack.c.l.b16 %v3603
    %v3964 = vunpack.c.h.b16 %v3603
    %v3965 = vunpack.c.l.b16 %v3604
    %v3966 = vunpack.c.h.b16 %v3604
    %v3967 = vunpack.c.l.b16 %v3605
    %v3968 = vunpack.c.h.b16 %v3605
    %v3969 = vunpack.c.l.b16 %v3606
    %v3970 = vunpack.c.h.b16 %v3606
    %v3971 = vunpack.c.l.b16 %v3607
    %v3972 = vunpack.c.h.b16 %v3607
    %v3973 = vunpack.c.l.b16 %v3608
    %v3974 = vunpack.c.h.b16 %v3608
    %v3975 = vunpack.c.l.b16 %v3609
    %v3976 = vunpack.c.h.b16 %v3609
    %v3977 = vunpack.c.l.b16 %v3610
    %v3978 = vunpack.c.h.b16 %v3610
    %v3979 = vunpack.c.l.b16 %v3611
    %v3980 = vunpack.c.h.b16 %v3611
    %v3981 = vunpack.c.l.b16 %v3612
    %v3982 = vunpack.c.h.b16 %v3612
    %v3983 = vunpack.c.l.b16 %v3613
    %v3984 = vunpack.c.h.b16 %v3613
    %v3985 = vunpack.c.l.b16 %v3614
    %v3986 = vunpack.c.h.b16 %v3614
    %v3987 = vunpack.c.l.b16 %v3615
    %v3988 = vunpack.c.h.b16 %v3615
    %v3989 = vunpack.c.l.b16 %v3616
    %v3990 = vunpack.c.h.b16 %v3616
    %v3991 = vunpack.c.l.b16 %v3617
    %v3992 = vunpack.c.h.b16 %v3617
    %v3993 = vunpack.c.l.b16 %v3618
    %v3994 = vunpack.c.h.b16 %v3618
    %v3995 = vunpack.c.l.b16 %v3619
    %v3996 = vunpack.c.h.b16 %v3619
    %v3997 = vunpack.c.l.b16 %v3620
    %v3998 = vunpack.c.h.b16 %v3620
    %v3999 = vunpack.c.l.b16 %v3621
    %v4000 = vunpack.c.h.b16 %v3621
    %v4001 = vunpack.c.l.b16 %v3622
    %v4002 = vunpack.c.h.b16 %v3622
    %v4003 = vunpack.c.l.b16 %v3623
    %v4004 = vunpack.c.h.b16 %v3623
    %v4005 = vunpack.c.l.b16 %v3624
    %v4006 = vunpack.c.h.b16 %v3624
    %v4007 = vunpack.c.l.b16 %v3625
    %v4008 = vunpack.c.h.b16 %v3625
    %v4009 = vunpack.c.l.b16 %v3626
    %v4010 = vunpack.c.h.b16 %v3626
    %v4011 = vpack.c.b16 %v3759, %v3755
    %v4012 = vpack.c.b16 %v3760, %v3756
    %v4013 = vpack.c.b16 %v3761, %v3757
    %v4014 = vpack.c.b16 %v3762, %v3758
    %v4015 = vpack.c.b16 %v3767, %v3763
    %v4016 = vpack.c.b16 %v3768, %v3764
    %v4017 = vpack.c.b16 %v3769, %v3765
    %v4018 = vpack.c.b16 %v3770, %v3766
    %v4019 = vpack.c.b16 %v3775, %v3771
    %v4020 = vpack.c.b16 %v3776, %v3772
    %v4021 = vpack.c.b16 %v3777, %v3773
    %v4022 = vpack.c.b16 %v3778, %v3774
    %v4023 = vpack.c.b16 %v3783, %v3779
    %v4024 = vpack.c.b16 %v3784, %v3780
    %v4025 = vpack.c.b16 %v3785, %v3781
    %v4026 = vpack.c.b16 %v3786, %v3782
    %v4027 = vpack.c.b16 %v3791, %v3787
    %v4028 = vpack.c.b16 %v3792, %v3788
    %v4029 = vpack.c.b16 %v3793, %v3789
    %v4030 = vpack.c.b16 %v3794, %v3790
    %v4031 = vpack.c.b16 %v3799, %v3795
    %v4032 = vpack.c.b16 %v3800, %v3796
    %v4033 = vpack.c.b16 %v3801, %v3797
    %v4034 = vpack.c.b16 %v3802, %v3798
    %v4035 = vpack.c.b16 %v3807, %v3803
    %v4036 = vpack.c.b16 %v3808, %v3804
    %v4037 = vpack.c.b16 %v3809, %v3805
    %v4038 = vpack.c.b16 %v3810, %v3806
    %v4039 = vpack.c.b16 %v3815, %v3811
    %v4040 = vpack.c.b16 %v3816, %v3812
    %v4041 = vpack.c.b16 %v3817, %v3813
    %v4042 = vpack.c.b16 %v3818, %v3814
    %v4043 = vpack.c.b16 %v3823, %v3819
    %v4044 = vpack.c.b16 %v3824, %v3820
    %v4045 = vpack.c.b16 %v3825, %v3821
    %v4046 = vpack.c.b16 %v3826, %v3822
    %v4047 = vpack.c.b16 %v3831, %v3827
    %v4048 = vpack.c.b16 %v3832, %v3828
    %v4049 = vpack.c.b16 %v3833, %v3829
    %v4050 = vpack.c.b16 %v3834, %v3830
    %v4051 = vpack.c.b16 %v3839, %v3835
    %v4052 = vpack.c.b16 %v3840, %v3836
    %v4053 = vpack.c.b16 %v3841, %v3837
    %v4054 = vpack.c.b16 %v3842, %v3838
    %v4055 = vpack.c.b16 %v3847, %v3843
    %v4056 = vpack.c.b16 %v3848, %v3844
    %v4057 = vpack.c.b16 %v3849, %v3845
    %v4058 = vpack.c.b16 %v3850, %v3846
    %v4059 = vpack.c.b16 %v3855, %v3851
    %v4060 = vpack.c.b16 %v3856, %v3852
    %v4061 = vpack.c.b16 %v3857, %v3853
    %v4062 = vpack.c.b16 %v3858, %v3854
    %v4063 = vpack.c.b16 %v3863, %v3859
    %v4064 = vpack.c.b16 %v3864, %v3860
    %v4065 = vpack.c.b16 %v3865, %v3861
    %v4066 = vpack.c.b16 %v3866, %v3862
    %v4067 = vpack.c.b16 %v3871, %v3867
    %v4068 = vpack.c.b16 %v3872, %v3868
    %v4069 = vpack.c.b16 %v3873, %v3869
    %v4070 = vpack.c.b16 %v3874, %v3870
    %v4071 = vpack.c.b16 %v3879, %v3875
    %v4072 = vpack.c.b16 %v3880, %v3876
    %v4073 = vpack.c.b16 %v3881, %v3877
    %v4074 = vpack.c.b16 %v3882, %v3878
    %v4075 = vpack.c.b16 %v3887, %v3883
    %v4076 = vpack.c.b16 %v3888, %v3884
    %v4077 = vpack.c.b16 %v3889, %v3885
    %v4078 = vpack.c.b16 %v3890, %v3886
    %v4079 = vpack.c.b16 %v3895, %v3891
    %v4080 = vpack.c.b16 %v3896, %v3892
    %v4081 = vpack.c.b16 %v3897, %v3893
    %v4082 = vpack.c.b16 %v3898, %v3894
    %v4083 = vpack.c.b16 %v3903, %v3899
    %v4084 = vpack.c.b16 %v3904, %v3900
    %v4085 = vpack.c.b16 %v3905, %v3901
    %v4086 = vpack.c.b16 %v3906, %v3902
    %v4087 = vpack.c.b16 %v3911, %v3907
    %v4088 = vpack.c.b16 %v3912, %v3908
    %v4089 = vpack.c.b16 %v3913, %v3909
    %v4090 = vpack.c.b16 %v3914, %v3910
    %v4091 = vpack.c.b16 %v3919, %v3915
    %v4092 = vpack.c.b16 %v3920, %v3916
    %v4093 = vpack.c.b16 %v3921, %v3917
    %v4094 = vpack.c.b16 %v3922, %v3918
    %v4095 = vpack.c.b16 %v3927, %v3923
    %v4096 = vpack.c.b16 %v3928, %v3924
    %v4097 = vpack.c.b16 %v3929, %v3925
    %v4098 = vpack.c.b16 %v3930, %v3926
    %v4099 = vpack.c.b16 %v3935, %v3931
    %v4100 = vpack.c.b16 %v3936, %v3932
    %v4101 = vpack.c.b16 %v3937, %v3933
    %v4102 = vpack.c.b16 %v3938, %v3934
    %v4103 = vpack.c.b16 %v3943, %v3939
    %v4104 = vpack.c.b16 %v3944, %v3940
    %v4105 = vpack.c.b16 %v3945, %v3941
    %v4106 = vpack.c.b16 %v3946, %v3942
    %v4107 = vpack.c.b16 %v3951, %v3947
    %v4108 = vpack.c.b16 %v3952, %v3948
    %v4109 = vpack.c.b16 %v3953, %v3949
    %v4110 = vpack.c.b16 %v3954, %v3950
    %v4111 = vpack.c.b16 %v3959, %v3955
    %v4112 = vpack.c.b16 %v3960, %v3956
    %v4113 = vpack.c.b16 %v3961, %v3957
    %v4114 = vpack.c.b16 %v3962, %v3958
    %v4115 = vpack.c.b16 %v3967, %v3963
    %v4116 = vpack.c.b16 %v3968, %v3964
    %v4117 = vpack.c.b16 %v3969, %v3965
    %v4118 = vpack.c.b16 %v3970, %v3966
    %v4119 = vpack.c.b16 %v3975, %v3971
    %v4120 = vpack.c.b16 %v3976, %v3972
    %v4121 = vpack.c.b16 %v3977, %v3973
    %v4122 = vpack.c.b16 %v3978, %v3974
    %v4123 = vpack.c.b16 %v3983, %v3979
    %v4124 = vpack.c.b16 %v3984, %v3980
    %v4125 = vpack.c.b16 %v3985, %v3981
    %v4126 = vpack.c.b16 %v3986, %v3982
    %v4127 = vpack.c.b16 %v3991, %v3987
    %v4128 = vpack.c.b16 %v3992, %v3988
    %v4129 = vpack.c.b16 %v3993, %v3989
    %v4130 = vpack.c.b16 %v3994, %v3990
    %v4131 = vpack.c.b16 %v3999, %v3995
    %v4132 = vpack.c.b16 %v4000, %v3996
    %v4133 = vpack.c.b16 %v4001, %v3997
    %v4134 = vpack.c.b16 %v4002, %v3998
    %v4135 = vpack.c.b16 %v4007, %v4003
    %v4136 = vpack.c.b16 %v4008, %v4004
    %v4137 = vpack.c.b16 %v4009, %v4005
    %v4138 = vpack.c.b16 %v4010, %v4006
    %4267 = vmatprep.subr.bf16.mxu0 %v4040
    %4268 = vmatpush1.bf16.msra.mxu0 %v4039
    %4269 = vmatprep.subr.bf16.mxu0 %v4036
    %4270 = vmatpush1.bf16.msra.mxu0 %v4035
    %4271 = vmatprep.subr.bf16.mxu0 %v4032
    %4272 = vmatpush1.bf16.msra.mxu0 %v4031
    %4273 = vmatprep.subr.bf16.mxu0 %v4028
    %4274 = vmatpush1.bf16.msra.mxu0 %v4027
    %4275 = vmatprep.subr.bf16.mxu0 %v4024
    %4276 = vmatpush1.bf16.msra.mxu0 %v4023
    %4277 = vmatprep.subr.bf16.mxu0 %v4020
    %4278 = vmatpush1.bf16.msra.mxu0 %v4019
    %4279 = vmatprep.subr.bf16.mxu0 %v4016
    %4280 = vmatpush1.bf16.msra.mxu0 %v4015
    %4281 = vmatprep.subr.bf16.mxu0 %v4012
    %4282 = vmatpush1.bf16.msra.mxu0 %v4011
    %4283 = vmatprep.subr.bf16.mxu0 %v4072
    %4284 = vmatpush2.bf16.msra.mxu0 %v4071
    %4285 = vmatprep.subr.bf16.mxu0 %v4068
    %4286 = vmatpush2.bf16.msra.mxu0 %v4067
    %4287 = vmatprep.subr.bf16.mxu0 %v4064
    %4288 = vmatpush2.bf16.msra.mxu0 %v4063
    %4289 = vmatprep.subr.bf16.mxu0 %v4060
    %4290 = vmatpush2.bf16.msra.mxu0 %v4059
    %4291 = vmatprep.subr.bf16.mxu0 %v4056
    %4292 = vmatpush2.bf16.msra.mxu0 %v4055
    %4293 = vmatprep.subr.bf16.mxu0 %v4052
    %4294 = vmatpush2.bf16.msra.mxu0 %v4051
    %4295 = vmatprep.subr.bf16.mxu0 %v4048
    %4296 = vmatpush2.bf16.msra.mxu0 %v4047
    %4297 = vmatprep.subr.bf16.mxu0 %v4044
    %4298 = vmatpush2.bf16.msra.mxu0 %v4043
    %4299 = vmatprep.mubr.bf16.mxu0 %v3495
    %4300 = vmatmul.mubr.bf16.gmra.mxu0 %v3494
    %v4301 = vpop.f32.mrf.mxu0
    %v4302 = vadd.f32 0.0, %v4301
    %v4303 = vpop.f32.mrf.mxu0
    %v4304 = vadd.f32 0.0, %v4303
    %v4305 = vpop.f32.mrf.mxu0
    %v4306 = vpop.f32.mrf.mxu0
    %4307 = vdwg.mxu0
    %4308 = vmatprep.subr.bf16.mxu0 %v4104
    %4309 = vmatpush1.bf16.msra.mxu0 %v4103
    %4310 = vmatprep.subr.bf16.mxu0 %v4100
    %4311 = vmatpush1.bf16.msra.mxu0 %v4099
    %4312 = vmatprep.subr.bf16.mxu0 %v4096
    %4313 = vmatpush1.bf16.msra.mxu0 %v4095
    %4314 = vmatprep.subr.bf16.mxu0 %v4092
    %4315 = vmatpush1.bf16.msra.mxu0 %v4091
    %4316 = vmatprep.subr.bf16.mxu0 %v4088
    %4317 = vmatpush1.bf16.msra.mxu0 %v4087
    %4318 = vmatprep.subr.bf16.mxu0 %v4084
    %4319 = vmatpush1.bf16.msra.mxu0 %v4083
    %4320 = vmatprep.subr.bf16.mxu0 %v4080
    %4321 = vmatpush1.bf16.msra.mxu0 %v4079
    %4322 = vmatprep.subr.bf16.mxu0 %v4076
    %4323 = vmatpush1.bf16.msra.mxu0 %v4075
    %4324 = vmatprep.subr.bf16.mxu0 %v4136
    %4325 = vmatpush2.bf16.msra.mxu0 %v4135
    %4326 = vmatprep.subr.bf16.mxu0 %v4132
    %4327 = vmatpush2.bf16.msra.mxu0 %v4131
    %4328 = vmatprep.subr.bf16.mxu0 %v4128
    %4329 = vmatpush2.bf16.msra.mxu0 %v4127
    %4330 = vmatprep.subr.bf16.mxu0 %v4124
    %4331 = vmatpush2.bf16.msra.mxu0 %v4123
    %4332 = vmatprep.subr.bf16.mxu0 %v4120
    %4333 = vmatpush2.bf16.msra.mxu0 %v4119
    %4334 = vmatprep.subr.bf16.mxu0 %v4116
    %4335 = vmatpush2.bf16.msra.mxu0 %v4115
    %4336 = vmatprep.subr.bf16.mxu0 %v4112
    %4337 = vmatpush2.bf16.msra.mxu0 %v4111
    %4338 = vmatprep.subr.bf16.mxu0 %v4108
    %4339 = vmatpush2.bf16.msra.mxu0 %v4107
    %4340 = vmatprep.mubr.bf16.mxu0 %v3497
    %4341 = vmatmul.mubr.bf16.gmra.mxu0 %v3496
    %v4342 = vpop.f32.mrf.mxu0
    %v4343 = vadd.f32 %v4302, %v4342
    %v4344 = vpop.f32.mrf.mxu0
    %v4345 = vadd.f32 %v4304, %v4344
    %v4346 = vpop.f32.mrf.mxu0
    %v4347 = vpop.f32.mrf.mxu0
    %4348 = vdwg.mxu0
    %4349 = vmatprep.subr.bf16.mxu0 %v4042
    %4350 = vmatpush1.bf16.msra.mxu0 %v4041
    %4351 = vmatprep.subr.bf16.mxu0 %v4038
    %4352 = vmatpush1.bf16.msra.mxu0 %v4037
    %4353 = vmatprep.subr.bf16.mxu0 %v4034
    %4354 = vmatpush1.bf16.msra.mxu0 %v4033
    %4355 = vmatprep.subr.bf16.mxu0 %v4030
    %4356 = vmatpush1.bf16.msra.mxu0 %v4029
    %4357 = vmatprep.subr.bf16.mxu0 %v4026
    %4358 = vmatpush1.bf16.msra.mxu0 %v4025
    %4359 = vmatprep.subr.bf16.mxu0 %v4022
    %4360 = vmatpush1.bf16.msra.mxu0 %v4021
    %4361 = vmatprep.subr.bf16.mxu0 %v4018
    %4362 = vmatpush1.bf16.msra.mxu0 %v4017
    %4363 = vmatprep.subr.bf16.mxu0 %v4014
    %4364 = vmatpush1.bf16.msra.mxu0 %v4013
    %4365 = vmatprep.subr.bf16.mxu0 %v4074
    %4366 = vmatpush2.bf16.msra.mxu0 %v4073
    %4367 = vmatprep.subr.bf16.mxu0 %v4070
    %4368 = vmatpush2.bf16.msra.mxu0 %v4069
    %4369 = vmatprep.subr.bf16.mxu0 %v4066
    %4370 = vmatpush2.bf16.msra.mxu0 %v4065
    %4371 = vmatprep.subr.bf16.mxu0 %v4062
    %4372 = vmatpush2.bf16.msra.mxu0 %v4061
    %4373 = vmatprep.subr.bf16.mxu0 %v4058
    %4374 = vmatpush2.bf16.msra.mxu0 %v4057
    %4375 = vmatprep.subr.bf16.mxu0 %v4054
    %4376 = vmatpush2.bf16.msra.mxu0 %v4053
    %4377 = vmatprep.subr.bf16.mxu0 %v4050
    %4378 = vmatpush2.bf16.msra.mxu0 %v4049
    %4379 = vmatprep.subr.bf16.mxu0 %v4046
    %4380 = vmatpush2.bf16.msra.mxu0 %v4045
    %4381 = vmatprep.mubr.bf16.mxu0 %v3495
    %4382 = vmatmul.mubr.bf16.gmra.mxu0 %v3494
    %v4383 = vpop.f32.mrf.mxu0
    %v4384 = vadd.f32 0.0, %v4383
    %v4385 = vpop.f32.mrf.mxu0
    %v4386 = vadd.f32 0.0, %v4385
    %v4387 = vpop.f32.mrf.mxu0
    %v4388 = vpop.f32.mrf.mxu0
    %4389 = vdwg.mxu0
    %4390 = vmatprep.subr.bf16.mxu0 %v4106
    %4391 = vmatpush1.bf16.msra.mxu0 %v4105
    %4392 = vmatprep.subr.bf16.mxu0 %v4102
    %4393 = vmatpush1.bf16.msra.mxu0 %v4101
    %4394 = vmatprep.subr.bf16.mxu0 %v4098
    %4395 = vmatpush1.bf16.msra.mxu0 %v4097
    %4396 = vmatprep.subr.bf16.mxu0 %v4094
    %4397 = vmatpush1.bf16.msra.mxu0 %v4093
    %4398 = vmatprep.subr.bf16.mxu0 %v4090
    %4399 = vmatpush1.bf16.msra.mxu0 %v4089
    %4400 = vmatprep.subr.bf16.mxu0 %v4086
    %4401 = vmatpush1.bf16.msra.mxu0 %v4085
    %4402 = vmatprep.subr.bf16.mxu0 %v4082
    %4403 = vmatpush1.bf16.msra.mxu0 %v4081
    %4404 = vmatprep.subr.bf16.mxu0 %v4078
    %4405 = vmatpush1.bf16.msra.mxu0 %v4077
    %4406 = vmatprep.subr.bf16.mxu0 %v4138
    %4407 = vmatpush2.bf16.msra.mxu0 %v4137
    %4408 = vmatprep.subr.bf16.mxu0 %v4134
    %4409 = vmatpush2.bf16.msra.mxu0 %v4133
    %4410 = vmatprep.subr.bf16.mxu0 %v4130
    %4411 = vmatpush2.bf16.msra.mxu0 %v4129
    %4412 = vmatprep.subr.bf16.mxu0 %v4126
    %4413 = vmatpush2.bf16.msra.mxu0 %v4125
    %4414 = vmatprep.subr.bf16.mxu0 %v4122
    %4415 = vmatpush2.bf16.msra.mxu0 %v4121
    %4416 = vmatprep.subr.bf16.mxu0 %v4118
    %4417 = vmatpush2.bf16.msra.mxu0 %v4117
    %4418 = vmatprep.subr.bf16.mxu0 %v4114
    %4419 = vmatpush2.bf16.msra.mxu0 %v4113
    %4420 = vmatprep.subr.bf16.mxu0 %v4110
    %4421 = vmatpush2.bf16.msra.mxu0 %v4109
    %4422 = vmatprep.mubr.bf16.mxu0 %v3497
    %4423 = vmatmul.mubr.bf16.gmra.mxu0 %v3496
    %v4424 = vpop.f32.mrf.mxu0
    %v4425 = vadd.f32 %v4384, %v4424
    %v4426 = vpop.f32.mrf.mxu0
    %v4427 = vadd.f32 %v4386, %v4426
    %v4428 = vpop.f32.mrf.mxu0
    %v4429 = vpop.f32.mrf.mxu0
    %4430 = vdwg.mxu0
    %s4431 = scalar_lea.vmem [#allocation7], 24
    %v4432 = vld [vmem:[%s4431] sm:$0xff]
    %v4433 = vrot.slane %v4343, 4
    %v4434 = vadd.f32 %v4343, %v4433
    %v4435 = vrot.slane %v4434, 2
    %v4436 = vadd.f32 %v4434, %v4435
    %v4437 = vrot.slane %v4436, 1
    %v4438 = vadd.f32 %v4436, %v4437
    %v4439 = vrot.slane %v4345, 4
    %v4440 = vadd.f32 %v4345, %v4439
    %v4441 = vrot.slane %v4440, 2
    %v4442 = vadd.f32 %v4440, %v4441
    %v4443 = vrot.slane %v4442, 1
    %v4444 = vadd.f32 %v4442, %v4443
    %v4445 = vrot.slane %v4425, 4
    %v4446 = vadd.f32 %v4425, %v4445
    %v4447 = vrot.slane %v4446, 2
    %v4448 = vadd.f32 %v4446, %v4447
    %v4449 = vrot.slane %v4448, 1
    %v4450 = vadd.f32 %v4448, %v4449
    %v4451 = vrot.slane %v4427, 4
    %v4452 = vadd.f32 %v4427, %v4451
    %v4453 = vrot.slane %v4452, 2
    %v4454 = vadd.f32 %v4452, %v4453
    %v4455 = vrot.slane %v4454, 1
    %v4456 = vadd.f32 %v4454, %v4455
    %v4457 = vmul.f32 %v4343, %v4343
    %v4458 = vmul.f32 %v4345, %v4345
    %v4459 = vmul.f32 %v4425, %v4425
    %v4460 = vmul.f32 %v4427, %v4427
    %v4461 = vrot.slane %v4457, 4
    %v4462 = vadd.f32 %v4457, %v4461
    %v4463 = vrot.slane %v4462, 2
    %v4464 = vadd.f32 %v4462, %v4463
    %v4465 = vrot.slane %v4464, 1
    %v4466 = vadd.f32 %v4464, %v4465
    %v4467 = vrot.slane %v4458, 4
    %v4468 = vadd.f32 %v4458, %v4467
    %v4469 = vrot.slane %v4468, 2
    %v4470 = vadd.f32 %v4468, %v4469
    %v4471 = vrot.slane %v4470, 1
    %v4472 = vadd.f32 %v4470, %v4471
    %v4473 = vrot.slane %v4459, 4
    %v4474 = vadd.f32 %v4459, %v4473
    %v4475 = vrot.slane %v4474, 2
    %v4476 = vadd.f32 %v4474, %v4475
    %v4477 = vrot.slane %v4476, 1
    %v4478 = vadd.f32 %v4476, %v4477
    %v4479 = vrot.slane %v4460, 4
    %v4480 = vadd.f32 %v4460, %v4479
    %v4481 = vrot.slane %v4480, 2
    %v4482 = vadd.f32 %v4480, %v4481
    %v4483 = vrot.slane %v4482, 1
    %v4484 = vadd.f32 %v4482, %v4483
    %v4485 = vmul.f32 %v4438, 0.125
    %v4486 = vmul.f32 %v4444, 0.125
    %v4487 = vmul.f32 %v4450, 0.125
    %v4488 = vmul.f32 %v4456, 0.125
    %v4489 = vmul.f32 %v4466, 0.125
    %v4490 = vmul.f32 %v4472, 0.125
    %v4491 = vmul.f32 %v4478, 0.125
    %v4492 = vmul.f32 %v4484, 0.125
    %v4493 = vmul.f32 %v4485, %v4485
    %v4494 = vmul.f32 %v4486, %v4486
    %v4495 = vmul.f32 %v4487, %v4487
    %v4496 = vmul.f32 %v4488, %v4488
    %v4497 = vsub.f32 %v4489, %v4493
    %v4498 = vsub.f32 %v4490, %v4494
    %v4499 = vsub.f32 %v4491, %v4495
    %v4500 = vsub.f32 %v4492, %v4496
    %v4501 = vmax.f32 %v4497, 0.0
    %v4502 = vmax.f32 %v4498, 0.0
    %v4503 = vmax.f32 %v4499, 0.0
    %v4504 = vmax.f32 %v4500, 0.0
    %v4505 = vadd.f32 %v4501, 1e-05
    %v4506 = vadd.f32 %v4502, 1e-05
    %v4507 = vadd.f32 %v4503, 1e-05
    %v4508 = vadd.f32 %v4504, 1e-05
    %v4509 = vrsqrt.pop %v4505
    %v4510 = vrsqrt.pop %v4506
    %v4511 = vrsqrt.pop %v4507
    %v4512 = vrsqrt.pop %v4508
    %v4517 = vcombine.low %v4509, %v4510
    %v4518 = vcombine.low %v4511, %v4512
    %v4520 = vunpack.c.l.s4 1966171168
    %v4521 = vunpack.c.0.s8 %v4520
    %v4522 = vlaneseq
    %v4523 = vshrl.u32 %v4522, 7
    %v4524 = vsub.s32 %v4521, %v4523
    %v4525 = vrot.slane %v4517, %v4524
    %v4527 = vunpack.c.l.s4 1966171168
    %v4528 = vunpack.c.0.s8 %v4527
    %v4529 = vlaneseq
    %v4530 = vshrl.u32 %v4529, 7
    %v4531 = vsub.s32 %v4528, %v4530
    %v4532 = vrot.slane %v4518, %v4531
    %v4533 = vcombine.low %v4525, %v4532
    %v4535 = vunpack.c.l.s4 1966171168
    %v4536 = vunpack.c.0.s8 %v4535
    %v4537 = vlaneseq
    %v4538 = vshrl.u32 %v4537, 7
    %v4539 = vsub.s32 %v4536, %v4538
    %v4540 = vrot.slane %v4533, %v4539
    %v4542 = vmul.f32 %v4432, %v4540
    %v4544 = vlaneseq
    %v4545 = vshrl.u32 %v4544, 7
    %v4546 = vsub.s32 0, %v4545
    %v4547 = vrot.slane %v4542, %v4546
    %v4548 = vlaneseq
    %v4549 = vshrl.u32 %v4548, 7
    %v4550 = vsub.s32 1, %v4549
    %v4551 = vrot.slane %v4542, %v4550
    %v4552 = vlaneseq
    %v4553 = vshrl.u32 %v4552, 7
    %v4554 = vsub.s32 2, %v4553
    %v4555 = vrot.slane %v4542, %v4554
    %v4556 = vlaneseq
    %v4557 = vshrl.u32 %v4556, 7
    %v4558 = vsub.s32 3, %v4557
    %v4559 = vrot.slane %v4542, %v4558
    %v4564 = vmul.f32 %v4485, %v4547
    %v4565 = vmul.f32 %v4486, %v4551
    %v4566 = vmul.f32 %v4487, %v4555
    %v4567 = vmul.f32 %v4488, %v4559
    %v4569 = vrot.slane %v4432, 4
    %v4575 = vcombine.low %v4564, %v4565
    %v4576 = vcombine.low %v4566, %v4567
    %v4578 = vunpack.c.l.s4 1966171168
    %v4579 = vunpack.c.0.s8 %v4578
    %v4580 = vlaneseq
    %v4581 = vshrl.u32 %v4580, 7
    %v4582 = vsub.s32 %v4579, %v4581
    %v4583 = vrot.slane %v4575, %v4582
    %v4585 = vunpack.c.l.s4 1966171168
    %v4586 = vunpack.c.0.s8 %v4585
    %v4587 = vlaneseq
    %v4588 = vshrl.u32 %v4587, 7
    %v4589 = vsub.s32 %v4586, %v4588
    %v4590 = vrot.slane %v4576, %v4589
    %v4591 = vcombine.low %v4583, %v4590
    %v4593 = vunpack.c.l.s4 1966171168
    %v4594 = vunpack.c.0.s8 %v4593
    %v4595 = vlaneseq
    %v4596 = vshrl.u32 %v4595, 7
    %v4597 = vsub.s32 %v4594, %v4596
    %v4598 = vrot.slane %v4591, %v4597
    %v4600 = vsub.f32 %v4569, %v4598
    %v4601 = vmul.f32 %v4343, %v4547
    %v4602 = vmul.f32 %v4345, %v4551
    %v4603 = vmul.f32 %v4425, %v4555
    %v4604 = vmul.f32 %v4427, %v4559
    %v4606 = vlaneseq
    %v4607 = vshrl.u32 %v4606, 7
    %v4608 = vsub.s32 0, %v4607
    %v4609 = vrot.slane %v4600, %v4608
    %v4610 = vlaneseq
    %v4611 = vshrl.u32 %v4610, 7
    %v4612 = vsub.s32 1, %v4611
    %v4613 = vrot.slane %v4600, %v4612
    %v4614 = vlaneseq
    %v4615 = vshrl.u32 %v4614, 7
    %v4616 = vsub.s32 2, %v4615
    %v4617 = vrot.slane %v4600, %v4616
    %v4618 = vlaneseq
    %v4619 = vshrl.u32 %v4618, 7
    %v4620 = vsub.s32 3, %v4619
    %v4621 = vrot.slane %v4600, %v4620
    %v4626 = vadd.f32 %v4601, %v4609
    %v4627 = vadd.f32 %v4602, %v4613
    %v4628 = vadd.f32 %v4603, %v4617
    %v4629 = vadd.f32 %v4604, %v4621
    %v4630 = vmax.f32 %v4626, 0.0
    %v4631 = vmax.f32 %v4627, 0.0
    %v4632 = vmax.f32 %v4628, 0.0
    %v4633 = vmax.f32 %v4629, 0.0
    %v4634 = vld [vmem:[#allocation8] sm:$0xf]
    %v4635 = vunpack.c.l.bf16 %v4634
    %v4637 = vlaneseq
    %v4638 = vshrl.u32 %v4637, 7
    %v4639 = vsub.s32 0, %v4638
    %v4640 = vrot.slane %v4635, %v4639
    %v4641 = vlaneseq
    %v4642 = vshrl.u32 %v4641, 7
    %v4643 = vsub.s32 2, %v4642
    %v4644 = vrot.slane %v4635, %v4643
    %v4645 = vlaneseq
    %v4646 = vshrl.u32 %v4645, 7
    %v4647 = vsub.s32 4, %v4646
    %v4648 = vrot.slane %v4635, %v4647
    %v4649 = vlaneseq
    %v4650 = vshrl.u32 %v4649, 7
    %v4651 = vsub.s32 6, %v4650
    %v4652 = vrot.slane %v4635, %v4651
    %v4657 = vlaneseq
    %v4658 = vshrl.u32 %v4657, 7
    %v4659 = vsub.s32 0, %v4658
    %v4660 = vrot.slane %v4640, %v4659
    %v4661 = vlaneseq
    %v4662 = vshrl.u32 %v4661, 7
    %v4663 = vsub.s32 0, %v4662
    %v4664 = vrot.slane %v4644, %v4663
    %v4665 = vlaneseq
    %v4666 = vshrl.u32 %v4665, 7
    %v4667 = vsub.s32 0, %v4666
    %v4668 = vrot.slane %v4648, %v4667
    %v4669 = vlaneseq
    %v4670 = vshrl.u32 %v4669, 7
    %v4671 = vsub.s32 0, %v4670
    %v4672 = vrot.slane %v4652, %v4671
    %v4673 = vmul.f32 %v4630, %v4660
    %v4674 = vmul.f32 %v4631, %v4664
    %v4675 = vmul.f32 %v4632, %v4668
    %v4676 = vmul.f32 %v4633, %v4672
    %v4677 = vadd.f32 %v4673, %v4674
    %v4678 = vadd.f32 %v4677, %v4675
    %v4679 = vadd.f32 %v4678, %v4676
    %4680 = vadd.xlane.f32.xlu0 %v4679
    %v4681 = vpop.xlane.xlu0 %4680
    %s4682 = sld [smem:[#allocation2]]
    %v4683 = vstv %s4682
    %v4684 = vadd.f32 %v4681, %v4683
    %vm4685 = vcmask 7168
    %4686 = vst.msk [vmem:[%s5] sm:$0xff] %vm4685, %v4684
    // Predicated region
    $region38: #{tpu_custom_call.1} parent=1 // pred_check
      _
    $region39: #{tpu_custom_call.1} parent=1 // pred_check_branch
      %4688 = sbr.rel (0) target = $region41
    $region40: #{tpu_custom_call.1} parent=1 // pred_region
      _
    $region41: #{tpu_custom_call.1} parent=1 // pred_fallthru
      _
    // Predicated region
    $region42: #{tpu_custom_call.1} parent=1 // pred_check
      _
    $region43: #{tpu_custom_call.1} parent=1 // pred_check_branch
      %4690 = sbr.rel (0) target = $region45
    $region44: #{tpu_custom_call.1} parent=1 // pred_region
      _
    $region45: #{tpu_custom_call.1} parent=1 // pred_fallthru
      _
    %4691 = vsyncpa [#allocation4], 1
    %4692 = vsyncpa [#allocation6], 1
    %4693 = vsyncpa [#allocation9], 1

</llo_original>
